<compile_context>
chip_gen: v7x
topology: tpu7x:2x2x1
jax: 0.10.0
libtpu: 0.0.40
codegen_flags: <defaults>
</compile_context>

<pallas_src>
import jax
import jax.numpy as jnp
from jax.experimental import pallas as pl
from jax.experimental.pallas import tpu as pltpu

# ---- model / problem sizes (small, consistent with the module) -------------
B = 2          # batch
S = 8          # seq_len
D = 16         # input_dim (per timestep)
H = 128        # lstm_hidden_dim
MLP_H = 128    # mlp_hidden_dims = [128]
A = 8          # output_dim (number of actions)
NLAYERS = 2    # lstm_num_layers
BP = 8         # batch padded to one full sublane tile
QPAD = 128     # lane-dense q-output width (real width = A)
NEG = 1e9      # mask penalty, matches (mask - 1) * 1e9
H4 = 4 * H


def dqn_lstm_kernel(x_ref,                       # [S*BP, D]  bf16, time-major rows t*BP+b
                    wih0_ref, b0_ref,            # [D,4H] bf16, [1,4H] f32 (g cols x2)
                    wcomb_ref, b1_ref,           # [2H,8H] bf16 [[Whh0,Wih1],[0,Whh1]], [1,4H] f32
                    wm1_ref, bm1_ref,            # [H,MLP_H] bf16, [1,MLP_H] f32
                    wm2_ref, bm2_ref,            # [MLP_H,QPAD] bf16 (zero-padded), [1,QPAD] f32
                    mask_ref,                    # [BP,QPAD] f32 (zero-padded)
                    q_ref, h_out_ref, c_out_ref,
                    xproj_ref):                  # VMEM scratch [S*BP, 4H] f32
    f32 = jnp.float32
    bf16 = jnp.bfloat16

    # Layer-0 input projection for ALL timesteps: one well-shaped matmul, off
    # the serial recurrence, parked in VMEM so only ~4 vregs are live per stage.
    xproj_ref[...] = (jnp.dot(x_ref[...], wih0_ref[...], preferred_element_type=f32)
                      + b0_ref[...])

    # Loop-invariant bias broadcast hoisted once (JAX does not CSE broadcasts).
    b1b = jnp.broadcast_to(b1_ref[...], (BP, H4))

    def finish_cell(sig, c_prev):
        # Gate order (i, f, o, g).  g columns were pre-scaled by 2 at pack
        # time, so tanh(g_pre) == 2*sigmoid(2*g_pre) - 1 rides the same fused
        # sigmoid slab; the fixup below is a single VPU multiply-add.
        i = sig[:, 0:H]
        f = sig[:, H:2 * H]
        o = sig[:, 2 * H:3 * H]
        g = 2.0 * sig[:, 3 * H:4 * H] - 1.0
        c_new = f * c_prev + i * g
        h_new = o * jnp.tanh(c_new)
        return h_new, c_new

    # hidden == None -> zero initial state (module's init_hidden).
    # TODO(synk): caller-supplied initial hidden state is not plumbed through;
    # only the hidden=None (zero-init) path of the module is implemented.
    zeros = jnp.zeros((BP, H), f32)
    h1, c1 = zeros, zeros

    # Prologue: layer-0 cell at t=0 (recurrent term is zero).
    h0, c0 = finish_cell(jax.nn.sigmoid(xproj_ref[pl.ds(0, BP), :]), zeros)

    # TODO(synk): inter-layer LSTM dropout (p=0.2) is a train-only op; this
    # inference forward omits it (identical to model.eval()).

    # Wavefront recurrence, fully unrolled (S=8 static).  Stage t computes
    # layer-1 gates for time t and layer-0 gates for time t+1 from one fused
    # matmul against wcomb = [[Whh0, Wih1], [0, Whh1]]  (K = 2H = 256).
    # TODO(synk): weight-stationary MXU driving (pltpu.matmul_push_rhs /
    # matmul_acc_lhs / matmul_pop) to pin wcomb in MXU staging registers on
    # v6e/v7x; skipped here to keep the lowering portable across generations.
    for t in range(S - 1):
        lhs = jnp.concatenate([h0, h1], axis=1).astype(bf16)             # [BP, 2H]
        mm = jnp.dot(lhs, wcomb_ref[...], preferred_element_type=f32)    # [BP, 8H]
        sig0 = jax.nn.sigmoid(mm[:, :H4] + xproj_ref[pl.ds((t + 1) * BP, BP), :])
        sig1 = jax.nn.sigmoid(mm[:, H4:] + b1b)
        h1, c1 = finish_cell(sig1, c1)   # layer-1 state at time t
        h0, c0 = finish_cell(sig0, c0)   # layer-0 state at time t+1

    # Epilogue: layer-1 cell at the final timestep (only the right half of the
    # fused product is consumed).
    lhs = jnp.concatenate([h0, h1], axis=1).astype(bf16)
    mm = jnp.dot(lhs, wcomb_ref[...], preferred_element_type=f32)
    h1, c1 = finish_cell(jax.nn.sigmoid(mm[:, H4:] + b1b), c1)

    # last_output = lstm_out[:, -1, :] == final hidden of the top LSTM layer.
    hid = (jnp.dot(h1.astype(bf16), wm1_ref[...], preferred_element_type=f32)
           + bm1_ref[...])
    hid = jnp.maximum(hid, 0.0)
    q = (jnp.dot(hid.astype(bf16), wm2_ref[...], preferred_element_type=f32)
         + bm2_ref[...])

    # q_values = q_values + (mask - 1) * 1e9 ; lane-dense [BP, QPAD] store.
    q_ref[...] = q + (mask_ref[...] - 1.0) * NEG

    # new hidden state (h, c), stacked over layers: [NLAYERS, BP, H]
    h_out_ref[0] = h0
    h_out_ref[1] = h1
    c_out_ref[0] = c0
    c_out_ref[1] = c1


@jax.jit
def dqn_lstm_forward(x, kparams, mask):
    """x: [B, S, D] (batch_first), mask: [B, A].
    Returns (q_values [B, A], (h, c) each [NLAYERS, B, H])."""
    (wih0, b0, wcomb, b1, wm1, bm1, wm2, bm2) = kparams

    # Pad batch to one full sublane tile and flatten time-major so every
    # in-kernel per-step access is a whole (8,128)-tile slice.
    x_pad = jnp.zeros((BP, S, D), jnp.float32).at[:B].set(x)
    x_tm = jnp.transpose(x_pad, (1, 0, 2)).reshape(S * BP, D).astype(jnp.bfloat16)
    mask_pad = jnp.zeros((BP, QPAD), jnp.float32).at[:B, :A].set(mask)

    vmem = pl.BlockSpec(memory_space=pltpu.MemorySpace.VMEM)
    args = (x_tm, wih0, b0, wcomb, b1, wm1, bm1, wm2, bm2, mask_pad)
    out_shape = (jax.ShapeDtypeStruct((BP, QPAD), jnp.float32),
                 jax.ShapeDtypeStruct((NLAYERS, BP, H), jnp.float32),
                 jax.ShapeDtypeStruct((NLAYERS, BP, H), jnp.float32))
    # Whole-array VMEM residency (< 1 MiB total); no grid / tiling needed.
    # TODO(synk): for batched inference over many independent sequences, add a
    # "parallel" grid axis over sequence groups (weights with a constant
    # index_map) to engage v7x's second TensorCore and amortize launch/DMA.
    q_pad, h_pad, c_pad = pl.pallas_call(
        dqn_lstm_kernel,
        out_shape=out_shape,
        in_specs=[vmem] * len(args),
        out_specs=(vmem, vmem, vmem),
        scratch_shapes=[pltpu.VMEM((S * BP, H4), jnp.float32)],
    )(*args)
    return q_pad[:B, :A], (h_pad[:, :B, :], c_pad[:, :B, :])


# ---- deterministic parameter construction (mimics _init_weights) -----------
def _xavier_uniform(key, shape):
    fan_out, fan_in = shape                       # PyTorch [out, in] layout
    bound = jnp.sqrt(6.0 / (fan_in + fan_out))
    return jax.random.uniform(key, shape, jnp.float32, -bound, bound)


def _orthogonal(key, shape):
    n = max(shape)
    m = jax.random.normal(key, (n, n), jnp.float32)
    q_mat, _ = jnp.linalg.qr(m)
    return q_mat[:shape[0], :shape[1]].astype(jnp.float32)


def make_params(key):
    """PyTorch-convention parameters: weights [out, in], LSTM gate order
    (i, f, g, o), separate bias_ih / bias_hh, all biases zero."""
    ks = jax.random.split(key, 6)
    wih0 = _xavier_uniform(ks[0], (4 * H, D))
    whh0 = _orthogonal(ks[1], (4 * H, H))
    wih1 = _xavier_uniform(ks[2], (4 * H, H))
    whh1 = _orthogonal(ks[3], (4 * H, H))
    zb = jnp.zeros((4 * H,), jnp.float32)
    wm1 = _xavier_uniform(ks[4], (MLP_H, H))
    bm1 = jnp.zeros((MLP_H,), jnp.float32)
    wm2 = _xavier_uniform(ks[5], (A, MLP_H))
    bm2 = jnp.zeros((A,), jnp.float32)
    return (wih0, whh0, zb, zb, wih1, whh1, zb, zb, wm1, bm1, wm2, bm2)


# ---- PyTorch layout -> kernel layout packing --------------------------------
_IFGO_TO_IFOG = (0, 1, 3, 2)   # PyTorch packs (i, f, g, o); kernel uses (i, f, o, g)


def _permute_gates(w):
    """Reorder the leading 4H gate axis from PyTorch (i,f,g,o) to (i,f,o,g)."""
    return jnp.concatenate([w[k * H:(k + 1) * H] for k in _IFGO_TO_IFOG], axis=0)


def pack_params(p):
    """PyTorch-layout params -> kernel layout:
      * transpose to [in, out] for row-vector matmuls
      * permute gate blocks (i,f,g,o) -> (i,f,o,g); sum bias_ih + bias_hh
      * scale g-gate columns by 2 so tanh(x) == 2*sigmoid(2x) - 1 in-kernel
      * build the wavefront-fused weight [[Whh0, Wih1], [0, Whh1]]  ([2H, 8H])
      * pad the MLP output layer to QPAD lanes for a lane-dense q store
      * bf16 matmul operands, f32 biases."""
    (wih0, whh0, bih0, bhh0, wih1, whh1, bih1, bhh1, wm1, bm1, wm2, bm2) = p
    bf16 = jnp.bfloat16
    gscale = jnp.concatenate([jnp.ones((3 * H,), jnp.float32),
                              jnp.full((H,), 2.0, jnp.float32)])   # (i,f,o,g) order

    def lstm_mat(w):            # [4H, in] -> [in, 4H]
        return (_permute_gates(w).T * gscale).astype(bf16)

    def lstm_bias(bi, bh):      # [4H], [4H] -> [1, 4H]
        return (_permute_gates(bi + bh) * gscale)[None, :].astype(jnp.float32)

    wih0_k, whh0_k = lstm_mat(wih0), lstm_mat(whh0)
    wih1_k, whh1_k = lstm_mat(wih1), lstm_mat(whh1)
    b0_k, b1_k = lstm_bias(bih0, bhh0), lstm_bias(bih1, bhh1)
    wcomb = jnp.concatenate(
        [jnp.concatenate([whh0_k, wih1_k], axis=1),
         jnp.concatenate([jnp.zeros_like(whh1_k), whh1_k], axis=1)], axis=0)
    wm1_k = wm1.T.astype(bf16)                        # [H, MLP_H]
    bm1_k = bm1[None, :].astype(jnp.float32)
    wm2_k = jnp.zeros((MLP_H, QPAD), jnp.float32).at[:, :A].set(wm2.T).astype(bf16)
    bm2_k = jnp.zeros((1, QPAD), jnp.float32).at[0, :A].set(bm2)
    return (wih0_k, b0_k, wcomb, b1_k, wm1_k, bm1_k, wm2_k, bm2_k)


# ---- pure-JAX reference (PyTorch convention, standard cell math) ------------
def reference_forward(x, p, mask):
    (wih0, whh0, bih0, bhh0, wih1, whh1, bih1, bhh1, wm1, bm1, wm2, bm2) = p
    bf16 = jnp.bfloat16

    def mm(a, w):   # row-vector activations x PyTorch [out, in] weight
        return jnp.dot(a.astype(bf16), w.T.astype(bf16),
                       preferred_element_type=jnp.float32)

    def cell(gates, c_prev):
        i = jax.nn.sigmoid(gates[:, 0:H])
        f = jax.nn.sigmoid(gates[:, H:2 * H])
        g = jnp.tanh(gates[:, 2 * H:3 * H])
        o = jax.nn.sigmoid(gates[:, 3 * H:4 * H])
        c_new = f * c_prev + i * g
        return o * jnp.tanh(c_new), c_new

    b0 = (bih0 + bhh0)[None, :]
    b1 = (bih1 + bhh1)[None, :]
    h0 = c0 = h1 = c1 = jnp.zeros((B, H), jnp.float32)
    for t in range(S):
        h0, c0 = cell(mm(x[:, t, :], wih0) + mm(h0, whh0) + b0, c0)
        h1, c1 = cell(mm(h0, wih1) + mm(h1, whh1) + b1, c1)
    hid = jnp.maximum(mm(h1, wm1) + bm1[None, :], 0.0)
    q = mm(hid, wm2) + bm2[None, :] + (mask - 1.0) * NEG
    return q, (jnp.stack([h0, h1]), jnp.stack([c0, c1]))


if __name__ == "__main__":
    key = jax.random.PRNGKey(0)
    k_x, k_p, k_m = jax.random.split(key, 3)

    x = jax.random.normal(k_x, (B, S, D), jnp.float32)              # [B, S, D]
    torch_params = make_params(k_p)
    kparams = pack_params(torch_params)
    # action mask for final timestep: 1 = allowed, 0 = masked out
    mask = (jax.random.uniform(k_m, (B, A)) > 0.3).astype(jnp.float32)

    q, (h_new, c_new) = dqn_lstm_forward(x, kparams, mask)
    jax.block_until_ready((q, h_new, c_new))

    q_ref, (h_ref, c_ref) = reference_forward(x, torch_params, mask)
    assert q.shape == (B, A)
    assert h_new.shape == (NLAYERS, B, H) and c_new.shape == (NLAYERS, B, H)
    assert jnp.allclose(q, q_ref, atol=5e-3, rtol=5e-3)
    assert jnp.allclose(h_new, h_ref, atol=3e-3, rtol=3e-3)
    assert jnp.allclose(c_new, c_ref, atol=3e-3, rtol=3e-3)

    print("KERNEL_OK")
</pallas_src>

<mosaic_0001>
module attributes {stable_mosaic.version = 11 : i64} {
  func.func @dqn_lstm_kernel(%arg0: memref<64x16xbf16, #tpu.memory_space<vmem>>, %arg1: memref<16x512xbf16, #tpu.memory_space<vmem>>, %arg2: memref<1x512xf32, #tpu.memory_space<vmem>>, %arg3: memref<256x1024xbf16, #tpu.memory_space<vmem>>, %arg4: memref<1x512xf32, #tpu.memory_space<vmem>>, %arg5: memref<128x128xbf16, #tpu.memory_space<vmem>>, %arg6: memref<1x128xf32, #tpu.memory_space<vmem>>, %arg7: memref<128x128xbf16, #tpu.memory_space<vmem>>, %arg8: memref<1x128xf32, #tpu.memory_space<vmem>>, %arg9: memref<8x128xf32, #tpu.memory_space<vmem>>, %arg10: memref<8x128xf32, #tpu.memory_space<vmem>>, %arg11: memref<2x8x128xf32, #tpu.memory_space<vmem>>, %arg12: memref<2x8x128xf32, #tpu.memory_space<vmem>>, %arg13: memref<64x512xf32, #tpu.memory_space<vmem>>) attributes {dimension_semantics = [], scalar_prefetch = 0 : i64, scratch_operands = 1 : i64, tpu.core_type = #tpu.core_type<tc>} {
    %c0 = arith.constant 0 : index
    %c0_0 = arith.constant 0 : index
    %0 = vector.load %arg0[%c0, %c0_0] : memref<64x16xbf16, #tpu.memory_space<vmem>>, vector<64x16xbf16>
    %c0_1 = arith.constant 0 : index
    %c0_2 = arith.constant 0 : index
    %1 = vector.load %arg1[%c0_1, %c0_2] : memref<16x512xbf16, #tpu.memory_space<vmem>>, vector<16x512xbf16>
    %cst = arith.constant dense<0.000000e+00> : vector<64x512xf32>
    %2 = tpu.matmul %0, %1, %cst {dimension_numbers = #tpu.dot_dimension_numbers<[1], [0], [0], [1], [0, 0, 1, 1], [], []>} : vector<64x16xbf16>, vector<16x512xbf16>, vector<64x512xf32> -> vector<64x512xf32>
    %c0_3 = arith.constant 0 : index
    %c0_4 = arith.constant 0 : index
    %3 = vector.load %arg2[%c0_3, %c0_4] : memref<1x512xf32, #tpu.memory_space<vmem>>, vector<1x512xf32>
    %4 = vector.broadcast %3 : vector<1x512xf32> to vector<64x512xf32>
    %5 = arith.addf %2, %4 : vector<64x512xf32>
    %c0_5 = arith.constant 0 : index
    %c0_6 = arith.constant 0 : index
    %6 = vector.load %arg13[%c0_5, %c0_6] : memref<64x512xf32, #tpu.memory_space<vmem>>, vector<64x512xf32>
    tpu.vector_store %arg13[%c0_5, %c0_6], %5 {strides = array<i32>} : memref<64x512xf32, #tpu.memory_space<vmem>>, vector<64x512xf32>,
    %c0_7 = arith.constant 0 : index
    %c0_8 = arith.constant 0 : index
    %7 = vector.load %arg4[%c0_7, %c0_8] : memref<1x512xf32, #tpu.memory_space<vmem>>, vector<1x512xf32>
    %8 = vector.shape_cast %7 : vector<1x512xf32> to vector<1x512xf32>
    %9 = vector.broadcast %8 : vector<1x512xf32> to vector<8x512xf32>
    %cst_9 = arith.constant 0.000000e+00 : f32
    %10 = vector.broadcast %cst_9 : f32 to vector<8x128xf32>
    %c0_10 = arith.constant 0 : index
    %c0_11 = arith.constant 0 : index
    %11 = vector.load %arg13[%c0_10, %c0_11] : memref<64x512xf32, #tpu.memory_space<vmem>>, vector<8x512xf32>
    %12 = arith.negf %11 : vector<8x512xf32>
    %13 = math.exp %12 : vector<8x512xf32>
    %cst_12 = arith.constant 1.000000e+00 : f32
    %14 = vector.broadcast %cst_12 : f32 to vector<8x512xf32>
    %15 = arith.addf %14, %13 : vector<8x512xf32>
    %16 = arith.divf %14, %15 : vector<8x512xf32>
    %17 = vector.extract_strided_slice %16 {offsets = [0, 0], sizes = [8, 128], strides = [1, 1]} : vector<8x512xf32> to vector<8x128xf32>
    %18 = vector.extract_strided_slice %16 {offsets = [0, 128], sizes = [8, 128], strides = [1, 1]} : vector<8x512xf32> to vector<8x128xf32>
    %19 = vector.extract_strided_slice %16 {offsets = [0, 256], sizes = [8, 128], strides = [1, 1]} : vector<8x512xf32> to vector<8x128xf32>
    %20 = vector.extract_strided_slice %16 {offsets = [0, 384], sizes = [8, 128], strides = [1, 1]} : vector<8x512xf32> to vector<8x128xf32>
    %cst_13 = arith.constant 2.000000e+00 : f32
    %21 = vector.broadcast %cst_13 : f32 to vector<8x128xf32>
    %22 = arith.mulf %21, %20 : vector<8x128xf32>
    %cst_14 = arith.constant 1.000000e+00 : f32
    %23 = vector.broadcast %cst_14 : f32 to vector<8x128xf32>
    %24 = arith.subf %22, %23 : vector<8x128xf32>
    %25 = arith.mulf %18, %10 : vector<8x128xf32>
    %26 = arith.mulf %17, %24 : vector<8x128xf32>
    %27 = arith.addf %25, %26 : vector<8x128xf32>
    %28 = math.tanh %27 : vector<8x128xf32>
    %29 = arith.mulf %19, %28 : vector<8x128xf32>
    %30 = tpu.concatenate %29, %10 in 1 : vector<8x128xf32>, vector<8x128xf32> -> vector<8x256xf32>
    %31 = arith.truncf %30 : vector<8x256xf32> to vector<8x256xbf16>
    %c0_15 = arith.constant 0 : index
    %c0_16 = arith.constant 0 : index
    %32 = vector.load %arg3[%c0_15, %c0_16] : memref<256x1024xbf16, #tpu.memory_space<vmem>>, vector<256x1024xbf16>
    %cst_17 = arith.constant dense<0.000000e+00> : vector<8x1024xf32>
    %33 = tpu.matmul %31, %32, %cst_17 {dimension_numbers = #tpu.dot_dimension_numbers<[1], [0], [0], [1], [0, 0, 1, 1], [], []>} : vector<8x256xbf16>, vector<256x1024xbf16>, vector<8x1024xf32> -> vector<8x1024xf32>
    %34 = vector.extract_strided_slice %33 {offsets = [0, 0], sizes = [8, 512], strides = [1, 1]} : vector<8x1024xf32> to vector<8x512xf32>
    %c8 = arith.constant 8 : index
    %c0_18 = arith.constant 0 : index
    %35 = vector.load %arg13[%c8, %c0_18] : memref<64x512xf32, #tpu.memory_space<vmem>>, vector<8x512xf32>
    %36 = arith.addf %34, %35 : vector<8x512xf32>
    %37 = arith.negf %36 : vector<8x512xf32>
    %38 = math.exp %37 : vector<8x512xf32>
    %cst_19 = arith.constant 1.000000e+00 : f32
    %39 = vector.broadcast %cst_19 : f32 to vector<8x512xf32>
    %40 = arith.addf %39, %38 : vector<8x512xf32>
    %41 = arith.divf %39, %40 : vector<8x512xf32>
    %42 = vector.extract_strided_slice %33 {offsets = [0, 512], sizes = [8, 512], strides = [1, 1]} : vector<8x1024xf32> to vector<8x512xf32>
    %43 = arith.addf %42, %9 : vector<8x512xf32>
    %44 = arith.negf %43 : vector<8x512xf32>
    %45 = math.exp %44 : vector<8x512xf32>
    %cst_20 = arith.constant 1.000000e+00 : f32
    %46 = vector.broadcast %cst_20 : f32 to vector<8x512xf32>
    %47 = arith.addf %46, %45 : vector<8x512xf32>
    %48 = arith.divf %46, %47 : vector<8x512xf32>
    %49 = vector.extract_strided_slice %48 {offsets = [0, 0], sizes = [8, 128], strides = [1, 1]} : vector<8x512xf32> to vector<8x128xf32>
    %50 = vector.extract_strided_slice %48 {offsets = [0, 128], sizes = [8, 128], strides = [1, 1]} : vector<8x512xf32> to vector<8x128xf32>
    %51 = vector.extract_strided_slice %48 {offsets = [0, 256], sizes = [8, 128], strides = [1, 1]} : vector<8x512xf32> to vector<8x128xf32>
    %52 = vector.extract_strided_slice %48 {offsets = [0, 384], sizes = [8, 128], strides = [1, 1]} : vector<8x512xf32> to vector<8x128xf32>
    %cst_21 = arith.constant 2.000000e+00 : f32
    %53 = vector.broadcast %cst_21 : f32 to vector<8x128xf32>
    %54 = arith.mulf %53, %52 : vector<8x128xf32>
    %cst_22 = arith.constant 1.000000e+00 : f32
    %55 = vector.broadcast %cst_22 : f32 to vector<8x128xf32>
    %56 = arith.subf %54, %55 : vector<8x128xf32>
    %57 = arith.mulf %50, %10 : vector<8x128xf32>
    %58 = arith.mulf %49, %56 : vector<8x128xf32>
    %59 = arith.addf %57, %58 : vector<8x128xf32>
    %60 = math.tanh %59 : vector<8x128xf32>
    %61 = arith.mulf %51, %60 : vector<8x128xf32>
    %62 = vector.extract_strided_slice %41 {offsets = [0, 0], sizes = [8, 128], strides = [1, 1]} : vector<8x512xf32> to vector<8x128xf32>
    %63 = vector.extract_strided_slice %41 {offsets = [0, 128], sizes = [8, 128], strides = [1, 1]} : vector<8x512xf32> to vector<8x128xf32>
    %64 = vector.extract_strided_slice %41 {offsets = [0, 256], sizes = [8, 128], strides = [1, 1]} : vector<8x512xf32> to vector<8x128xf32>
    %65 = vector.extract_strided_slice %41 {offsets = [0, 384], sizes = [8, 128], strides = [1, 1]} : vector<8x512xf32> to vector<8x128xf32>
    %cst_23 = arith.constant 2.000000e+00 : f32
    %66 = vector.broadcast %cst_23 : f32 to vector<8x128xf32>
    %67 = arith.mulf %66, %65 : vector<8x128xf32>
    %cst_24 = arith.constant 1.000000e+00 : f32
    %68 = vector.broadcast %cst_24 : f32 to vector<8x128xf32>
    %69 = arith.subf %67, %68 : vector<8x128xf32>
    %70 = arith.mulf %63, %27 : vector<8x128xf32>
    %71 = arith.mulf %62, %69 : vector<8x128xf32>
    %72 = arith.addf %70, %71 : vector<8x128xf32>
    %73 = math.tanh %72 : vector<8x128xf32>
    %74 = arith.mulf %64, %73 : vector<8x128xf32>
    %75 = tpu.concatenate %74, %61 in 1 : vector<8x128xf32>, vector<8x128xf32> -> vector<8x256xf32>
    %76 = arith.truncf %75 : vector<8x256xf32> to vector<8x256xbf16>
    %c0_25 = arith.constant 0 : index
    %c0_26 = arith.constant 0 : index
    %77 = vector.load %arg3[%c0_25, %c0_26] : memref<256x1024xbf16, #tpu.memory_space<vmem>>, vector<256x1024xbf16>
    %cst_27 = arith.constant dense<0.000000e+00> : vector<8x1024xf32>
    %78 = tpu.matmul %76, %77, %cst_27 {dimension_numbers = #tpu.dot_dimension_numbers<[1], [0], [0], [1], [0, 0, 1, 1], [], []>} : vector<8x256xbf16>, vector<256x1024xbf16>, vector<8x1024xf32> -> vector<8x1024xf32>
    %79 = vector.extract_strided_slice %78 {offsets = [0, 0], sizes = [8, 512], strides = [1, 1]} : vector<8x1024xf32> to vector<8x512xf32>
    %c16 = arith.constant 16 : index
    %c0_28 = arith.constant 0 : index
    %80 = vector.load %arg13[%c16, %c0_28] : memref<64x512xf32, #tpu.memory_space<vmem>>, vector<8x512xf32>
    %81 = arith.addf %79, %80 : vector<8x512xf32>
    %82 = arith.negf %81 : vector<8x512xf32>
    %83 = math.exp %82 : vector<8x512xf32>
    %cst_29 = arith.constant 1.000000e+00 : f32
    %84 = vector.broadcast %cst_29 : f32 to vector<8x512xf32>
    %85 = arith.addf %84, %83 : vector<8x512xf32>
    %86 = arith.divf %84, %85 : vector<8x512xf32>
    %87 = vector.extract_strided_slice %78 {offsets = [0, 512], sizes = [8, 512], strides = [1, 1]} : vector<8x1024xf32> to vector<8x512xf32>
    %88 = arith.addf %87, %9 : vector<8x512xf32>
    %89 = arith.negf %88 : vector<8x512xf32>
    %90 = math.exp %89 : vector<8x512xf32>
    %cst_30 = arith.constant 1.000000e+00 : f32
    %91 = vector.broadcast %cst_30 : f32 to vector<8x512xf32>
    %92 = arith.addf %91, %90 : vector<8x512xf32>
    %93 = arith.divf %91, %92 : vector<8x512xf32>
    %94 = vector.extract_strided_slice %93 {offsets = [0, 0], sizes = [8, 128], strides = [1, 1]} : vector<8x512xf32> to vector<8x128xf32>
    %95 = vector.extract_strided_slice %93 {offsets = [0, 128], sizes = [8, 128], strides = [1, 1]} : vector<8x512xf32> to vector<8x128xf32>
    %96 = vector.extract_strided_slice %93 {offsets = [0, 256], sizes = [8, 128], strides = [1, 1]} : vector<8x512xf32> to vector<8x128xf32>
    %97 = vector.extract_strided_slice %93 {offsets = [0, 384], sizes = [8, 128], strides = [1, 1]} : vector<8x512xf32> to vector<8x128xf32>
    %cst_31 = arith.constant 2.000000e+00 : f32
    %98 = vector.broadcast %cst_31 : f32 to vector<8x128xf32>
    %99 = arith.mulf %98, %97 : vector<8x128xf32>
    %cst_32 = arith.constant 1.000000e+00 : f32
    %100 = vector.broadcast %cst_32 : f32 to vector<8x128xf32>
    %101 = arith.subf %99, %100 : vector<8x128xf32>
    %102 = arith.mulf %95, %59 : vector<8x128xf32>
    %103 = arith.mulf %94, %101 : vector<8x128xf32>
    %104 = arith.addf %102, %103 : vector<8x128xf32>
    %105 = math.tanh %104 : vector<8x128xf32>
    %106 = arith.mulf %96, %105 : vector<8x128xf32>
    %107 = vector.extract_strided_slice %86 {offsets = [0, 0], sizes = [8, 128], strides = [1, 1]} : vector<8x512xf32> to vector<8x128xf32>
    %108 = vector.extract_strided_slice %86 {offsets = [0, 128], sizes = [8, 128], strides = [1, 1]} : vector<8x512xf32> to vector<8x128xf32>
    %109 = vector.extract_strided_slice %86 {offsets = [0, 256], sizes = [8, 128], strides = [1, 1]} : vector<8x512xf32> to vector<8x128xf32>
    %110 = vector.extract_strided_slice %86 {offsets = [0, 384], sizes = [8, 128], strides = [1, 1]} : vector<8x512xf32> to vector<8x128xf32>
    %cst_33 = arith.constant 2.000000e+00 : f32
    %111 = vector.broadcast %cst_33 : f32 to vector<8x128xf32>
    %112 = arith.mulf %111, %110 : vector<8x128xf32>
    %cst_34 = arith.constant 1.000000e+00 : f32
    %113 = vector.broadcast %cst_34 : f32 to vector<8x128xf32>
    %114 = arith.subf %112, %113 : vector<8x128xf32>
    %115 = arith.mulf %108, %72 : vector<8x128xf32>
    %116 = arith.mulf %107, %114 : vector<8x128xf32>
    %117 = arith.addf %115, %116 : vector<8x128xf32>
    %118 = math.tanh %117 : vector<8x128xf32>
    %119 = arith.mulf %109, %118 : vector<8x128xf32>
    %120 = tpu.concatenate %119, %106 in 1 : vector<8x128xf32>, vector<8x128xf32> -> vector<8x256xf32>
    %121 = arith.truncf %120 : vector<8x256xf32> to vector<8x256xbf16>
    %c0_35 = arith.constant 0 : index
    %c0_36 = arith.constant 0 : index
    %122 = vector.load %arg3[%c0_35, %c0_36] : memref<256x1024xbf16, #tpu.memory_space<vmem>>, vector<256x1024xbf16>
    %cst_37 = arith.constant dense<0.000000e+00> : vector<8x1024xf32>
    %123 = tpu.matmul %121, %122, %cst_37 {dimension_numbers = #tpu.dot_dimension_numbers<[1], [0], [0], [1], [0, 0, 1, 1], [], []>} : vector<8x256xbf16>, vector<256x1024xbf16>, vector<8x1024xf32> -> vector<8x1024xf32>
    %124 = vector.extract_strided_slice %123 {offsets = [0, 0], sizes = [8, 512], strides = [1, 1]} : vector<8x1024xf32> to vector<8x512xf32>
    %c24 = arith.constant 24 : index
    %c0_38 = arith.constant 0 : index
    %125 = vector.load %arg13[%c24, %c0_38] : memref<64x512xf32, #tpu.memory_space<vmem>>, vector<8x512xf32>
    %126 = arith.addf %124, %125 : vector<8x512xf32>
    %127 = arith.negf %126 : vector<8x512xf32>
    %128 = math.exp %127 : vector<8x512xf32>
    %cst_39 = arith.constant 1.000000e+00 : f32
    %129 = vector.broadcast %cst_39 : f32 to vector<8x512xf32>
    %130 = arith.addf %129, %128 : vector<8x512xf32>
    %131 = arith.divf %129, %130 : vector<8x512xf32>
    %132 = vector.extract_strided_slice %123 {offsets = [0, 512], sizes = [8, 512], strides = [1, 1]} : vector<8x1024xf32> to vector<8x512xf32>
    %133 = arith.addf %132, %9 : vector<8x512xf32>
    %134 = arith.negf %133 : vector<8x512xf32>
    %135 = math.exp %134 : vector<8x512xf32>
    %cst_40 = arith.constant 1.000000e+00 : f32
    %136 = vector.broadcast %cst_40 : f32 to vector<8x512xf32>
    %137 = arith.addf %136, %135 : vector<8x512xf32>
    %138 = arith.divf %136, %137 : vector<8x512xf32>
    %139 = vector.extract_strided_slice %138 {offsets = [0, 0], sizes = [8, 128], strides = [1, 1]} : vector<8x512xf32> to vector<8x128xf32>
    %140 = vector.extract_strided_slice %138 {offsets = [0, 128], sizes = [8, 128], strides = [1, 1]} : vector<8x512xf32> to vector<8x128xf32>
    %141 = vector.extract_strided_slice %138 {offsets = [0, 256], sizes = [8, 128], strides = [1, 1]} : vector<8x512xf32> to vector<8x128xf32>
    %142 = vector.extract_strided_slice %138 {offsets = [0, 384], sizes = [8, 128], strides = [1, 1]} : vector<8x512xf32> to vector<8x128xf32>
    %cst_41 = arith.constant 2.000000e+00 : f32
    %143 = vector.broadcast %cst_41 : f32 to vector<8x128xf32>
    %144 = arith.mulf %143, %142 : vector<8x128xf32>
    %cst_42 = arith.constant 1.000000e+00 : f32
    %145 = vector.broadcast %cst_42 : f32 to vector<8x128xf32>
    %146 = arith.subf %144, %145 : vector<8x128xf32>
    %147 = arith.mulf %140, %104 : vector<8x128xf32>
    %148 = arith.mulf %139, %146 : vector<8x128xf32>
    %149 = arith.addf %147, %148 : vector<8x128xf32>
    %150 = math.tanh %149 : vector<8x128xf32>
    %151 = arith.mulf %141, %150 : vector<8x128xf32>
    %152 = vector.extract_strided_slice %131 {offsets = [0, 0], sizes = [8, 128], strides = [1, 1]} : vector<8x512xf32> to vector<8x128xf32>
    %153 = vector.extract_strided_slice %131 {offsets = [0, 128], sizes = [8, 128], strides = [1, 1]} : vector<8x512xf32> to vector<8x128xf32>
    %154 = vector.extract_strided_slice %131 {offsets = [0, 256], sizes = [8, 128], strides = [1, 1]} : vector<8x512xf32> to vector<8x128xf32>
    %155 = vector.extract_strided_slice %131 {offsets = [0, 384], sizes = [8, 128], strides = [1, 1]} : vector<8x512xf32> to vector<8x128xf32>
    %cst_43 = arith.constant 2.000000e+00 : f32
    %156 = vector.broadcast %cst_43 : f32 to vector<8x128xf32>
    %157 = arith.mulf %156, %155 : vector<8x128xf32>
    %cst_44 = arith.constant 1.000000e+00 : f32
    %158 = vector.broadcast %cst_44 : f32 to vector<8x128xf32>
    %159 = arith.subf %157, %158 : vector<8x128xf32>
    %160 = arith.mulf %153, %117 : vector<8x128xf32>
    %161 = arith.mulf %152, %159 : vector<8x128xf32>
    %162 = arith.addf %160, %161 : vector<8x128xf32>
    %163 = math.tanh %162 : vector<8x128xf32>
    %164 = arith.mulf %154, %163 : vector<8x128xf32>
    %165 = tpu.concatenate %164, %151 in 1 : vector<8x128xf32>, vector<8x128xf32> -> vector<8x256xf32>
    %166 = arith.truncf %165 : vector<8x256xf32> to vector<8x256xbf16>
    %c0_45 = arith.constant 0 : index
    %c0_46 = arith.constant 0 : index
    %167 = vector.load %arg3[%c0_45, %c0_46] : memref<256x1024xbf16, #tpu.memory_space<vmem>>, vector<256x1024xbf16>
    %cst_47 = arith.constant dense<0.000000e+00> : vector<8x1024xf32>
    %168 = tpu.matmul %166, %167, %cst_47 {dimension_numbers = #tpu.dot_dimension_numbers<[1], [0], [0], [1], [0, 0, 1, 1], [], []>} : vector<8x256xbf16>, vector<256x1024xbf16>, vector<8x1024xf32> -> vector<8x1024xf32>
    %169 = vector.extract_strided_slice %168 {offsets = [0, 0], sizes = [8, 512], strides = [1, 1]} : vector<8x1024xf32> to vector<8x512xf32>
    %c32 = arith.constant 32 : index
    %c0_48 = arith.constant 0 : index
    %170 = vector.load %arg13[%c32, %c0_48] : memref<64x512xf32, #tpu.memory_space<vmem>>, vector<8x512xf32>
    %171 = arith.addf %169, %170 : vector<8x512xf32>
    %172 = arith.negf %171 : vector<8x512xf32>
    %173 = math.exp %172 : vector<8x512xf32>
    %cst_49 = arith.constant 1.000000e+00 : f32
    %174 = vector.broadcast %cst_49 : f32 to vector<8x512xf32>
    %175 = arith.addf %174, %173 : vector<8x512xf32>
    %176 = arith.divf %174, %175 : vector<8x512xf32>
    %177 = vector.extract_strided_slice %168 {offsets = [0, 512], sizes = [8, 512], strides = [1, 1]} : vector<8x1024xf32> to vector<8x512xf32>
    %178 = arith.addf %177, %9 : vector<8x512xf32>
    %179 = arith.negf %178 : vector<8x512xf32>
    %180 = math.exp %179 : vector<8x512xf32>
    %cst_50 = arith.constant 1.000000e+00 : f32
    %181 = vector.broadcast %cst_50 : f32 to vector<8x512xf32>
    %182 = arith.addf %181, %180 : vector<8x512xf32>
    %183 = arith.divf %181, %182 : vector<8x512xf32>
    %184 = vector.extract_strided_slice %183 {offsets = [0, 0], sizes = [8, 128], strides = [1, 1]} : vector<8x512xf32> to vector<8x128xf32>
    %185 = vector.extract_strided_slice %183 {offsets = [0, 128], sizes = [8, 128], strides = [1, 1]} : vector<8x512xf32> to vector<8x128xf32>
    %186 = vector.extract_strided_slice %183 {offsets = [0, 256], sizes = [8, 128], strides = [1, 1]} : vector<8x512xf32> to vector<8x128xf32>
    %187 = vector.extract_strided_slice %183 {offsets = [0, 384], sizes = [8, 128], strides = [1, 1]} : vector<8x512xf32> to vector<8x128xf32>
    %cst_51 = arith.constant 2.000000e+00 : f32
    %188 = vector.broadcast %cst_51 : f32 to vector<8x128xf32>
    %189 = arith.mulf %188, %187 : vector<8x128xf32>
    %cst_52 = arith.constant 1.000000e+00 : f32
    %190 = vector.broadcast %cst_52 : f32 to vector<8x128xf32>
    %191 = arith.subf %189, %190 : vector<8x128xf32>
    %192 = arith.mulf %185, %149 : vector<8x128xf32>
    %193 = arith.mulf %184, %191 : vector<8x128xf32>
    %194 = arith.addf %192, %193 : vector<8x128xf32>
    %195 = math.tanh %194 : vector<8x128xf32>
    %196 = arith.mulf %186, %195 : vector<8x128xf32>
    %197 = vector.extract_strided_slice %176 {offsets = [0, 0], sizes = [8, 128], strides = [1, 1]} : vector<8x512xf32> to vector<8x128xf32>
    %198 = vector.extract_strided_slice %176 {offsets = [0, 128], sizes = [8, 128], strides = [1, 1]} : vector<8x512xf32> to vector<8x128xf32>
    %199 = vector.extract_strided_slice %176 {offsets = [0, 256], sizes = [8, 128], strides = [1, 1]} : vector<8x512xf32> to vector<8x128xf32>
    %200 = vector.extract_strided_slice %176 {offsets = [0, 384], sizes = [8, 128], strides = [1, 1]} : vector<8x512xf32> to vector<8x128xf32>
    %cst_53 = arith.constant 2.000000e+00 : f32
    %201 = vector.broadcast %cst_53 : f32 to vector<8x128xf32>
    %202 = arith.mulf %201, %200 : vector<8x128xf32>
    %cst_54 = arith.constant 1.000000e+00 : f32
    %203 = vector.broadcast %cst_54 : f32 to vector<8x128xf32>
    %204 = arith.subf %202, %203 : vector<8x128xf32>
    %205 = arith.mulf %198, %162 : vector<8x128xf32>
    %206 = arith.mulf %197, %204 : vector<8x128xf32>
    %207 = arith.addf %205, %206 : vector<8x128xf32>
    %208 = math.tanh %207 : vector<8x128xf32>
    %209 = arith.mulf %199, %208 : vector<8x128xf32>
    %210 = tpu.concatenate %209, %196 in 1 : vector<8x128xf32>, vector<8x128xf32> -> vector<8x256xf32>
    %211 = arith.truncf %210 : vector<8x256xf32> to vector<8x256xbf16>
    %c0_55 = arith.constant 0 : index
    %c0_56 = arith.constant 0 : index
    %212 = vector.load %arg3[%c0_55, %c0_56] : memref<256x1024xbf16, #tpu.memory_space<vmem>>, vector<256x1024xbf16>
    %cst_57 = arith.constant dense<0.000000e+00> : vector<8x1024xf32>
    %213 = tpu.matmul %211, %212, %cst_57 {dimension_numbers = #tpu.dot_dimension_numbers<[1], [0], [0], [1], [0, 0, 1, 1], [], []>} : vector<8x256xbf16>, vector<256x1024xbf16>, vector<8x1024xf32> -> vector<8x1024xf32>
    %214 = vector.extract_strided_slice %213 {offsets = [0, 0], sizes = [8, 512], strides = [1, 1]} : vector<8x1024xf32> to vector<8x512xf32>
    %c40 = arith.constant 40 : index
    %c0_58 = arith.constant 0 : index
    %215 = vector.load %arg13[%c40, %c0_58] : memref<64x512xf32, #tpu.memory_space<vmem>>, vector<8x512xf32>
    %216 = arith.addf %214, %215 : vector<8x512xf32>
    %217 = arith.negf %216 : vector<8x512xf32>
    %218 = math.exp %217 : vector<8x512xf32>
    %cst_59 = arith.constant 1.000000e+00 : f32
    %219 = vector.broadcast %cst_59 : f32 to vector<8x512xf32>
    %220 = arith.addf %219, %218 : vector<8x512xf32>
    %221 = arith.divf %219, %220 : vector<8x512xf32>
    %222 = vector.extract_strided_slice %213 {offsets = [0, 512], sizes = [8, 512], strides = [1, 1]} : vector<8x1024xf32> to vector<8x512xf32>
    %223 = arith.addf %222, %9 : vector<8x512xf32>
    %224 = arith.negf %223 : vector<8x512xf32>
    %225 = math.exp %224 : vector<8x512xf32>
    %cst_60 = arith.constant 1.000000e+00 : f32
    %226 = vector.broadcast %cst_60 : f32 to vector<8x512xf32>
    %227 = arith.addf %226, %225 : vector<8x512xf32>
    %228 = arith.divf %226, %227 : vector<8x512xf32>
    %229 = vector.extract_strided_slice %228 {offsets = [0, 0], sizes = [8, 128], strides = [1, 1]} : vector<8x512xf32> to vector<8x128xf32>
    %230 = vector.extract_strided_slice %228 {offsets = [0, 128], sizes = [8, 128], strides = [1, 1]} : vector<8x512xf32> to vector<8x128xf32>
    %231 = vector.extract_strided_slice %228 {offsets = [0, 256], sizes = [8, 128], strides = [1, 1]} : vector<8x512xf32> to vector<8x128xf32>
    %232 = vector.extract_strided_slice %228 {offsets = [0, 384], sizes = [8, 128], strides = [1, 1]} : vector<8x512xf32> to vector<8x128xf32>
    %cst_61 = arith.constant 2.000000e+00 : f32
    %233 = vector.broadcast %cst_61 : f32 to vector<8x128xf32>
    %234 = arith.mulf %233, %232 : vector<8x128xf32>
    %cst_62 = arith.constant 1.000000e+00 : f32
    %235 = vector.broadcast %cst_62 : f32 to vector<8x128xf32>
    %236 = arith.subf %234, %235 : vector<8x128xf32>
    %237 = arith.mulf %230, %194 : vector<8x128xf32>
    %238 = arith.mulf %229, %236 : vector<8x128xf32>
    %239 = arith.addf %237, %238 : vector<8x128xf32>
    %240 = math.tanh %239 : vector<8x128xf32>
    %241 = arith.mulf %231, %240 : vector<8x128xf32>
    %242 = vector.extract_strided_slice %221 {offsets = [0, 0], sizes = [8, 128], strides = [1, 1]} : vector<8x512xf32> to vector<8x128xf32>
    %243 = vector.extract_strided_slice %221 {offsets = [0, 128], sizes = [8, 128], strides = [1, 1]} : vector<8x512xf32> to vector<8x128xf32>
    %244 = vector.extract_strided_slice %221 {offsets = [0, 256], sizes = [8, 128], strides = [1, 1]} : vector<8x512xf32> to vector<8x128xf32>
    %245 = vector.extract_strided_slice %221 {offsets = [0, 384], sizes = [8, 128], strides = [1, 1]} : vector<8x512xf32> to vector<8x128xf32>
    %cst_63 = arith.constant 2.000000e+00 : f32
    %246 = vector.broadcast %cst_63 : f32 to vector<8x128xf32>
    %247 = arith.mulf %246, %245 : vector<8x128xf32>
    %cst_64 = arith.constant 1.000000e+00 : f32
    %248 = vector.broadcast %cst_64 : f32 to vector<8x128xf32>
    %249 = arith.subf %247, %248 : vector<8x128xf32>
    %250 = arith.mulf %243, %207 : vector<8x128xf32>
    %251 = arith.mulf %242, %249 : vector<8x128xf32>
    %252 = arith.addf %250, %251 : vector<8x128xf32>
    %253 = math.tanh %252 : vector<8x128xf32>
    %254 = arith.mulf %244, %253 : vector<8x128xf32>
    %255 = tpu.concatenate %254, %241 in 1 : vector<8x128xf32>, vector<8x128xf32> -> vector<8x256xf32>
    %256 = arith.truncf %255 : vector<8x256xf32> to vector<8x256xbf16>
    %c0_65 = arith.constant 0 : index
    %c0_66 = arith.constant 0 : index
    %257 = vector.load %arg3[%c0_65, %c0_66] : memref<256x1024xbf16, #tpu.memory_space<vmem>>, vector<256x1024xbf16>
    %cst_67 = arith.constant dense<0.000000e+00> : vector<8x1024xf32>
    %258 = tpu.matmul %256, %257, %cst_67 {dimension_numbers = #tpu.dot_dimension_numbers<[1], [0], [0], [1], [0, 0, 1, 1], [], []>} : vector<8x256xbf16>, vector<256x1024xbf16>, vector<8x1024xf32> -> vector<8x1024xf32>
    %259 = vector.extract_strided_slice %258 {offsets = [0, 0], sizes = [8, 512], strides = [1, 1]} : vector<8x1024xf32> to vector<8x512xf32>
    %c48 = arith.constant 48 : index
    %c0_68 = arith.constant 0 : index
    %260 = vector.load %arg13[%c48, %c0_68] : memref<64x512xf32, #tpu.memory_space<vmem>>, vector<8x512xf32>
    %261 = arith.addf %259, %260 : vector<8x512xf32>
    %262 = arith.negf %261 : vector<8x512xf32>
    %263 = math.exp %262 : vector<8x512xf32>
    %cst_69 = arith.constant 1.000000e+00 : f32
    %264 = vector.broadcast %cst_69 : f32 to vector<8x512xf32>
    %265 = arith.addf %264, %263 : vector<8x512xf32>
    %266 = arith.divf %264, %265 : vector<8x512xf32>
    %267 = vector.extract_strided_slice %258 {offsets = [0, 512], sizes = [8, 512], strides = [1, 1]} : vector<8x1024xf32> to vector<8x512xf32>
    %268 = arith.addf %267, %9 : vector<8x512xf32>
    %269 = arith.negf %268 : vector<8x512xf32>
    %270 = math.exp %269 : vector<8x512xf32>
    %cst_70 = arith.constant 1.000000e+00 : f32
    %271 = vector.broadcast %cst_70 : f32 to vector<8x512xf32>
    %272 = arith.addf %271, %270 : vector<8x512xf32>
    %273 = arith.divf %271, %272 : vector<8x512xf32>
    %274 = vector.extract_strided_slice %273 {offsets = [0, 0], sizes = [8, 128], strides = [1, 1]} : vector<8x512xf32> to vector<8x128xf32>
    %275 = vector.extract_strided_slice %273 {offsets = [0, 128], sizes = [8, 128], strides = [1, 1]} : vector<8x512xf32> to vector<8x128xf32>
    %276 = vector.extract_strided_slice %273 {offsets = [0, 256], sizes = [8, 128], strides = [1, 1]} : vector<8x512xf32> to vector<8x128xf32>
    %277 = vector.extract_strided_slice %273 {offsets = [0, 384], sizes = [8, 128], strides = [1, 1]} : vector<8x512xf32> to vector<8x128xf32>
    %cst_71 = arith.constant 2.000000e+00 : f32
    %278 = vector.broadcast %cst_71 : f32 to vector<8x128xf32>
    %279 = arith.mulf %278, %277 : vector<8x128xf32>
    %cst_72 = arith.constant 1.000000e+00 : f32
    %280 = vector.broadcast %cst_72 : f32 to vector<8x128xf32>
    %281 = arith.subf %279, %280 : vector<8x128xf32>
    %282 = arith.mulf %275, %239 : vector<8x128xf32>
    %283 = arith.mulf %274, %281 : vector<8x128xf32>
    %284 = arith.addf %282, %283 : vector<8x128xf32>
    %285 = math.tanh %284 : vector<8x128xf32>
    %286 = arith.mulf %276, %285 : vector<8x128xf32>
    %287 = vector.extract_strided_slice %266 {offsets = [0, 0], sizes = [8, 128], strides = [1, 1]} : vector<8x512xf32> to vector<8x128xf32>
    %288 = vector.extract_strided_slice %266 {offsets = [0, 128], sizes = [8, 128], strides = [1, 1]} : vector<8x512xf32> to vector<8x128xf32>
    %289 = vector.extract_strided_slice %266 {offsets = [0, 256], sizes = [8, 128], strides = [1, 1]} : vector<8x512xf32> to vector<8x128xf32>
    %290 = vector.extract_strided_slice %266 {offsets = [0, 384], sizes = [8, 128], strides = [1, 1]} : vector<8x512xf32> to vector<8x128xf32>
    %cst_73 = arith.constant 2.000000e+00 : f32
    %291 = vector.broadcast %cst_73 : f32 to vector<8x128xf32>
    %292 = arith.mulf %291, %290 : vector<8x128xf32>
    %cst_74 = arith.constant 1.000000e+00 : f32
    %293 = vector.broadcast %cst_74 : f32 to vector<8x128xf32>
    %294 = arith.subf %292, %293 : vector<8x128xf32>
    %295 = arith.mulf %288, %252 : vector<8x128xf32>
    %296 = arith.mulf %287, %294 : vector<8x128xf32>
    %297 = arith.addf %295, %296 : vector<8x128xf32>
    %298 = math.tanh %297 : vector<8x128xf32>
    %299 = arith.mulf %289, %298 : vector<8x128xf32>
    %300 = tpu.concatenate %299, %286 in 1 : vector<8x128xf32>, vector<8x128xf32> -> vector<8x256xf32>
    %301 = arith.truncf %300 : vector<8x256xf32> to vector<8x256xbf16>
    %c0_75 = arith.constant 0 : index
    %c0_76 = arith.constant 0 : index
    %302 = vector.load %arg3[%c0_75, %c0_76] : memref<256x1024xbf16, #tpu.memory_space<vmem>>, vector<256x1024xbf16>
    %cst_77 = arith.constant dense<0.000000e+00> : vector<8x1024xf32>
    %303 = tpu.matmul %301, %302, %cst_77 {dimension_numbers = #tpu.dot_dimension_numbers<[1], [0], [0], [1], [0, 0, 1, 1], [], []>} : vector<8x256xbf16>, vector<256x1024xbf16>, vector<8x1024xf32> -> vector<8x1024xf32>
    %304 = vector.extract_strided_slice %303 {offsets = [0, 0], sizes = [8, 512], strides = [1, 1]} : vector<8x1024xf32> to vector<8x512xf32>
    %c56 = arith.constant 56 : index
    %c0_78 = arith.constant 0 : index
    %305 = vector.load %arg13[%c56, %c0_78] : memref<64x512xf32, #tpu.memory_space<vmem>>, vector<8x512xf32>
    %306 = arith.addf %304, %305 : vector<8x512xf32>
    %307 = arith.negf %306 : vector<8x512xf32>
    %308 = math.exp %307 : vector<8x512xf32>
    %cst_79 = arith.constant 1.000000e+00 : f32
    %309 = vector.broadcast %cst_79 : f32 to vector<8x512xf32>
    %310 = arith.addf %309, %308 : vector<8x512xf32>
    %311 = arith.divf %309, %310 : vector<8x512xf32>
    %312 = vector.extract_strided_slice %303 {offsets = [0, 512], sizes = [8, 512], strides = [1, 1]} : vector<8x1024xf32> to vector<8x512xf32>
    %313 = arith.addf %312, %9 : vector<8x512xf32>
    %314 = arith.negf %313 : vector<8x512xf32>
    %315 = math.exp %314 : vector<8x512xf32>
    %cst_80 = arith.constant 1.000000e+00 : f32
    %316 = vector.broadcast %cst_80 : f32 to vector<8x512xf32>
    %317 = arith.addf %316, %315 : vector<8x512xf32>
    %318 = arith.divf %316, %317 : vector<8x512xf32>
    %319 = vector.extract_strided_slice %318 {offsets = [0, 0], sizes = [8, 128], strides = [1, 1]} : vector<8x512xf32> to vector<8x128xf32>
    %320 = vector.extract_strided_slice %318 {offsets = [0, 128], sizes = [8, 128], strides = [1, 1]} : vector<8x512xf32> to vector<8x128xf32>
    %321 = vector.extract_strided_slice %318 {offsets = [0, 256], sizes = [8, 128], strides = [1, 1]} : vector<8x512xf32> to vector<8x128xf32>
    %322 = vector.extract_strided_slice %318 {offsets = [0, 384], sizes = [8, 128], strides = [1, 1]} : vector<8x512xf32> to vector<8x128xf32>
    %cst_81 = arith.constant 2.000000e+00 : f32
    %323 = vector.broadcast %cst_81 : f32 to vector<8x128xf32>
    %324 = arith.mulf %323, %322 : vector<8x128xf32>
    %cst_82 = arith.constant 1.000000e+00 : f32
    %325 = vector.broadcast %cst_82 : f32 to vector<8x128xf32>
    %326 = arith.subf %324, %325 : vector<8x128xf32>
    %327 = arith.mulf %320, %284 : vector<8x128xf32>
    %328 = arith.mulf %319, %326 : vector<8x128xf32>
    %329 = arith.addf %327, %328 : vector<8x128xf32>
    %330 = math.tanh %329 : vector<8x128xf32>
    %331 = arith.mulf %321, %330 : vector<8x128xf32>
    %332 = vector.extract_strided_slice %311 {offsets = [0, 0], sizes = [8, 128], strides = [1, 1]} : vector<8x512xf32> to vector<8x128xf32>
    %333 = vector.extract_strided_slice %311 {offsets = [0, 128], sizes = [8, 128], strides = [1, 1]} : vector<8x512xf32> to vector<8x128xf32>
    %334 = vector.extract_strided_slice %311 {offsets = [0, 256], sizes = [8, 128], strides = [1, 1]} : vector<8x512xf32> to vector<8x128xf32>
    %335 = vector.extract_strided_slice %311 {offsets = [0, 384], sizes = [8, 128], strides = [1, 1]} : vector<8x512xf32> to vector<8x128xf32>
    %cst_83 = arith.constant 2.000000e+00 : f32
    %336 = vector.broadcast %cst_83 : f32 to vector<8x128xf32>
    %337 = arith.mulf %336, %335 : vector<8x128xf32>
    %cst_84 = arith.constant 1.000000e+00 : f32
    %338 = vector.broadcast %cst_84 : f32 to vector<8x128xf32>
    %339 = arith.subf %337, %338 : vector<8x128xf32>
    %340 = arith.mulf %333, %297 : vector<8x128xf32>
    %341 = arith.mulf %332, %339 : vector<8x128xf32>
    %342 = arith.addf %340, %341 : vector<8x128xf32>
    %343 = math.tanh %342 : vector<8x128xf32>
    %344 = arith.mulf %334, %343 : vector<8x128xf32>
    %345 = tpu.concatenate %344, %331 in 1 : vector<8x128xf32>, vector<8x128xf32> -> vector<8x256xf32>
    %346 = arith.truncf %345 : vector<8x256xf32> to vector<8x256xbf16>
    %c0_85 = arith.constant 0 : index
    %c0_86 = arith.constant 0 : index
    %347 = vector.load %arg3[%c0_85, %c0_86] : memref<256x1024xbf16, #tpu.memory_space<vmem>>, vector<256x1024xbf16>
    %cst_87 = arith.constant dense<0.000000e+00> : vector<8x1024xf32>
    %348 = tpu.matmul %346, %347, %cst_87 {dimension_numbers = #tpu.dot_dimension_numbers<[1], [0], [0], [1], [0, 0, 1, 1], [], []>} : vector<8x256xbf16>, vector<256x1024xbf16>, vector<8x1024xf32> -> vector<8x1024xf32>
    %349 = vector.extract_strided_slice %348 {offsets = [0, 512], sizes = [8, 512], strides = [1, 1]} : vector<8x1024xf32> to vector<8x512xf32>
    %350 = arith.addf %349, %9 : vector<8x512xf32>
    %351 = arith.negf %350 : vector<8x512xf32>
    %352 = math.exp %351 : vector<8x512xf32>
    %cst_88 = arith.constant 1.000000e+00 : f32
    %353 = vector.broadcast %cst_88 : f32 to vector<8x512xf32>
    %354 = arith.addf %353, %352 : vector<8x512xf32>
    %355 = arith.divf %353, %354 : vector<8x512xf32>
    %356 = vector.extract_strided_slice %355 {offsets = [0, 0], sizes = [8, 128], strides = [1, 1]} : vector<8x512xf32> to vector<8x128xf32>
    %357 = vector.extract_strided_slice %355 {offsets = [0, 128], sizes = [8, 128], strides = [1, 1]} : vector<8x512xf32> to vector<8x128xf32>
    %358 = vector.extract_strided_slice %355 {offsets = [0, 256], sizes = [8, 128], strides = [1, 1]} : vector<8x512xf32> to vector<8x128xf32>
    %359 = vector.extract_strided_slice %355 {offsets = [0, 384], sizes = [8, 128], strides = [1, 1]} : vector<8x512xf32> to vector<8x128xf32>
    %cst_89 = arith.constant 2.000000e+00 : f32
    %360 = vector.broadcast %cst_89 : f32 to vector<8x128xf32>
    %361 = arith.mulf %360, %359 : vector<8x128xf32>
    %cst_90 = arith.constant 1.000000e+00 : f32
    %362 = vector.broadcast %cst_90 : f32 to vector<8x128xf32>
    %363 = arith.subf %361, %362 : vector<8x128xf32>
    %364 = arith.mulf %357, %329 : vector<8x128xf32>
    %365 = arith.mulf %356, %363 : vector<8x128xf32>
    %366 = arith.addf %364, %365 : vector<8x128xf32>
    %367 = math.tanh %366 : vector<8x128xf32>
    %368 = arith.mulf %358, %367 : vector<8x128xf32>
    %369 = arith.truncf %368 : vector<8x128xf32> to vector<8x128xbf16>
    %c0_91 = arith.constant 0 : index
    %c0_92 = arith.constant 0 : index
    %370 = vector.load %arg5[%c0_91, %c0_92] : memref<128x128xbf16, #tpu.memory_space<vmem>>, vector<128x128xbf16>
    %cst_93 = arith.constant dense<0.000000e+00> : vector<8x128xf32>
    %371 = tpu.matmul %369, %370, %cst_93 {dimension_numbers = #tpu.dot_dimension_numbers<[1], [0], [0], [1], [0, 0, 1, 1], [], []>} : vector<8x128xbf16>, vector<128x128xbf16>, vector<8x128xf32> -> vector<8x128xf32>
    %c0_94 = arith.constant 0 : index
    %c0_95 = arith.constant 0 : index
    %372 = vector.load %arg6[%c0_94, %c0_95] : memref<1x128xf32, #tpu.memory_space<vmem>>, vector<1x128xf32>
    %373 = vector.broadcast %372 : vector<1x128xf32> to vector<8x128xf32>
    %374 = arith.addf %371, %373 : vector<8x128xf32>
    %cst_96 = arith.constant 0.000000e+00 : f32
    %375 = vector.broadcast %cst_96 : f32 to vector<8x128xf32>
    %376 = arith.maximumf %374, %375 : vector<8x128xf32>
    %377 = arith.truncf %376 : vector<8x128xf32> to vector<8x128xbf16>
    %c0_97 = arith.constant 0 : index
    %c0_98 = arith.constant 0 : index
    %378 = vector.load %arg7[%c0_97, %c0_98] : memref<128x128xbf16, #tpu.memory_space<vmem>>, vector<128x128xbf16>
    %cst_99 = arith.constant dense<0.000000e+00> : vector<8x128xf32>
    %379 = tpu.matmul %377, %378, %cst_99 {dimension_numbers = #tpu.dot_dimension_numbers<[1], [0], [0], [1], [0, 0, 1, 1], [], []>} : vector<8x128xbf16>, vector<128x128xbf16>, vector<8x128xf32> -> vector<8x128xf32>
    %c0_100 = arith.constant 0 : index
    %c0_101 = arith.constant 0 : index
    %380 = vector.load %arg8[%c0_100, %c0_101] : memref<1x128xf32, #tpu.memory_space<vmem>>, vector<1x128xf32>
    %381 = vector.broadcast %380 : vector<1x128xf32> to vector<8x128xf32>
    %382 = arith.addf %379, %381 : vector<8x128xf32>
    %c0_102 = arith.constant 0 : index
    %c0_103 = arith.constant 0 : index
    %383 = vector.load %arg9[%c0_102, %c0_103] : memref<8x128xf32, #tpu.memory_space<vmem>>, vector<8x128xf32>
    %cst_104 = arith.constant 1.000000e+00 : f32
    %384 = vector.broadcast %cst_104 : f32 to vector<8x128xf32>
    %385 = arith.subf %383, %384 : vector<8x128xf32>
    %cst_105 = arith.constant 1.000000e+09 : f32
    %386 = vector.broadcast %cst_105 : f32 to vector<8x128xf32>
    %387 = arith.mulf %385, %386 : vector<8x128xf32>
    %388 = arith.addf %382, %387 : vector<8x128xf32>
    %c0_106 = arith.constant 0 : index
    %c0_107 = arith.constant 0 : index
    %389 = vector.load %arg10[%c0_106, %c0_107] : memref<8x128xf32, #tpu.memory_space<vmem>>, vector<8x128xf32>
    tpu.vector_store %arg10[%c0_106, %c0_107], %388 {strides = array<i32>} : memref<8x128xf32, #tpu.memory_space<vmem>>, vector<8x128xf32>,
    %c0_108 = arith.constant 0 : index
    %c0_109 = arith.constant 0 : index
    %c0_110 = arith.constant 0 : index
    %390 = vector.load %arg11[%c0_108, %c0_109, %c0_110] : memref<2x8x128xf32, #tpu.memory_space<vmem>>, vector<1x8x128xf32>
    %391 = vector.shape_cast %390 : vector<1x8x128xf32> to vector<8x128xf32>
    %392 = vector.shape_cast %344 : vector<8x128xf32> to vector<1x8x128xf32>
    tpu.vector_store %arg11[%c0_108, %c0_109, %c0_110], %392 {strides = array<i32>} : memref<2x8x128xf32, #tpu.memory_space<vmem>>, vector<1x8x128xf32>,
    %c1 = arith.constant 1 : index
    %c0_111 = arith.constant 0 : index
    %c0_112 = arith.constant 0 : index
    %393 = vector.load %arg11[%c1, %c0_111, %c0_112] : memref<2x8x128xf32, #tpu.memory_space<vmem>>, vector<1x8x128xf32>
    %394 = vector.shape_cast %393 : vector<1x8x128xf32> to vector<8x128xf32>
    %395 = vector.shape_cast %368 : vector<8x128xf32> to vector<1x8x128xf32>
    tpu.vector_store %arg11[%c1, %c0_111, %c0_112], %395 {strides = array<i32>} : memref<2x8x128xf32, #tpu.memory_space<vmem>>, vector<1x8x128xf32>,
    %c0_113 = arith.constant 0 : index
    %c0_114 = arith.constant 0 : index
    %c0_115 = arith.constant 0 : index
    %396 = vector.load %arg12[%c0_113, %c0_114, %c0_115] : memref<2x8x128xf32, #tpu.memory_space<vmem>>, vector<1x8x128xf32>
    %397 = vector.shape_cast %396 : vector<1x8x128xf32> to vector<8x128xf32>
    %398 = vector.shape_cast %342 : vector<8x128xf32> to vector<1x8x128xf32>
    tpu.vector_store %arg12[%c0_113, %c0_114, %c0_115], %398 {strides = array<i32>} : memref<2x8x128xf32, #tpu.memory_space<vmem>>, vector<1x8x128xf32>,
    %c1_116 = arith.constant 1 : index
    %c0_117 = arith.constant 0 : index
    %c0_118 = arith.constant 0 : index
    %399 = vector.load %arg12[%c1_116, %c0_117, %c0_118] : memref<2x8x128xf32, #tpu.memory_space<vmem>>, vector<1x8x128xf32>
    %400 = vector.shape_cast %399 : vector<1x8x128xf32> to vector<8x128xf32>
    %401 = vector.shape_cast %366 : vector<8x128xf32> to vector<1x8x128xf32>
    tpu.vector_store %arg12[%c1_116, %c0_117, %c0_118], %401 {strides = array<i32>} : memref<2x8x128xf32, #tpu.memory_space<vmem>>, vector<1x8x128xf32>,
    return
  }
}

</mosaic_0001>

<llo_original>
// kernel: dqn_lstm_forward.1
$region0: #{dqn_lstm_forward.1}
  #allocation0 [shape = 'u32[]', space=smem, size = 0x4, offset = 0x4, fixed_abs, tag = 'smem constant byte address 0x4 - core index']
  #allocation1 [shape = 'u32[144,128]{1,0:T(1,128)}', space=vmem, size = 0x12000, scoped, tag = 'internal scratch']
  #allocation2 [shape = 'f32[64,512]{1,0:T(8,128)}', space=vmem, size = 0x20000, scoped, tag = 'scratch operand']
  %s0 = inlined_call_operand.vmem [shape: bf16[64,16], index: 0, kind: input, shape index: {}]
  %s1 = inlined_call_operand.hbm [shape: bf16[16,512], index: 1, kind: input, shape index: {}]
  %s2 = inlined_call_operand.vmem [shape: f32[1,512], index: 2, kind: input, shape index: {}]
  %s3 = inlined_call_operand.hbm [shape: bf16[256,1024], index: 3, kind: input, shape index: {}]
  %s4 = inlined_call_operand.vmem [shape: f32[1,512], index: 4, kind: input, shape index: {}]
  %s5 = inlined_call_operand.vmem [shape: bf16[128,128], index: 5, kind: input, shape index: {}]
  %s6 = inlined_call_operand.vmem [shape: f32[1,128], index: 6, kind: input, shape index: {}]
  %s7 = inlined_call_operand.vmem [shape: bf16[128,128], index: 7, kind: input, shape index: {}]
  %s8 = inlined_call_operand.vmem [shape: f32[1,128], index: 8, kind: input, shape index: {}]
  %s9 = inlined_call_operand.vmem [shape: f32[8,128], index: 9, kind: input, shape index: {}]
  %s10 = inlined_call_operand.vmem [shape: f32[8,128], index: 10, kind: output, shape index: {0}]
  %s11 = inlined_call_operand.vmem [shape: f32[2,8,128], index: 11, kind: output, shape index: {1}]
  %s12 = inlined_call_operand.vmem [shape: f32[2,8,128], index: 12, kind: output, shape index: {2}]
  %13 = xla_tuple %s10, %s11, %s12
  %s14 = sld [smem:[#allocation0]]
  $region74: #{dqn_lstm_forward.1} parent=0
    _
  %s16 = ssub.s32 1, %s14
  %s17 = scalar_select 0, %s16, %s14
  $region1: #{dqn_lstm_forward.1} parent=0
    #allocation3 [shape = 'u8[16384]{0}', space=vmem, size = 0x4000, scoped, tag = 'input window, operand 1, single buffered']
    #allocation4 [shape = 's32[1]{0}', space=sflag, size = 0x4, scoped, tag = 'scoped memory for dqn_lstm_forward.1']
    #allocation5 [shape = 'u8[524288]{0}', space=vmem, size = 0x80000, scoped, tag = 'input window, operand 3, single buffered']
    #allocation6 [shape = 's32[1]{0}', space=sflag, size = 0x4, scoped, tag = 'scoped memory for dqn_lstm_forward.1']
    %18 = vsyncpa [#allocation4], 0
    %19 = vsyncpa [#allocation6], 0
    // Predicated region
    $region2: #{dqn_lstm_forward.1} parent=1 // pred_check
      _
    $region3: #{dqn_lstm_forward.1} parent=1 // pred_check_branch
      %21 = sbr.rel (0) target = $region5
    $region4: #{dqn_lstm_forward.1} parent=1 // pred_region
      _
    $region5: #{dqn_lstm_forward.1} parent=1 // pred_fallthru
      _
    // Predicated region
    $region6: #{dqn_lstm_forward.1} parent=1 // pred_check
      _
    $region7: #{dqn_lstm_forward.1} parent=1 // pred_check_branch
      %23 = sbr.rel (0) target = $region9
    $region8: #{dqn_lstm_forward.1} parent=1 // pred_region
      %s25 = ssub.s32 512, 512
      %26 = vsyncadd [#allocation4], %s25
      %s27 = sshll.u32 [#allocation3], 4
      %s28 = int_to_ptr.vmem [resolvable:$true] %s27
      %33 = dma.hbm_to_vmem [thread:$0]  %s1, 512, %s28, [#allocation4], 256, 256, 16
    $region9: #{dqn_lstm_forward.1} parent=1 // pred_fallthru
      _
    // Predicated region
    $region10: #{dqn_lstm_forward.1} parent=1 // pred_check
      _
    $region11: #{dqn_lstm_forward.1} parent=1 // pred_check_branch
      %35 = sbr.rel (0) target = $region13
    $region12: #{dqn_lstm_forward.1} parent=1 // pred_region
      _
    $region13: #{dqn_lstm_forward.1} parent=1 // pred_fallthru
      _
    // Predicated region
    $region14: #{dqn_lstm_forward.1} parent=1 // pred_check
      _
    $region15: #{dqn_lstm_forward.1} parent=1 // pred_check_branch
      %37 = sbr.rel (0) target = $region17
    $region16: #{dqn_lstm_forward.1} parent=1 // pred_region
      %s39 = ssub.s32 16384, 16384
      %40 = vsyncadd [#allocation6], %s39
      %s41 = sshll.u32 [#allocation5], 4
      %s42 = int_to_ptr.vmem [resolvable:$true] %s41
      %47 = dma.hbm_to_vmem [thread:$0]  %s3, 16384, %s42, [#allocation6], 512, 512, 32
    $region17: #{dqn_lstm_forward.1} parent=1 // pred_fallthru
      _
    // Predicated region
    $region18: #{dqn_lstm_forward.1} parent=1 // pred_check
      _
    $region19: #{dqn_lstm_forward.1} parent=1 // pred_check_branch
      %49 = sbr.rel (0) target = $region21
    $region20: #{dqn_lstm_forward.1} parent=1 // pred_region
      _
    $region21: #{dqn_lstm_forward.1} parent=1 // pred_fallthru
      _
    // Predicated region
    $region22: #{dqn_lstm_forward.1} parent=1 // pred_check
      _
    $region23: #{dqn_lstm_forward.1} parent=1 // pred_check_branch
      %51 = sbr.rel (0) target = $region25
    $region24: #{dqn_lstm_forward.1} parent=1 // pred_region
      _
    $region25: #{dqn_lstm_forward.1} parent=1 // pred_fallthru
      _
    // Predicated region
    $region26: #{dqn_lstm_forward.1} parent=1 // pred_check
      _
    $region27: #{dqn_lstm_forward.1} parent=1 // pred_check_branch
      %53 = sbr.rel (0) target = $region29
    $region28: #{dqn_lstm_forward.1} parent=1 // pred_region
      _
    $region29: #{dqn_lstm_forward.1} parent=1 // pred_fallthru
      _
    // Predicated region
    $region30: #{dqn_lstm_forward.1} parent=1 // pred_check
      _
    $region31: #{dqn_lstm_forward.1} parent=1 // pred_check_branch
      %55 = sbr.rel (0) target = $region33
    $region32: #{dqn_lstm_forward.1} parent=1 // pred_region
      _
    $region33: #{dqn_lstm_forward.1} parent=1 // pred_fallthru
      _
    // Predicated region
    $region34: #{dqn_lstm_forward.1} parent=1 // pred_check
      _
    $region35: #{dqn_lstm_forward.1} parent=1 // pred_check_branch
      %57 = sbr.rel (0) target = $region37
    $region36: #{dqn_lstm_forward.1} parent=1 // pred_region
      _
    $region37: #{dqn_lstm_forward.1} parent=1 // pred_fallthru
      _
    // Predicated region
    $region38: #{dqn_lstm_forward.1} parent=1 // pred_check
      _
    $region39: #{dqn_lstm_forward.1} parent=1 // pred_check_branch
      %59 = sbr.rel (0) target = $region41
    $region40: #{dqn_lstm_forward.1} parent=1 // pred_region
      _
    $region41: #{dqn_lstm_forward.1} parent=1 // pred_fallthru
      _
    // Predicated region
    $region42: #{dqn_lstm_forward.1} parent=1 // pred_check
      _
    $region43: #{dqn_lstm_forward.1} parent=1 // pred_check_branch
      %61 = sbr.rel (0) target = $region45
    $region44: #{dqn_lstm_forward.1} parent=1 // pred_region
      %62 = dma.done [#allocation4], 512
    $region45: #{dqn_lstm_forward.1} parent=1 // pred_fallthru
      _
    // Predicated region
    $region46: #{dqn_lstm_forward.1} parent=1 // pred_check
      _
    $region47: #{dqn_lstm_forward.1} parent=1 // pred_check_branch
      %64 = sbr.rel (0) target = $region49
    $region48: #{dqn_lstm_forward.1} parent=1 // pred_region
      %65 = dma.done [#allocation6], 16384
    $region49: #{dqn_lstm_forward.1} parent=1 // pred_fallthru
      _
    %v67 = vld [vmem:[%s0] sm:$0xf]
    %v68 = vld [vmem:[%s0 + $0x4] sm:$0xf]
    %v69 = vld [vmem:[%s0 + $0x8] sm:$0xf]
    %v70 = vld [vmem:[%s0 + $0xc] sm:$0xf]
    %v71 = vld [vmem:[%s0 + $0x10] sm:$0xf]
    %v72 = vld [vmem:[%s0 + $0x14] sm:$0xf]
    %v73 = vld [vmem:[%s0 + $0x18] sm:$0xf]
    %v74 = vld [vmem:[%s0 + $0x1c] sm:$0xf]
    %v75 = vld [vmem:[#allocation3] sm:$0xff]
    %v76 = vld [vmem:[#allocation3 + $0x8] sm:$0xff]
    %v77 = vld [vmem:[#allocation3 + $0x10] sm:$0xff]
    %v78 = vld [vmem:[#allocation3 + $0x18] sm:$0xff]
    %v79 = vld [vmem:[%s2] sm:$0xf]
    %v81 = vlaneseq
    %v82 = vshrl.u32 %v81, 7
    %v83 = vsub.s32 0, %v82
    %v84 = vrot.slane %v79, %v83
    %v85 = vlaneseq
    %v86 = vshrl.u32 %v85, 7
    %v87 = vsub.s32 1, %v86
    %v88 = vrot.slane %v79, %v87
    %v89 = vlaneseq
    %v90 = vshrl.u32 %v89, 7
    %v91 = vsub.s32 2, %v90
    %v92 = vrot.slane %v79, %v91
    %v93 = vlaneseq
    %v94 = vshrl.u32 %v93, 7
    %v95 = vsub.s32 3, %v94
    %v96 = vrot.slane %v79, %v95
    %v109 = vunpack.c.l.b16 %v67
    %v110 = vunpack.c.l.b16 %v68
    %v111 = vunpack.c.l.b16 %v69
    %v112 = vunpack.c.l.b16 %v70
    %v113 = vunpack.c.l.b16 %v71
    %v114 = vunpack.c.l.b16 %v72
    %v115 = vunpack.c.l.b16 %v73
    %v116 = vunpack.c.l.b16 %v74
    %v117 = vpack.c.b16 %v110, %v109
    %v118 = vpack.c.b16 %v112, %v111
    %v119 = vpack.c.b16 %v114, %v113
    %v120 = vpack.c.b16 %v116, %v115
    %v125 = vunpack.c.l.b16 %v75
    %v126 = vunpack.c.h.b16 %v75
    %v127 = vunpack.c.l.b16 %v76
    %v128 = vunpack.c.h.b16 %v76
    %v129 = vunpack.c.l.b16 %v77
    %v130 = vunpack.c.h.b16 %v77
    %v131 = vunpack.c.l.b16 %v78
    %v132 = vunpack.c.h.b16 %v78
    %v133 = vpack.c.b16 %v129, %v125
    %v134 = vpack.c.b16 %v130, %v126
    %v135 = vpack.c.b16 %v131, %v127
    %v136 = vpack.c.b16 %v132, %v128
    %vm141 = vcmask 130048
    %v143 = vsel %vm141, %v117, 0
    %v146 = vsel %vm141, %v118, 0
    %v149 = vsel %vm141, %v119, 0
    %v152 = vsel %vm141, %v120, 0
    %154 = vmatprep.subr.bf16.mxu0 %v134
    %155 = vmatpush1.bf16.msra.mxu0 %v133
    %156 = vmatprep.subr.bf16.mxu0 0
    %157 = vmatpush1.bf16.msra.mxu0 0
    %158 = vmatprep.subr.bf16.mxu0 0
    %159 = vmatpush1.bf16.msra.mxu0 0
    %160 = vmatprep.subr.bf16.mxu0 0
    %161 = vmatpush1.bf16.msra.mxu0 0
    %162 = vmatprep.subr.bf16.mxu0 0
    %163 = vmatpush1.bf16.msra.mxu0 0
    %164 = vmatprep.subr.bf16.mxu0 0
    %165 = vmatpush1.bf16.msra.mxu0 0
    %166 = vmatprep.subr.bf16.mxu0 0
    %167 = vmatpush1.bf16.msra.mxu0 0
    %168 = vmatprep.subr.bf16.mxu0 0
    %169 = vmatpush1.bf16.msra.mxu0 0
    %170 = vmatprep.subr.bf16.mxu0 0
    %171 = vmatpush1.bf16.msra.mxu0 0
    %172 = vmatprep.subr.bf16.mxu0 0
    %173 = vmatpush1.bf16.msra.mxu0 0
    %174 = vmatprep.subr.bf16.mxu0 0
    %175 = vmatpush1.bf16.msra.mxu0 0
    %176 = vmatprep.subr.bf16.mxu0 0
    %177 = vmatpush1.bf16.msra.mxu0 0
    %178 = vmatprep.subr.bf16.mxu0 0
    %179 = vmatpush1.bf16.msra.mxu0 0
    %180 = vmatprep.subr.bf16.mxu0 0
    %181 = vmatpush1.bf16.msra.mxu0 0
    %182 = vmatprep.subr.bf16.mxu0 0
    %183 = vmatpush1.bf16.msra.mxu0 0
    %184 = vmatprep.subr.bf16.mxu0 0
    %185 = vmatpush1.bf16.msra.mxu0 0
    %186 = vmatprep.mubr.bf16.mxu0 0
    %187 = vmatmul.mubr.bf16.gmra.mrb[0].mxu0 %v143
    %v188 = vpop.f32.mrb[0].mxu0
    %v189 = vadd.f32 %v84, %v188
    %v190 = vpop.f32.mrb[0].mxu0
    %v191 = vadd.f32 %v88, %v190
    %v192 = vpop.f32.mrb[0].mxu0
    %v193 = vadd.f32 %v84, %v192
    %v194 = vpop.f32.mrb[0].mxu0
    %v195 = vadd.f32 %v88, %v194
    %196 = vmatprep.mubr.bf16.mxu0 0
    %197 = vmatmul.mubr.bf16.gmra.mrb[0].mxu0 %v146
    %v198 = vpop.f32.mrb[0].mxu0
    %v199 = vadd.f32 %v84, %v198
    %v200 = vpop.f32.mrb[0].mxu0
    %v201 = vadd.f32 %v88, %v200
    %v202 = vpop.f32.mrb[0].mxu0
    %v203 = vadd.f32 %v84, %v202
    %v204 = vpop.f32.mrb[0].mxu0
    %v205 = vadd.f32 %v88, %v204
    %206 = vmatprep.mubr.bf16.mxu0 0
    %207 = vmatmul.mubr.bf16.gmra.mrb[0].mxu0 %v149
    %v208 = vpop.f32.mrb[0].mxu0
    %v209 = vadd.f32 %v84, %v208
    %v210 = vpop.f32.mrb[0].mxu0
    %v211 = vadd.f32 %v88, %v210
    %v212 = vpop.f32.mrb[0].mxu0
    %v213 = vadd.f32 %v84, %v212
    %v214 = vpop.f32.mrb[0].mxu0
    %v215 = vadd.f32 %v88, %v214
    %216 = vmatprep.mubr.bf16.mxu0 0
    %217 = vmatmul.mubr.bf16.gmra.mrb[0].mxu0 %v152
    %v218 = vpop.f32.mrb[0].mxu0
    %v219 = vadd.f32 %v84, %v218
    %v220 = vpop.f32.mrb[0].mxu0
    %v221 = vadd.f32 %v88, %v220
    %v222 = vpop.f32.mrb[0].mxu0
    %v223 = vadd.f32 %v84, %v222
    %v224 = vpop.f32.mrb[0].mxu0
    %v225 = vadd.f32 %v88, %v224
    %226 = vdwg.mxu0
    %227 = vmatprep.subr.bf16.mxu0 %v136
    %228 = vmatpush1.bf16.msra.mxu0 %v135
    %229 = vmatprep.subr.bf16.mxu0 0
    %230 = vmatpush1.bf16.msra.mxu0 0
    %231 = vmatprep.subr.bf16.mxu0 0
    %232 = vmatpush1.bf16.msra.mxu0 0
    %233 = vmatprep.subr.bf16.mxu0 0
    %234 = vmatpush1.bf16.msra.mxu0 0
    %235 = vmatprep.subr.bf16.mxu0 0
    %236 = vmatpush1.bf16.msra.mxu0 0
    %237 = vmatprep.subr.bf16.mxu0 0
    %238 = vmatpush1.bf16.msra.mxu0 0
    %239 = vmatprep.subr.bf16.mxu0 0
    %240 = vmatpush1.bf16.msra.mxu0 0
    %241 = vmatprep.subr.bf16.mxu0 0
    %242 = vmatpush1.bf16.msra.mxu0 0
    %243 = vmatprep.subr.bf16.mxu0 0
    %244 = vmatpush1.bf16.msra.mxu0 0
    %245 = vmatprep.subr.bf16.mxu0 0
    %246 = vmatpush1.bf16.msra.mxu0 0
    %247 = vmatprep.subr.bf16.mxu0 0
    %248 = vmatpush1.bf16.msra.mxu0 0
    %249 = vmatprep.subr.bf16.mxu0 0
    %250 = vmatpush1.bf16.msra.mxu0 0
    %251 = vmatprep.subr.bf16.mxu0 0
    %252 = vmatpush1.bf16.msra.mxu0 0
    %253 = vmatprep.subr.bf16.mxu0 0
    %254 = vmatpush1.bf16.msra.mxu0 0
    %255 = vmatprep.subr.bf16.mxu0 0
    %256 = vmatpush1.bf16.msra.mxu0 0
    %257 = vmatprep.subr.bf16.mxu0 0
    %258 = vmatpush1.bf16.msra.mxu0 0
    %259 = vmatprep.mubr.bf16.mxu0 0
    %260 = vmatmul.mubr.bf16.gmra.mrb[0].mxu0 %v143
    %v261 = vpop.f32.mrb[0].mxu0
    %v262 = vadd.f32 %v92, %v261
    %v263 = vpop.f32.mrb[0].mxu0
    %v264 = vadd.f32 %v96, %v263
    %v265 = vpop.f32.mrb[0].mxu0
    %v266 = vadd.f32 %v92, %v265
    %v267 = vpop.f32.mrb[0].mxu0
    %v268 = vadd.f32 %v96, %v267
    %269 = vmatprep.mubr.bf16.mxu0 0
    %270 = vmatmul.mubr.bf16.gmra.mrb[0].mxu0 %v146
    %v271 = vpop.f32.mrb[0].mxu0
    %v272 = vadd.f32 %v92, %v271
    %v273 = vpop.f32.mrb[0].mxu0
    %v274 = vadd.f32 %v96, %v273
    %v275 = vpop.f32.mrb[0].mxu0
    %v276 = vadd.f32 %v92, %v275
    %v277 = vpop.f32.mrb[0].mxu0
    %v278 = vadd.f32 %v96, %v277
    %279 = vmatprep.mubr.bf16.mxu0 0
    %280 = vmatmul.mubr.bf16.gmra.mrb[0].mxu0 %v149
    %v281 = vpop.f32.mrb[0].mxu0
    %v282 = vadd.f32 %v92, %v281
    %v283 = vpop.f32.mrb[0].mxu0
    %v284 = vadd.f32 %v96, %v283
    %v285 = vpop.f32.mrb[0].mxu0
    %v286 = vadd.f32 %v92, %v285
    %v287 = vpop.f32.mrb[0].mxu0
    %v288 = vadd.f32 %v96, %v287
    %289 = vmatprep.mubr.bf16.mxu0 0
    %290 = vmatmul.mubr.bf16.gmra.mrb[0].mxu0 %v152
    %v291 = vpop.f32.mrb[0].mxu0
    %v292 = vadd.f32 %v92, %v291
    %v293 = vpop.f32.mrb[0].mxu0
    %v294 = vadd.f32 %v96, %v293
    %v295 = vpop.f32.mrb[0].mxu0
    %v296 = vadd.f32 %v92, %v295
    %v297 = vpop.f32.mrb[0].mxu0
    %v298 = vadd.f32 %v96, %v297
    %299 = vdwg.mxu0
    %300 = vst [vmem:[#allocation2] sm:$0xff] %v189
    %301 = vst [vmem:[#allocation2 + $0x8] sm:$0xff] %v191
    %302 = vst [vmem:[#allocation2 + $0x10] sm:$0xff] %v262
    %303 = vst [vmem:[#allocation2 + $0x18] sm:$0xff] %v264
    %304 = vst [vmem:[#allocation2 + $0x20] sm:$0xff] %v193
    %305 = vst [vmem:[#allocation2 + $0x28] sm:$0xff] %v195
    %306 = vst [vmem:[#allocation2 + $0x30] sm:$0xff] %v266
    %307 = vst [vmem:[#allocation2 + $0x38] sm:$0xff] %v268
    %308 = vst [vmem:[#allocation2 + $0x40] sm:$0xff] %v199
    %309 = vst [vmem:[#allocation2 + $0x48] sm:$0xff] %v201
    %310 = vst [vmem:[#allocation2 + $0x50] sm:$0xff] %v272
    %311 = vst [vmem:[#allocation2 + $0x58] sm:$0xff] %v274
    %312 = vst [vmem:[#allocation2 + $0x60] sm:$0xff] %v203
    %313 = vst [vmem:[#allocation2 + $0x68] sm:$0xff] %v205
    %314 = vst [vmem:[#allocation2 + $0x70] sm:$0xff] %v276
    %315 = vst [vmem:[#allocation2 + $0x78] sm:$0xff] %v278
    %316 = vst [vmem:[#allocation2 + $0x80] sm:$0xff] %v209
    %317 = vst [vmem:[#allocation2 + $0x88] sm:$0xff] %v211
    %318 = vst [vmem:[#allocation2 + $0x90] sm:$0xff] %v282
    %319 = vst [vmem:[#allocation2 + $0x98] sm:$0xff] %v284
    %320 = vst [vmem:[#allocation2 + $0xa0] sm:$0xff] %v213
    %321 = vst [vmem:[#allocation2 + $0xa8] sm:$0xff] %v215
    %322 = vst [vmem:[#allocation2 + $0xb0] sm:$0xff] %v286
    %323 = vst [vmem:[#allocation2 + $0xb8] sm:$0xff] %v288
    %324 = vst [vmem:[#allocation2 + $0xc0] sm:$0xff] %v219
    %325 = vst [vmem:[#allocation2 + $0xc8] sm:$0xff] %v221
    %326 = vst [vmem:[#allocation2 + $0xd0] sm:$0xff] %v292
    %327 = vst [vmem:[#allocation2 + $0xd8] sm:$0xff] %v294
    %328 = vst [vmem:[#allocation2 + $0xe0] sm:$0xff] %v223
    %329 = vst [vmem:[#allocation2 + $0xe8] sm:$0xff] %v225
    %330 = vst [vmem:[#allocation2 + $0xf0] sm:$0xff] %v296
    %331 = vst [vmem:[#allocation2 + $0xf8] sm:$0xff] %v298
    %v332 = vld [vmem:[%s4] sm:$0xf]
    %v334 = vlaneseq
    %v335 = vshrl.u32 %v334, 7
    %v336 = vsub.s32 0, %v335
    %v337 = vrot.slane %v332, %v336
    %v338 = vlaneseq
    %v339 = vshrl.u32 %v338, 7
    %v340 = vsub.s32 1, %v339
    %v341 = vrot.slane %v332, %v340
    %v342 = vlaneseq
    %v343 = vshrl.u32 %v342, 7
    %v344 = vsub.s32 2, %v343
    %v345 = vrot.slane %v332, %v344
    %v346 = vlaneseq
    %v347 = vshrl.u32 %v346, 7
    %v348 = vsub.s32 3, %v347
    %v349 = vrot.slane %v332, %v348
    %v354 = vld [vmem:[#allocation2] sm:$0xff]
    %v355 = vld [vmem:[#allocation2 + $0x8] sm:$0xff]
    %v356 = vld [vmem:[#allocation2 + $0x10] sm:$0xff]
    %v357 = vld [vmem:[#allocation2 + $0x18] sm:$0xff]
    %v358 = vxor.u32 %v354, 2147483648
    %v359 = vxor.u32 %v355, 2147483648
    %v360 = vxor.u32 %v356, 2147483648
    %v361 = vxor.u32 %v357, 2147483648
    %v362 = vmul.f32 %v358, 1.442695
    %v363 = vpow.pop %v362
    %v364 = vmul.f32 %v359, 1.442695
    %v365 = vpow.pop %v364
    %v366 = vmul.f32 %v360, 1.442695
    %v367 = vpow.pop %v366
    %v368 = vmul.f32 %v361, 1.442695
    %v369 = vpow.pop %v368
    %v370 = vadd.f32 %v363, 1.0
    %v371 = vadd.f32 %v365, 1.0
    %v372 = vadd.f32 %v367, 1.0
    %v373 = vadd.f32 %v369, 1.0
    %v374 = vrcp.pop %v370
    %v375 = vmul.f32 1.0, %v374
    %v376 = vrcp.pop %v371
    %v377 = vmul.f32 1.0, %v376
    %v378 = vrcp.pop %v372
    %v379 = vmul.f32 1.0, %v378
    %v380 = vrcp.pop %v373
    %v381 = vmul.f32 1.0, %v380
    %v382 = vmul.f32 %v381, 2.0
    %v383 = vsub.f32 %v382, 1.0
    %v384 = vmul.f32 %v377, 0.0
    %v385 = vmul.f32 %v375, %v383
    %v386 = vadd.f32 %v384, %v385
    %v387 = vtanh.pop %v386
    %v388 = vmul.f32 %v379, %v387
    %v389 = vpack.c.bf16 %v388, %v388
    %v390 = vpack.c.bf16 0.0, 0.0
    %v391 = vld [vmem:[#allocation5] sm:$0xff]
    %v392 = vld [vmem:[#allocation5 + $0x8] sm:$0xff]
    %v393 = vld [vmem:[#allocation5 + $0x10] sm:$0xff]
    %v394 = vld [vmem:[#allocation5 + $0x18] sm:$0xff]
    %v395 = vld [vmem:[#allocation5 + $0x20] sm:$0xff]
    %v396 = vld [vmem:[#allocation5 + $0x28] sm:$0xff]
    %v397 = vld [vmem:[#allocation5 + $0x30] sm:$0xff]
    %v398 = vld [vmem:[#allocation5 + $0x38] sm:$0xff]
    %v399 = vld [vmem:[#allocation5 + $0x40] sm:$0xff]
    %v400 = vld [vmem:[#allocation5 + $0x48] sm:$0xff]
    %v401 = vld [vmem:[#allocation5 + $0x50] sm:$0xff]
    %v402 = vld [vmem:[#allocation5 + $0x58] sm:$0xff]
    %v403 = vld [vmem:[#allocation5 + $0x60] sm:$0xff]
    %v404 = vld [vmem:[#allocation5 + $0x68] sm:$0xff]
    %v405 = vld [vmem:[#allocation5 + $0x70] sm:$0xff]
    %v406 = vld [vmem:[#allocation5 + $0x78] sm:$0xff]
    %v407 = vld [vmem:[#allocation5 + $0x80] sm:$0xff]
    %v408 = vld [vmem:[#allocation5 + $0x88] sm:$0xff]
    %v409 = vld [vmem:[#allocation5 + $0x90] sm:$0xff]
    %v410 = vld [vmem:[#allocation5 + $0x98] sm:$0xff]
    %v411 = vld [vmem:[#allocation5 + $0xa0] sm:$0xff]
    %v412 = vld [vmem:[#allocation5 + $0xa8] sm:$0xff]
    %v413 = vld [vmem:[#allocation5 + $0xb0] sm:$0xff]
    %v414 = vld [vmem:[#allocation5 + $0xb8] sm:$0xff]
    %v415 = vld [vmem:[#allocation5 + $0xc0] sm:$0xff]
    %v416 = vld [vmem:[#allocation5 + $0xc8] sm:$0xff]
    %v417 = vld [vmem:[#allocation5 + $0xd0] sm:$0xff]
    %v418 = vld [vmem:[#allocation5 + $0xd8] sm:$0xff]
    %v419 = vld [vmem:[#allocation5 + $0xe0] sm:$0xff]
    %v420 = vld [vmem:[#allocation5 + $0xe8] sm:$0xff]
    %v421 = vld [vmem:[#allocation5 + $0xf0] sm:$0xff]
    %v422 = vld [vmem:[#allocation5 + $0xf8] sm:$0xff]
    %v423 = vld [vmem:[#allocation5 + $0x100] sm:$0xff]
    %v424 = vld [vmem:[#allocation5 + $0x108] sm:$0xff]
    %v425 = vld [vmem:[#allocation5 + $0x110] sm:$0xff]
    %v426 = vld [vmem:[#allocation5 + $0x118] sm:$0xff]
    %v427 = vld [vmem:[#allocation5 + $0x120] sm:$0xff]
    %v428 = vld [vmem:[#allocation5 + $0x128] sm:$0xff]
    %v429 = vld [vmem:[#allocation5 + $0x130] sm:$0xff]
    %v430 = vld [vmem:[#allocation5 + $0x138] sm:$0xff]
    %v431 = vld [vmem:[#allocation5 + $0x140] sm:$0xff]
    %v432 = vld [vmem:[#allocation5 + $0x148] sm:$0xff]
    %v433 = vld [vmem:[#allocation5 + $0x150] sm:$0xff]
    %v434 = vld [vmem:[#allocation5 + $0x158] sm:$0xff]
    %v435 = vld [vmem:[#allocation5 + $0x160] sm:$0xff]
    %v436 = vld [vmem:[#allocation5 + $0x168] sm:$0xff]
    %v437 = vld [vmem:[#allocation5 + $0x170] sm:$0xff]
    %v438 = vld [vmem:[#allocation5 + $0x178] sm:$0xff]
    %v439 = vld [vmem:[#allocation5 + $0x180] sm:$0xff]
    %v440 = vld [vmem:[#allocation5 + $0x188] sm:$0xff]
    %v441 = vld [vmem:[#allocation5 + $0x190] sm:$0xff]
    %v442 = vld [vmem:[#allocation5 + $0x198] sm:$0xff]
    %v443 = vld [vmem:[#allocation5 + $0x1a0] sm:$0xff]
    %v444 = vld [vmem:[#allocation5 + $0x1a8] sm:$0xff]
    %v445 = vld [vmem:[#allocation5 + $0x1b0] sm:$0xff]
    %v446 = vld [vmem:[#allocation5 + $0x1b8] sm:$0xff]
    %v447 = vld [vmem:[#allocation5 + $0x1c0] sm:$0xff]
    %v448 = vld [vmem:[#allocation5 + $0x1c8] sm:$0xff]
    %v449 = vld [vmem:[#allocation5 + $0x1d0] sm:$0xff]
    %v450 = vld [vmem:[#allocation5 + $0x1d8] sm:$0xff]
    %v451 = vld [vmem:[#allocation5 + $0x1e0] sm:$0xff]
    %v452 = vld [vmem:[#allocation5 + $0x1e8] sm:$0xff]
    %v453 = vld [vmem:[#allocation5 + $0x1f0] sm:$0xff]
    %v454 = vld [vmem:[#allocation5 + $0x1f8] sm:$0xff]
    %v455 = vld [vmem:[#allocation5 + $0x200] sm:$0xff]
    %v456 = vld [vmem:[#allocation5 + $0x208] sm:$0xff]
    %v457 = vld [vmem:[#allocation5 + $0x210] sm:$0xff]
    %v458 = vld [vmem:[#allocation5 + $0x218] sm:$0xff]
    %v459 = vld [vmem:[#allocation5 + $0x220] sm:$0xff]
    %v460 = vld [vmem:[#allocation5 + $0x228] sm:$0xff]
    %v461 = vld [vmem:[#allocation5 + $0x230] sm:$0xff]
    %v462 = vld [vmem:[#allocation5 + $0x238] sm:$0xff]
    %v463 = vld [vmem:[#allocation5 + $0x240] sm:$0xff]
    %v464 = vld [vmem:[#allocation5 + $0x248] sm:$0xff]
    %v465 = vld [vmem:[#allocation5 + $0x250] sm:$0xff]
    %v466 = vld [vmem:[#allocation5 + $0x258] sm:$0xff]
    %v467 = vld [vmem:[#allocation5 + $0x260] sm:$0xff]
    %v468 = vld [vmem:[#allocation5 + $0x268] sm:$0xff]
    %v469 = vld [vmem:[#allocation5 + $0x270] sm:$0xff]
    %v470 = vld [vmem:[#allocation5 + $0x278] sm:$0xff]
    %v471 = vld [vmem:[#allocation5 + $0x280] sm:$0xff]
    %v472 = vld [vmem:[#allocation5 + $0x288] sm:$0xff]
    %v473 = vld [vmem:[#allocation5 + $0x290] sm:$0xff]
    %v474 = vld [vmem:[#allocation5 + $0x298] sm:$0xff]
    %v475 = vld [vmem:[#allocation5 + $0x2a0] sm:$0xff]
    %v476 = vld [vmem:[#allocation5 + $0x2a8] sm:$0xff]
    %v477 = vld [vmem:[#allocation5 + $0x2b0] sm:$0xff]
    %v478 = vld [vmem:[#allocation5 + $0x2b8] sm:$0xff]
    %v479 = vld [vmem:[#allocation5 + $0x2c0] sm:$0xff]
    %v480 = vld [vmem:[#allocation5 + $0x2c8] sm:$0xff]
    %v481 = vld [vmem:[#allocation5 + $0x2d0] sm:$0xff]
    %v482 = vld [vmem:[#allocation5 + $0x2d8] sm:$0xff]
    %v483 = vld [vmem:[#allocation5 + $0x2e0] sm:$0xff]
    %v484 = vld [vmem:[#allocation5 + $0x2e8] sm:$0xff]
    %v485 = vld [vmem:[#allocation5 + $0x2f0] sm:$0xff]
    %v486 = vld [vmem:[#allocation5 + $0x2f8] sm:$0xff]
    %v487 = vld [vmem:[#allocation5 + $0x300] sm:$0xff]
    %v488 = vld [vmem:[#allocation5 + $0x308] sm:$0xff]
    %v489 = vld [vmem:[#allocation5 + $0x310] sm:$0xff]
    %v490 = vld [vmem:[#allocation5 + $0x318] sm:$0xff]
    %v491 = vld [vmem:[#allocation5 + $0x320] sm:$0xff]
    %v492 = vld [vmem:[#allocation5 + $0x328] sm:$0xff]
    %v493 = vld [vmem:[#allocation5 + $0x330] sm:$0xff]
    %v494 = vld [vmem:[#allocation5 + $0x338] sm:$0xff]
    %v495 = vld [vmem:[#allocation5 + $0x340] sm:$0xff]
    %v496 = vld [vmem:[#allocation5 + $0x348] sm:$0xff]
    %v497 = vld [vmem:[#allocation5 + $0x350] sm:$0xff]
    %v498 = vld [vmem:[#allocation5 + $0x358] sm:$0xff]
    %v499 = vld [vmem:[#allocation5 + $0x360] sm:$0xff]
    %v500 = vld [vmem:[#allocation5 + $0x368] sm:$0xff]
    %v501 = vld [vmem:[#allocation5 + $0x370] sm:$0xff]
    %v502 = vld [vmem:[#allocation5 + $0x378] sm:$0xff]
    %v503 = vld [vmem:[#allocation5 + $0x380] sm:$0xff]
    %v504 = vld [vmem:[#allocation5 + $0x388] sm:$0xff]
    %v505 = vld [vmem:[#allocation5 + $0x390] sm:$0xff]
    %v506 = vld [vmem:[#allocation5 + $0x398] sm:$0xff]
    %v507 = vld [vmem:[#allocation5 + $0x3a0] sm:$0xff]
    %v508 = vld [vmem:[#allocation5 + $0x3a8] sm:$0xff]
    %v509 = vld [vmem:[#allocation5 + $0x3b0] sm:$0xff]
    %v510 = vld [vmem:[#allocation5 + $0x3b8] sm:$0xff]
    %v511 = vld [vmem:[#allocation5 + $0x3c0] sm:$0xff]
    %v512 = vld [vmem:[#allocation5 + $0x3c8] sm:$0xff]
    %v513 = vld [vmem:[#allocation5 + $0x3d0] sm:$0xff]
    %v514 = vld [vmem:[#allocation5 + $0x3d8] sm:$0xff]
    %v515 = vld [vmem:[#allocation5 + $0x3e0] sm:$0xff]
    %v516 = vld [vmem:[#allocation5 + $0x3e8] sm:$0xff]
    %v517 = vld [vmem:[#allocation5 + $0x3f0] sm:$0xff]
    %v518 = vld [vmem:[#allocation5 + $0x3f8] sm:$0xff]
    %v647 = vunpack.c.l.b16 %v391
    %v648 = vunpack.c.h.b16 %v391
    %v649 = vunpack.c.l.b16 %v392
    %v650 = vunpack.c.h.b16 %v392
    %v651 = vunpack.c.l.b16 %v393
    %v652 = vunpack.c.h.b16 %v393
    %v653 = vunpack.c.l.b16 %v394
    %v654 = vunpack.c.h.b16 %v394
    %v655 = vunpack.c.l.b16 %v395
    %v656 = vunpack.c.h.b16 %v395
    %v657 = vunpack.c.l.b16 %v396
    %v658 = vunpack.c.h.b16 %v396
    %v659 = vunpack.c.l.b16 %v397
    %v660 = vunpack.c.h.b16 %v397
    %v661 = vunpack.c.l.b16 %v398
    %v662 = vunpack.c.h.b16 %v398
    %v663 = vunpack.c.l.b16 %v399
    %v664 = vunpack.c.h.b16 %v399
    %v665 = vunpack.c.l.b16 %v400
    %v666 = vunpack.c.h.b16 %v400
    %v667 = vunpack.c.l.b16 %v401
    %v668 = vunpack.c.h.b16 %v401
    %v669 = vunpack.c.l.b16 %v402
    %v670 = vunpack.c.h.b16 %v402
    %v671 = vunpack.c.l.b16 %v403
    %v672 = vunpack.c.h.b16 %v403
    %v673 = vunpack.c.l.b16 %v404
    %v674 = vunpack.c.h.b16 %v404
    %v675 = vunpack.c.l.b16 %v405
    %v676 = vunpack.c.h.b16 %v405
    %v677 = vunpack.c.l.b16 %v406
    %v678 = vunpack.c.h.b16 %v406
    %v679 = vunpack.c.l.b16 %v407
    %v680 = vunpack.c.h.b16 %v407
    %v681 = vunpack.c.l.b16 %v408
    %v682 = vunpack.c.h.b16 %v408
    %v683 = vunpack.c.l.b16 %v409
    %v684 = vunpack.c.h.b16 %v409
    %v685 = vunpack.c.l.b16 %v410
    %v686 = vunpack.c.h.b16 %v410
    %v687 = vunpack.c.l.b16 %v411
    %v688 = vunpack.c.h.b16 %v411
    %v689 = vunpack.c.l.b16 %v412
    %v690 = vunpack.c.h.b16 %v412
    %v691 = vunpack.c.l.b16 %v413
    %v692 = vunpack.c.h.b16 %v413
    %v693 = vunpack.c.l.b16 %v414
    %v694 = vunpack.c.h.b16 %v414
    %v695 = vunpack.c.l.b16 %v415
    %v696 = vunpack.c.h.b16 %v415
    %v697 = vunpack.c.l.b16 %v416
    %v698 = vunpack.c.h.b16 %v416
    %v699 = vunpack.c.l.b16 %v417
    %v700 = vunpack.c.h.b16 %v417
    %v701 = vunpack.c.l.b16 %v418
    %v702 = vunpack.c.h.b16 %v418
    %v703 = vunpack.c.l.b16 %v419
    %v704 = vunpack.c.h.b16 %v419
    %v705 = vunpack.c.l.b16 %v420
    %v706 = vunpack.c.h.b16 %v420
    %v707 = vunpack.c.l.b16 %v421
    %v708 = vunpack.c.h.b16 %v421
    %v709 = vunpack.c.l.b16 %v422
    %v710 = vunpack.c.h.b16 %v422
    %v711 = vunpack.c.l.b16 %v423
    %v712 = vunpack.c.h.b16 %v423
    %v713 = vunpack.c.l.b16 %v424
    %v714 = vunpack.c.h.b16 %v424
    %v715 = vunpack.c.l.b16 %v425
    %v716 = vunpack.c.h.b16 %v425
    %v717 = vunpack.c.l.b16 %v426
    %v718 = vunpack.c.h.b16 %v426
    %v719 = vunpack.c.l.b16 %v427
    %v720 = vunpack.c.h.b16 %v427
    %v721 = vunpack.c.l.b16 %v428
    %v722 = vunpack.c.h.b16 %v428
    %v723 = vunpack.c.l.b16 %v429
    %v724 = vunpack.c.h.b16 %v429
    %v725 = vunpack.c.l.b16 %v430
    %v726 = vunpack.c.h.b16 %v430
    %v727 = vunpack.c.l.b16 %v431
    %v728 = vunpack.c.h.b16 %v431
    %v729 = vunpack.c.l.b16 %v432
    %v730 = vunpack.c.h.b16 %v432
    %v731 = vunpack.c.l.b16 %v433
    %v732 = vunpack.c.h.b16 %v433
    %v733 = vunpack.c.l.b16 %v434
    %v734 = vunpack.c.h.b16 %v434
    %v735 = vunpack.c.l.b16 %v435
    %v736 = vunpack.c.h.b16 %v435
    %v737 = vunpack.c.l.b16 %v436
    %v738 = vunpack.c.h.b16 %v436
    %v739 = vunpack.c.l.b16 %v437
    %v740 = vunpack.c.h.b16 %v437
    %v741 = vunpack.c.l.b16 %v438
    %v742 = vunpack.c.h.b16 %v438
    %v743 = vunpack.c.l.b16 %v439
    %v744 = vunpack.c.h.b16 %v439
    %v745 = vunpack.c.l.b16 %v440
    %v746 = vunpack.c.h.b16 %v440
    %v747 = vunpack.c.l.b16 %v441
    %v748 = vunpack.c.h.b16 %v441
    %v749 = vunpack.c.l.b16 %v442
    %v750 = vunpack.c.h.b16 %v442
    %v751 = vunpack.c.l.b16 %v443
    %v752 = vunpack.c.h.b16 %v443
    %v753 = vunpack.c.l.b16 %v444
    %v754 = vunpack.c.h.b16 %v444
    %v755 = vunpack.c.l.b16 %v445
    %v756 = vunpack.c.h.b16 %v445
    %v757 = vunpack.c.l.b16 %v446
    %v758 = vunpack.c.h.b16 %v446
    %v759 = vunpack.c.l.b16 %v447
    %v760 = vunpack.c.h.b16 %v447
    %v761 = vunpack.c.l.b16 %v448
    %v762 = vunpack.c.h.b16 %v448
    %v763 = vunpack.c.l.b16 %v449
    %v764 = vunpack.c.h.b16 %v449
    %v765 = vunpack.c.l.b16 %v450
    %v766 = vunpack.c.h.b16 %v450
    %v767 = vunpack.c.l.b16 %v451
    %v768 = vunpack.c.h.b16 %v451
    %v769 = vunpack.c.l.b16 %v452
    %v770 = vunpack.c.h.b16 %v452
    %v771 = vunpack.c.l.b16 %v453
    %v772 = vunpack.c.h.b16 %v453
    %v773 = vunpack.c.l.b16 %v454
    %v774 = vunpack.c.h.b16 %v454
    %v775 = vunpack.c.l.b16 %v455
    %v776 = vunpack.c.h.b16 %v455
    %v777 = vunpack.c.l.b16 %v456
    %v778 = vunpack.c.h.b16 %v456
    %v779 = vunpack.c.l.b16 %v457
    %v780 = vunpack.c.h.b16 %v457
    %v781 = vunpack.c.l.b16 %v458
    %v782 = vunpack.c.h.b16 %v458
    %v783 = vunpack.c.l.b16 %v459
    %v784 = vunpack.c.h.b16 %v459
    %v785 = vunpack.c.l.b16 %v460
    %v786 = vunpack.c.h.b16 %v460
    %v787 = vunpack.c.l.b16 %v461
    %v788 = vunpack.c.h.b16 %v461
    %v789 = vunpack.c.l.b16 %v462
    %v790 = vunpack.c.h.b16 %v462
    %v791 = vunpack.c.l.b16 %v463
    %v792 = vunpack.c.h.b16 %v463
    %v793 = vunpack.c.l.b16 %v464
    %v794 = vunpack.c.h.b16 %v464
    %v795 = vunpack.c.l.b16 %v465
    %v796 = vunpack.c.h.b16 %v465
    %v797 = vunpack.c.l.b16 %v466
    %v798 = vunpack.c.h.b16 %v466
    %v799 = vunpack.c.l.b16 %v467
    %v800 = vunpack.c.h.b16 %v467
    %v801 = vunpack.c.l.b16 %v468
    %v802 = vunpack.c.h.b16 %v468
    %v803 = vunpack.c.l.b16 %v469
    %v804 = vunpack.c.h.b16 %v469
    %v805 = vunpack.c.l.b16 %v470
    %v806 = vunpack.c.h.b16 %v470
    %v807 = vunpack.c.l.b16 %v471
    %v808 = vunpack.c.h.b16 %v471
    %v809 = vunpack.c.l.b16 %v472
    %v810 = vunpack.c.h.b16 %v472
    %v811 = vunpack.c.l.b16 %v473
    %v812 = vunpack.c.h.b16 %v473
    %v813 = vunpack.c.l.b16 %v474
    %v814 = vunpack.c.h.b16 %v474
    %v815 = vunpack.c.l.b16 %v475
    %v816 = vunpack.c.h.b16 %v475
    %v817 = vunpack.c.l.b16 %v476
    %v818 = vunpack.c.h.b16 %v476
    %v819 = vunpack.c.l.b16 %v477
    %v820 = vunpack.c.h.b16 %v477
    %v821 = vunpack.c.l.b16 %v478
    %v822 = vunpack.c.h.b16 %v478
    %v823 = vunpack.c.l.b16 %v479
    %v824 = vunpack.c.h.b16 %v479
    %v825 = vunpack.c.l.b16 %v480
    %v826 = vunpack.c.h.b16 %v480
    %v827 = vunpack.c.l.b16 %v481
    %v828 = vunpack.c.h.b16 %v481
    %v829 = vunpack.c.l.b16 %v482
    %v830 = vunpack.c.h.b16 %v482
    %v831 = vunpack.c.l.b16 %v483
    %v832 = vunpack.c.h.b16 %v483
    %v833 = vunpack.c.l.b16 %v484
    %v834 = vunpack.c.h.b16 %v484
    %v835 = vunpack.c.l.b16 %v485
    %v836 = vunpack.c.h.b16 %v485
    %v837 = vunpack.c.l.b16 %v486
    %v838 = vunpack.c.h.b16 %v486
    %v839 = vunpack.c.l.b16 %v487
    %v840 = vunpack.c.h.b16 %v487
    %v841 = vunpack.c.l.b16 %v488
    %v842 = vunpack.c.h.b16 %v488
    %v843 = vunpack.c.l.b16 %v489
    %v844 = vunpack.c.h.b16 %v489
    %v845 = vunpack.c.l.b16 %v490
    %v846 = vunpack.c.h.b16 %v490
    %v847 = vunpack.c.l.b16 %v491
    %v848 = vunpack.c.h.b16 %v491
    %v849 = vunpack.c.l.b16 %v492
    %v850 = vunpack.c.h.b16 %v492
    %v851 = vunpack.c.l.b16 %v493
    %v852 = vunpack.c.h.b16 %v493
    %v853 = vunpack.c.l.b16 %v494
    %v854 = vunpack.c.h.b16 %v494
    %v855 = vunpack.c.l.b16 %v495
    %v856 = vunpack.c.h.b16 %v495
    %v857 = vunpack.c.l.b16 %v496
    %v858 = vunpack.c.h.b16 %v496
    %v859 = vunpack.c.l.b16 %v497
    %v860 = vunpack.c.h.b16 %v497
    %v861 = vunpack.c.l.b16 %v498
    %v862 = vunpack.c.h.b16 %v498
    %v863 = vunpack.c.l.b16 %v499
    %v864 = vunpack.c.h.b16 %v499
    %v865 = vunpack.c.l.b16 %v500
    %v866 = vunpack.c.h.b16 %v500
    %v867 = vunpack.c.l.b16 %v501
    %v868 = vunpack.c.h.b16 %v501
    %v869 = vunpack.c.l.b16 %v502
    %v870 = vunpack.c.h.b16 %v502
    %v871 = vunpack.c.l.b16 %v503
    %v872 = vunpack.c.h.b16 %v503
    %v873 = vunpack.c.l.b16 %v504
    %v874 = vunpack.c.h.b16 %v504
    %v875 = vunpack.c.l.b16 %v505
    %v876 = vunpack.c.h.b16 %v505
    %v877 = vunpack.c.l.b16 %v506
    %v878 = vunpack.c.h.b16 %v506
    %v879 = vunpack.c.l.b16 %v507
    %v880 = vunpack.c.h.b16 %v507
    %v881 = vunpack.c.l.b16 %v508
    %v882 = vunpack.c.h.b16 %v508
    %v883 = vunpack.c.l.b16 %v509
    %v884 = vunpack.c.h.b16 %v509
    %v885 = vunpack.c.l.b16 %v510
    %v886 = vunpack.c.h.b16 %v510
    %v887 = vunpack.c.l.b16 %v511
    %v888 = vunpack.c.h.b16 %v511
    %v889 = vunpack.c.l.b16 %v512
    %v890 = vunpack.c.h.b16 %v512
    %v891 = vunpack.c.l.b16 %v513
    %v892 = vunpack.c.h.b16 %v513
    %v893 = vunpack.c.l.b16 %v514
    %v894 = vunpack.c.h.b16 %v514
    %v895 = vunpack.c.l.b16 %v515
    %v896 = vunpack.c.h.b16 %v515
    %v897 = vunpack.c.l.b16 %v516
    %v898 = vunpack.c.h.b16 %v516
    %v899 = vunpack.c.l.b16 %v517
    %v900 = vunpack.c.h.b16 %v517
    %v901 = vunpack.c.l.b16 %v518
    %v902 = vunpack.c.h.b16 %v518
    %v903 = vpack.c.b16 %v655, %v647
    %v904 = vpack.c.b16 %v656, %v648
    %v905 = vpack.c.b16 %v657, %v649
    %v906 = vpack.c.b16 %v658, %v650
    %v907 = vpack.c.b16 %v659, %v651
    %v908 = vpack.c.b16 %v660, %v652
    %v909 = vpack.c.b16 %v661, %v653
    %v910 = vpack.c.b16 %v662, %v654
    %v911 = vpack.c.b16 %v671, %v663
    %v912 = vpack.c.b16 %v672, %v664
    %v913 = vpack.c.b16 %v673, %v665
    %v914 = vpack.c.b16 %v674, %v666
    %v915 = vpack.c.b16 %v675, %v667
    %v916 = vpack.c.b16 %v676, %v668
    %v917 = vpack.c.b16 %v677, %v669
    %v918 = vpack.c.b16 %v678, %v670
    %v919 = vpack.c.b16 %v687, %v679
    %v920 = vpack.c.b16 %v688, %v680
    %v921 = vpack.c.b16 %v689, %v681
    %v922 = vpack.c.b16 %v690, %v682
    %v923 = vpack.c.b16 %v691, %v683
    %v924 = vpack.c.b16 %v692, %v684
    %v925 = vpack.c.b16 %v693, %v685
    %v926 = vpack.c.b16 %v694, %v686
    %v927 = vpack.c.b16 %v703, %v695
    %v928 = vpack.c.b16 %v704, %v696
    %v929 = vpack.c.b16 %v705, %v697
    %v930 = vpack.c.b16 %v706, %v698
    %v931 = vpack.c.b16 %v707, %v699
    %v932 = vpack.c.b16 %v708, %v700
    %v933 = vpack.c.b16 %v709, %v701
    %v934 = vpack.c.b16 %v710, %v702
    %v935 = vpack.c.b16 %v719, %v711
    %v936 = vpack.c.b16 %v720, %v712
    %v937 = vpack.c.b16 %v721, %v713
    %v938 = vpack.c.b16 %v722, %v714
    %v939 = vpack.c.b16 %v723, %v715
    %v940 = vpack.c.b16 %v724, %v716
    %v941 = vpack.c.b16 %v725, %v717
    %v942 = vpack.c.b16 %v726, %v718
    %v943 = vpack.c.b16 %v735, %v727
    %v944 = vpack.c.b16 %v736, %v728
    %v945 = vpack.c.b16 %v737, %v729
    %v946 = vpack.c.b16 %v738, %v730
    %v947 = vpack.c.b16 %v739, %v731
    %v948 = vpack.c.b16 %v740, %v732
    %v949 = vpack.c.b16 %v741, %v733
    %v950 = vpack.c.b16 %v742, %v734
    %v951 = vpack.c.b16 %v751, %v743
    %v952 = vpack.c.b16 %v752, %v744
    %v953 = vpack.c.b16 %v753, %v745
    %v954 = vpack.c.b16 %v754, %v746
    %v955 = vpack.c.b16 %v755, %v747
    %v956 = vpack.c.b16 %v756, %v748
    %v957 = vpack.c.b16 %v757, %v749
    %v958 = vpack.c.b16 %v758, %v750
    %v959 = vpack.c.b16 %v767, %v759
    %v960 = vpack.c.b16 %v768, %v760
    %v961 = vpack.c.b16 %v769, %v761
    %v962 = vpack.c.b16 %v770, %v762
    %v963 = vpack.c.b16 %v771, %v763
    %v964 = vpack.c.b16 %v772, %v764
    %v965 = vpack.c.b16 %v773, %v765
    %v966 = vpack.c.b16 %v774, %v766
    %v967 = vpack.c.b16 %v783, %v775
    %v968 = vpack.c.b16 %v784, %v776
    %v969 = vpack.c.b16 %v785, %v777
    %v970 = vpack.c.b16 %v786, %v778
    %v971 = vpack.c.b16 %v787, %v779
    %v972 = vpack.c.b16 %v788, %v780
    %v973 = vpack.c.b16 %v789, %v781
    %v974 = vpack.c.b16 %v790, %v782
    %v975 = vpack.c.b16 %v799, %v791
    %v976 = vpack.c.b16 %v800, %v792
    %v977 = vpack.c.b16 %v801, %v793
    %v978 = vpack.c.b16 %v802, %v794
    %v979 = vpack.c.b16 %v803, %v795
    %v980 = vpack.c.b16 %v804, %v796
    %v981 = vpack.c.b16 %v805, %v797
    %v982 = vpack.c.b16 %v806, %v798
    %v983 = vpack.c.b16 %v815, %v807
    %v984 = vpack.c.b16 %v816, %v808
    %v985 = vpack.c.b16 %v817, %v809
    %v986 = vpack.c.b16 %v818, %v810
    %v987 = vpack.c.b16 %v819, %v811
    %v988 = vpack.c.b16 %v820, %v812
    %v989 = vpack.c.b16 %v821, %v813
    %v990 = vpack.c.b16 %v822, %v814
    %v991 = vpack.c.b16 %v831, %v823
    %v992 = vpack.c.b16 %v832, %v824
    %v993 = vpack.c.b16 %v833, %v825
    %v994 = vpack.c.b16 %v834, %v826
    %v995 = vpack.c.b16 %v835, %v827
    %v996 = vpack.c.b16 %v836, %v828
    %v997 = vpack.c.b16 %v837, %v829
    %v998 = vpack.c.b16 %v838, %v830
    %v999 = vpack.c.b16 %v847, %v839
    %v1000 = vpack.c.b16 %v848, %v840
    %v1001 = vpack.c.b16 %v849, %v841
    %v1002 = vpack.c.b16 %v850, %v842
    %v1003 = vpack.c.b16 %v851, %v843
    %v1004 = vpack.c.b16 %v852, %v844
    %v1005 = vpack.c.b16 %v853, %v845
    %v1006 = vpack.c.b16 %v854, %v846
    %v1007 = vpack.c.b16 %v863, %v855
    %v1008 = vpack.c.b16 %v864, %v856
    %v1009 = vpack.c.b16 %v865, %v857
    %v1010 = vpack.c.b16 %v866, %v858
    %v1011 = vpack.c.b16 %v867, %v859
    %v1012 = vpack.c.b16 %v868, %v860
    %v1013 = vpack.c.b16 %v869, %v861
    %v1014 = vpack.c.b16 %v870, %v862
    %v1015 = vpack.c.b16 %v879, %v871
    %v1016 = vpack.c.b16 %v880, %v872
    %v1017 = vpack.c.b16 %v881, %v873
    %v1018 = vpack.c.b16 %v882, %v874
    %v1019 = vpack.c.b16 %v883, %v875
    %v1020 = vpack.c.b16 %v884, %v876
    %v1021 = vpack.c.b16 %v885, %v877
    %v1022 = vpack.c.b16 %v886, %v878
    %v1023 = vpack.c.b16 %v895, %v887
    %v1024 = vpack.c.b16 %v896, %v888
    %v1025 = vpack.c.b16 %v897, %v889
    %v1026 = vpack.c.b16 %v898, %v890
    %v1027 = vpack.c.b16 %v899, %v891
    %v1028 = vpack.c.b16 %v900, %v892
    %v1029 = vpack.c.b16 %v901, %v893
    %v1030 = vpack.c.b16 %v902, %v894
    %1159 = vmatprep.subr.bf16.mxu0 %v904
    %1160 = vmatpush1.bf16.msra.mxu0 %v903
    %1161 = vmatprep.subr.bf16.mxu0 %v912
    %1162 = vmatpush1.bf16.msra.mxu0 %v911
    %1163 = vmatprep.subr.bf16.mxu0 %v920
    %1164 = vmatpush1.bf16.msra.mxu0 %v919
    %1165 = vmatprep.subr.bf16.mxu0 %v928
    %1166 = vmatpush1.bf16.msra.mxu0 %v927
    %1167 = vmatprep.subr.bf16.mxu0 %v936
    %1168 = vmatpush1.bf16.msra.mxu0 %v935
    %1169 = vmatprep.subr.bf16.mxu0 %v944
    %1170 = vmatpush1.bf16.msra.mxu0 %v943
    %1171 = vmatprep.subr.bf16.mxu0 %v952
    %1172 = vmatpush1.bf16.msra.mxu0 %v951
    %1173 = vmatprep.subr.bf16.mxu0 %v960
    %1174 = vmatpush1.bf16.msra.mxu0 %v959
    %1175 = vmatprep.subr.bf16.mxu0 %v968
    %1176 = vmatpush1.bf16.msra.mxu0 %v967
    %1177 = vmatprep.subr.bf16.mxu0 %v976
    %1178 = vmatpush1.bf16.msra.mxu0 %v975
    %1179 = vmatprep.subr.bf16.mxu0 %v984
    %1180 = vmatpush1.bf16.msra.mxu0 %v983
    %1181 = vmatprep.subr.bf16.mxu0 %v992
    %1182 = vmatpush1.bf16.msra.mxu0 %v991
    %1183 = vmatprep.subr.bf16.mxu0 %v1000
    %1184 = vmatpush1.bf16.msra.mxu0 %v999
    %1185 = vmatprep.subr.bf16.mxu0 %v1008
    %1186 = vmatpush1.bf16.msra.mxu0 %v1007
    %1187 = vmatprep.subr.bf16.mxu0 %v1016
    %1188 = vmatpush1.bf16.msra.mxu0 %v1015
    %1189 = vmatprep.subr.bf16.mxu0 %v1024
    %1190 = vmatpush1.bf16.msra.mxu0 %v1023
    %1191 = vmatprep.mubr.bf16.mxu0 %v390
    %1192 = vmatmul.mubr.bf16.gmra.mrb[0].mxu0 %v389
    %v1193 = vpop.f32.mrb[0].mxu0
    %v1194 = vadd.f32 0.0, %v1193
    %v1195 = vpop.f32.mrb[0].mxu0
    %v1196 = vadd.f32 0.0, %v1195
    %v1197 = vpop.f32.mrb[0].mxu0
    %v1198 = vpop.f32.mrb[0].mxu0
    %1199 = vdwg.mxu0
    %1200 = vmatprep.subr.bf16.mxu0 %v906
    %1201 = vmatpush1.bf16.msra.mxu0 %v905
    %1202 = vmatprep.subr.bf16.mxu0 %v914
    %1203 = vmatpush1.bf16.msra.mxu0 %v913
    %1204 = vmatprep.subr.bf16.mxu0 %v922
    %1205 = vmatpush1.bf16.msra.mxu0 %v921
    %1206 = vmatprep.subr.bf16.mxu0 %v930
    %1207 = vmatpush1.bf16.msra.mxu0 %v929
    %1208 = vmatprep.subr.bf16.mxu0 %v938
    %1209 = vmatpush1.bf16.msra.mxu0 %v937
    %1210 = vmatprep.subr.bf16.mxu0 %v946
    %1211 = vmatpush1.bf16.msra.mxu0 %v945
    %1212 = vmatprep.subr.bf16.mxu0 %v954
    %1213 = vmatpush1.bf16.msra.mxu0 %v953
    %1214 = vmatprep.subr.bf16.mxu0 %v962
    %1215 = vmatpush1.bf16.msra.mxu0 %v961
    %1216 = vmatprep.subr.bf16.mxu0 %v970
    %1217 = vmatpush1.bf16.msra.mxu0 %v969
    %1218 = vmatprep.subr.bf16.mxu0 %v978
    %1219 = vmatpush1.bf16.msra.mxu0 %v977
    %1220 = vmatprep.subr.bf16.mxu0 %v986
    %1221 = vmatpush1.bf16.msra.mxu0 %v985
    %1222 = vmatprep.subr.bf16.mxu0 %v994
    %1223 = vmatpush1.bf16.msra.mxu0 %v993
    %1224 = vmatprep.subr.bf16.mxu0 %v1002
    %1225 = vmatpush1.bf16.msra.mxu0 %v1001
    %1226 = vmatprep.subr.bf16.mxu0 %v1010
    %1227 = vmatpush1.bf16.msra.mxu0 %v1009
    %1228 = vmatprep.subr.bf16.mxu0 %v1018
    %1229 = vmatpush1.bf16.msra.mxu0 %v1017
    %1230 = vmatprep.subr.bf16.mxu0 %v1026
    %1231 = vmatpush1.bf16.msra.mxu0 %v1025
    %1232 = vmatprep.mubr.bf16.mxu0 %v390
    %1233 = vmatmul.mubr.bf16.gmra.mrb[0].mxu0 %v389
    %v1234 = vpop.f32.mrb[0].mxu0
    %v1235 = vadd.f32 0.0, %v1234
    %v1236 = vpop.f32.mrb[0].mxu0
    %v1237 = vadd.f32 0.0, %v1236
    %v1238 = vpop.f32.mrb[0].mxu0
    %v1239 = vpop.f32.mrb[0].mxu0
    %1240 = vdwg.mxu0
    %1241 = vmatprep.subr.bf16.mxu0 %v908
    %1242 = vmatpush1.bf16.msra.mxu0 %v907
    %1243 = vmatprep.subr.bf16.mxu0 %v916
    %1244 = vmatpush1.bf16.msra.mxu0 %v915
    %1245 = vmatprep.subr.bf16.mxu0 %v924
    %1246 = vmatpush1.bf16.msra.mxu0 %v923
    %1247 = vmatprep.subr.bf16.mxu0 %v932
    %1248 = vmatpush1.bf16.msra.mxu0 %v931
    %1249 = vmatprep.subr.bf16.mxu0 %v940
    %1250 = vmatpush1.bf16.msra.mxu0 %v939
    %1251 = vmatprep.subr.bf16.mxu0 %v948
    %1252 = vmatpush1.bf16.msra.mxu0 %v947
    %1253 = vmatprep.subr.bf16.mxu0 %v956
    %1254 = vmatpush1.bf16.msra.mxu0 %v955
    %1255 = vmatprep.subr.bf16.mxu0 %v964
    %1256 = vmatpush1.bf16.msra.mxu0 %v963
    %1257 = vmatprep.subr.bf16.mxu0 %v972
    %1258 = vmatpush1.bf16.msra.mxu0 %v971
    %1259 = vmatprep.subr.bf16.mxu0 %v980
    %1260 = vmatpush1.bf16.msra.mxu0 %v979
    %1261 = vmatprep.subr.bf16.mxu0 %v988
    %1262 = vmatpush1.bf16.msra.mxu0 %v987
    %1263 = vmatprep.subr.bf16.mxu0 %v996
    %1264 = vmatpush1.bf16.msra.mxu0 %v995
    %1265 = vmatprep.subr.bf16.mxu0 %v1004
    %1266 = vmatpush1.bf16.msra.mxu0 %v1003
    %1267 = vmatprep.subr.bf16.mxu0 %v1012
    %1268 = vmatpush1.bf16.msra.mxu0 %v1011
    %1269 = vmatprep.subr.bf16.mxu0 %v1020
    %1270 = vmatpush1.bf16.msra.mxu0 %v1019
    %1271 = vmatprep.subr.bf16.mxu0 %v1028
    %1272 = vmatpush1.bf16.msra.mxu0 %v1027
    %1273 = vmatprep.mubr.bf16.mxu0 %v390
    %1274 = vmatmul.mubr.bf16.gmra.mrb[0].mxu0 %v389
    %v1275 = vpop.f32.mrb[0].mxu0
    %v1276 = vadd.f32 0.0, %v1275
    %v1277 = vpop.f32.mrb[0].mxu0
    %v1278 = vadd.f32 0.0, %v1277
    %v1279 = vpop.f32.mrb[0].mxu0
    %v1280 = vpop.f32.mrb[0].mxu0
    %1281 = vdwg.mxu0
    %1282 = vmatprep.subr.bf16.mxu0 %v910
    %1283 = vmatpush1.bf16.msra.mxu0 %v909
    %1284 = vmatprep.subr.bf16.mxu0 %v918
    %1285 = vmatpush1.bf16.msra.mxu0 %v917
    %1286 = vmatprep.subr.bf16.mxu0 %v926
    %1287 = vmatpush1.bf16.msra.mxu0 %v925
    %1288 = vmatprep.subr.bf16.mxu0 %v934
    %1289 = vmatpush1.bf16.msra.mxu0 %v933
    %1290 = vmatprep.subr.bf16.mxu0 %v942
    %1291 = vmatpush1.bf16.msra.mxu0 %v941
    %1292 = vmatprep.subr.bf16.mxu0 %v950
    %1293 = vmatpush1.bf16.msra.mxu0 %v949
    %1294 = vmatprep.subr.bf16.mxu0 %v958
    %1295 = vmatpush1.bf16.msra.mxu0 %v957
    %1296 = vmatprep.subr.bf16.mxu0 %v966
    %1297 = vmatpush1.bf16.msra.mxu0 %v965
    %1298 = vmatprep.subr.bf16.mxu0 %v974
    %1299 = vmatpush1.bf16.msra.mxu0 %v973
    %1300 = vmatprep.subr.bf16.mxu0 %v982
    %1301 = vmatpush1.bf16.msra.mxu0 %v981
    %1302 = vmatprep.subr.bf16.mxu0 %v990
    %1303 = vmatpush1.bf16.msra.mxu0 %v989
    %1304 = vmatprep.subr.bf16.mxu0 %v998
    %1305 = vmatpush1.bf16.msra.mxu0 %v997
    %1306 = vmatprep.subr.bf16.mxu0 %v1006
    %1307 = vmatpush1.bf16.msra.mxu0 %v1005
    %1308 = vmatprep.subr.bf16.mxu0 %v1014
    %1309 = vmatpush1.bf16.msra.mxu0 %v1013
    %1310 = vmatprep.subr.bf16.mxu0 %v1022
    %1311 = vmatpush1.bf16.msra.mxu0 %v1021
    %1312 = vmatprep.subr.bf16.mxu0 %v1030
    %1313 = vmatpush1.bf16.msra.mxu0 %v1029
    %1314 = vmatprep.mubr.bf16.mxu0 %v390
    %1315 = vmatmul.mubr.bf16.gmra.mrb[0].mxu0 %v389
    %v1316 = vpop.f32.mrb[0].mxu0
    %v1317 = vadd.f32 0.0, %v1316
    %v1318 = vpop.f32.mrb[0].mxu0
    %v1319 = vadd.f32 0.0, %v1318
    %v1320 = vpop.f32.mrb[0].mxu0
    %v1321 = vpop.f32.mrb[0].mxu0
    %1322 = vdwg.mxu0
    %v1323 = vld [vmem:[#allocation2 + $0x20] sm:$0xff]
    %v1324 = vld [vmem:[#allocation2 + $0x28] sm:$0xff]
    %v1325 = vld [vmem:[#allocation2 + $0x30] sm:$0xff]
    %v1326 = vld [vmem:[#allocation2 + $0x38] sm:$0xff]
    %v1327 = vadd.f32 %v1194, %v1323
    %v1328 = vadd.f32 %v1196, %v1324
    %v1329 = vadd.f32 %v1235, %v1325
    %v1330 = vadd.f32 %v1237, %v1326
    %v1331 = vxor.u32 %v1327, 2147483648
    %v1332 = vxor.u32 %v1328, 2147483648
    %v1333 = vxor.u32 %v1329, 2147483648
    %v1334 = vxor.u32 %v1330, 2147483648
    %v1335 = vmul.f32 %v1331, 1.442695
    %v1336 = vpow.pop %v1335
    %v1337 = vmul.f32 %v1332, 1.442695
    %v1338 = vpow.pop %v1337
    %v1339 = vmul.f32 %v1333, 1.442695
    %v1340 = vpow.pop %v1339
    %v1341 = vmul.f32 %v1334, 1.442695
    %v1342 = vpow.pop %v1341
    %v1343 = vadd.f32 %v1336, 1.0
    %v1344 = vadd.f32 %v1338, 1.0
    %v1345 = vadd.f32 %v1340, 1.0
    %v1346 = vadd.f32 %v1342, 1.0
    %v1347 = vrcp.pop %v1343
    %v1348 = vmul.f32 1.0, %v1347
    %v1349 = vrcp.pop %v1344
    %v1350 = vmul.f32 1.0, %v1349
    %v1351 = vrcp.pop %v1345
    %v1352 = vmul.f32 1.0, %v1351
    %v1353 = vrcp.pop %v1346
    %v1354 = vmul.f32 1.0, %v1353
    %v1355 = vadd.f32 %v1276, %v337
    %v1356 = vadd.f32 %v1278, %v341
    %v1357 = vadd.f32 %v1317, %v345
    %v1358 = vadd.f32 %v1319, %v349
    %v1359 = vxor.u32 %v1355, 2147483648
    %v1360 = vxor.u32 %v1356, 2147483648
    %v1361 = vxor.u32 %v1357, 2147483648
    %v1362 = vxor.u32 %v1358, 2147483648
    %v1363 = vmul.f32 %v1359, 1.442695
    %v1364 = vpow.pop %v1363
    %v1365 = vmul.f32 %v1360, 1.442695
    %v1366 = vpow.pop %v1365
    %v1367 = vmul.f32 %v1361, 1.442695
    %v1368 = vpow.pop %v1367
    %v1369 = vmul.f32 %v1362, 1.442695
    %v1370 = vpow.pop %v1369
    %v1371 = vadd.f32 %v1364, 1.0
    %v1372 = vadd.f32 %v1366, 1.0
    %v1373 = vadd.f32 %v1368, 1.0
    %v1374 = vadd.f32 %v1370, 1.0
    %v1375 = vrcp.pop %v1371
    %v1376 = vmul.f32 1.0, %v1375
    %v1377 = vrcp.pop %v1372
    %v1378 = vmul.f32 1.0, %v1377
    %v1379 = vrcp.pop %v1373
    %v1380 = vmul.f32 1.0, %v1379
    %v1381 = vrcp.pop %v1374
    %v1382 = vmul.f32 1.0, %v1381
    %v1383 = vmul.f32 %v1382, 2.0
    %v1384 = vsub.f32 %v1383, 1.0
    %v1385 = vmul.f32 %v1378, 0.0
    %v1386 = vmul.f32 %v1376, %v1384
    %v1387 = vadd.f32 %v1385, %v1386
    %v1388 = vtanh.pop %v1387
    %v1389 = vmul.f32 %v1380, %v1388
    %v1390 = vmul.f32 %v1354, 2.0
    %v1391 = vsub.f32 %v1390, 1.0
    %v1392 = vmul.f32 %v1350, %v386
    %v1393 = vmul.f32 %v1348, %v1391
    %v1394 = vadd.f32 %v1392, %v1393
    %v1395 = vtanh.pop %v1394
    %v1396 = vmul.f32 %v1352, %v1395
    %v1397 = vpack.c.bf16 %v1396, %v1396
    %v1398 = vpack.c.bf16 %v1389, %v1389
    %1399 = vmatprep.subr.bf16.mxu0 %v904
    %1400 = vmatpush1.bf16.msra.mxu0 %v903
    %1401 = vmatprep.subr.bf16.mxu0 %v912
    %1402 = vmatpush1.bf16.msra.mxu0 %v911
    %1403 = vmatprep.subr.bf16.mxu0 %v920
    %1404 = vmatpush1.bf16.msra.mxu0 %v919
    %1405 = vmatprep.subr.bf16.mxu0 %v928
    %1406 = vmatpush1.bf16.msra.mxu0 %v927
    %1407 = vmatprep.subr.bf16.mxu0 %v936
    %1408 = vmatpush1.bf16.msra.mxu0 %v935
    %1409 = vmatprep.subr.bf16.mxu0 %v944
    %1410 = vmatpush1.bf16.msra.mxu0 %v943
    %1411 = vmatprep.subr.bf16.mxu0 %v952
    %1412 = vmatpush1.bf16.msra.mxu0 %v951
    %1413 = vmatprep.subr.bf16.mxu0 %v960
    %1414 = vmatpush1.bf16.msra.mxu0 %v959
    %1415 = vmatprep.subr.bf16.mxu0 %v968
    %1416 = vmatpush1.bf16.msra.mxu0 %v967
    %1417 = vmatprep.subr.bf16.mxu0 %v976
    %1418 = vmatpush1.bf16.msra.mxu0 %v975
    %1419 = vmatprep.subr.bf16.mxu0 %v984
    %1420 = vmatpush1.bf16.msra.mxu0 %v983
    %1421 = vmatprep.subr.bf16.mxu0 %v992
    %1422 = vmatpush1.bf16.msra.mxu0 %v991
    %1423 = vmatprep.subr.bf16.mxu0 %v1000
    %1424 = vmatpush1.bf16.msra.mxu0 %v999
    %1425 = vmatprep.subr.bf16.mxu0 %v1008
    %1426 = vmatpush1.bf16.msra.mxu0 %v1007
    %1427 = vmatprep.subr.bf16.mxu0 %v1016
    %1428 = vmatpush1.bf16.msra.mxu0 %v1015
    %1429 = vmatprep.subr.bf16.mxu0 %v1024
    %1430 = vmatpush1.bf16.msra.mxu0 %v1023
    %1431 = vmatprep.mubr.bf16.mxu0 %v1398
    %1432 = vmatmul.mubr.bf16.gmra.mrb[0].mxu0 %v1397
    %v1433 = vpop.f32.mrb[0].mxu0
    %v1434 = vadd.f32 0.0, %v1433
    %v1435 = vpop.f32.mrb[0].mxu0
    %v1436 = vadd.f32 0.0, %v1435
    %v1437 = vpop.f32.mrb[0].mxu0
    %v1438 = vpop.f32.mrb[0].mxu0
    %1439 = vdwg.mxu0
    %1440 = vmatprep.subr.bf16.mxu0 %v906
    %1441 = vmatpush1.bf16.msra.mxu0 %v905
    %1442 = vmatprep.subr.bf16.mxu0 %v914
    %1443 = vmatpush1.bf16.msra.mxu0 %v913
    %1444 = vmatprep.subr.bf16.mxu0 %v922
    %1445 = vmatpush1.bf16.msra.mxu0 %v921
    %1446 = vmatprep.subr.bf16.mxu0 %v930
    %1447 = vmatpush1.bf16.msra.mxu0 %v929
    %1448 = vmatprep.subr.bf16.mxu0 %v938
    %1449 = vmatpush1.bf16.msra.mxu0 %v937
    %1450 = vmatprep.subr.bf16.mxu0 %v946
    %1451 = vmatpush1.bf16.msra.mxu0 %v945
    %1452 = vmatprep.subr.bf16.mxu0 %v954
    %1453 = vmatpush1.bf16.msra.mxu0 %v953
    %1454 = vmatprep.subr.bf16.mxu0 %v962
    %1455 = vmatpush1.bf16.msra.mxu0 %v961
    %1456 = vmatprep.subr.bf16.mxu0 %v970
    %1457 = vmatpush1.bf16.msra.mxu0 %v969
    %1458 = vmatprep.subr.bf16.mxu0 %v978
    %1459 = vmatpush1.bf16.msra.mxu0 %v977
    %1460 = vmatprep.subr.bf16.mxu0 %v986
    %1461 = vmatpush1.bf16.msra.mxu0 %v985
    %1462 = vmatprep.subr.bf16.mxu0 %v994
    %1463 = vmatpush1.bf16.msra.mxu0 %v993
    %1464 = vmatprep.subr.bf16.mxu0 %v1002
    %1465 = vmatpush1.bf16.msra.mxu0 %v1001
    %1466 = vmatprep.subr.bf16.mxu0 %v1010
    %1467 = vmatpush1.bf16.msra.mxu0 %v1009
    %1468 = vmatprep.subr.bf16.mxu0 %v1018
    %1469 = vmatpush1.bf16.msra.mxu0 %v1017
    %1470 = vmatprep.subr.bf16.mxu0 %v1026
    %1471 = vmatpush1.bf16.msra.mxu0 %v1025
    %1472 = vmatprep.mubr.bf16.mxu0 %v1398
    %1473 = vmatmul.mubr.bf16.gmra.mrb[0].mxu0 %v1397
    %v1474 = vpop.f32.mrb[0].mxu0
    %v1475 = vadd.f32 0.0, %v1474
    %v1476 = vpop.f32.mrb[0].mxu0
    %v1477 = vadd.f32 0.0, %v1476
    %v1478 = vpop.f32.mrb[0].mxu0
    %v1479 = vpop.f32.mrb[0].mxu0
    %1480 = vdwg.mxu0
    %1481 = vmatprep.subr.bf16.mxu0 %v908
    %1482 = vmatpush1.bf16.msra.mxu0 %v907
    %1483 = vmatprep.subr.bf16.mxu0 %v916
    %1484 = vmatpush1.bf16.msra.mxu0 %v915
    %1485 = vmatprep.subr.bf16.mxu0 %v924
    %1486 = vmatpush1.bf16.msra.mxu0 %v923
    %1487 = vmatprep.subr.bf16.mxu0 %v932
    %1488 = vmatpush1.bf16.msra.mxu0 %v931
    %1489 = vmatprep.subr.bf16.mxu0 %v940
    %1490 = vmatpush1.bf16.msra.mxu0 %v939
    %1491 = vmatprep.subr.bf16.mxu0 %v948
    %1492 = vmatpush1.bf16.msra.mxu0 %v947
    %1493 = vmatprep.subr.bf16.mxu0 %v956
    %1494 = vmatpush1.bf16.msra.mxu0 %v955
    %1495 = vmatprep.subr.bf16.mxu0 %v964
    %1496 = vmatpush1.bf16.msra.mxu0 %v963
    %1497 = vmatprep.subr.bf16.mxu0 %v972
    %1498 = vmatpush1.bf16.msra.mxu0 %v971
    %1499 = vmatprep.subr.bf16.mxu0 %v980
    %1500 = vmatpush1.bf16.msra.mxu0 %v979
    %1501 = vmatprep.subr.bf16.mxu0 %v988
    %1502 = vmatpush1.bf16.msra.mxu0 %v987
    %1503 = vmatprep.subr.bf16.mxu0 %v996
    %1504 = vmatpush1.bf16.msra.mxu0 %v995
    %1505 = vmatprep.subr.bf16.mxu0 %v1004
    %1506 = vmatpush1.bf16.msra.mxu0 %v1003
    %1507 = vmatprep.subr.bf16.mxu0 %v1012
    %1508 = vmatpush1.bf16.msra.mxu0 %v1011
    %1509 = vmatprep.subr.bf16.mxu0 %v1020
    %1510 = vmatpush1.bf16.msra.mxu0 %v1019
    %1511 = vmatprep.subr.bf16.mxu0 %v1028
    %1512 = vmatpush1.bf16.msra.mxu0 %v1027
    %1513 = vmatprep.mubr.bf16.mxu0 %v1398
    %1514 = vmatmul.mubr.bf16.gmra.mrb[0].mxu0 %v1397
    %v1515 = vpop.f32.mrb[0].mxu0
    %v1516 = vadd.f32 0.0, %v1515
    %v1517 = vpop.f32.mrb[0].mxu0
    %v1518 = vadd.f32 0.0, %v1517
    %v1519 = vpop.f32.mrb[0].mxu0
    %v1520 = vpop.f32.mrb[0].mxu0
    %1521 = vdwg.mxu0
    %1522 = vmatprep.subr.bf16.mxu0 %v910
    %1523 = vmatpush1.bf16.msra.mxu0 %v909
    %1524 = vmatprep.subr.bf16.mxu0 %v918
    %1525 = vmatpush1.bf16.msra.mxu0 %v917
    %1526 = vmatprep.subr.bf16.mxu0 %v926
    %1527 = vmatpush1.bf16.msra.mxu0 %v925
    %1528 = vmatprep.subr.bf16.mxu0 %v934
    %1529 = vmatpush1.bf16.msra.mxu0 %v933
    %1530 = vmatprep.subr.bf16.mxu0 %v942
    %1531 = vmatpush1.bf16.msra.mxu0 %v941
    %1532 = vmatprep.subr.bf16.mxu0 %v950
    %1533 = vmatpush1.bf16.msra.mxu0 %v949
    %1534 = vmatprep.subr.bf16.mxu0 %v958
    %1535 = vmatpush1.bf16.msra.mxu0 %v957
    %1536 = vmatprep.subr.bf16.mxu0 %v966
    %1537 = vmatpush1.bf16.msra.mxu0 %v965
    %1538 = vmatprep.subr.bf16.mxu0 %v974
    %1539 = vmatpush1.bf16.msra.mxu0 %v973
    %1540 = vmatprep.subr.bf16.mxu0 %v982
    %1541 = vmatpush1.bf16.msra.mxu0 %v981
    %1542 = vmatprep.subr.bf16.mxu0 %v990
    %1543 = vmatpush1.bf16.msra.mxu0 %v989
    %1544 = vmatprep.subr.bf16.mxu0 %v998
    %1545 = vmatpush1.bf16.msra.mxu0 %v997
    %1546 = vmatprep.subr.bf16.mxu0 %v1006
    %1547 = vmatpush1.bf16.msra.mxu0 %v1005
    %1548 = vmatprep.subr.bf16.mxu0 %v1014
    %1549 = vmatpush1.bf16.msra.mxu0 %v1013
    %1550 = vmatprep.subr.bf16.mxu0 %v1022
    %1551 = vmatpush1.bf16.msra.mxu0 %v1021
    %1552 = vmatprep.subr.bf16.mxu0 %v1030
    %1553 = vmatpush1.bf16.msra.mxu0 %v1029
    %1554 = vmatprep.mubr.bf16.mxu0 %v1398
    %1555 = vmatmul.mubr.bf16.gmra.mrb[0].mxu0 %v1397
    %v1556 = vpop.f32.mrb[0].mxu0
    %v1557 = vadd.f32 0.0, %v1556
    %v1558 = vpop.f32.mrb[0].mxu0
    %v1559 = vadd.f32 0.0, %v1558
    %v1560 = vpop.f32.mrb[0].mxu0
    %v1561 = vpop.f32.mrb[0].mxu0
    %1562 = vdwg.mxu0
    %v1563 = vld [vmem:[#allocation2 + $0x40] sm:$0xff]
    %v1564 = vld [vmem:[#allocation2 + $0x48] sm:$0xff]
    %v1565 = vld [vmem:[#allocation2 + $0x50] sm:$0xff]
    %v1566 = vld [vmem:[#allocation2 + $0x58] sm:$0xff]
    %v1567 = vadd.f32 %v1434, %v1563
    %v1568 = vadd.f32 %v1436, %v1564
    %v1569 = vadd.f32 %v1475, %v1565
    %v1570 = vadd.f32 %v1477, %v1566
    %v1571 = vxor.u32 %v1567, 2147483648
    %v1572 = vxor.u32 %v1568, 2147483648
    %v1573 = vxor.u32 %v1569, 2147483648
    %v1574 = vxor.u32 %v1570, 2147483648
    %v1575 = vmul.f32 %v1571, 1.442695
    %v1576 = vpow.pop %v1575
    %v1577 = vmul.f32 %v1572, 1.442695
    %v1578 = vpow.pop %v1577
    %v1579 = vmul.f32 %v1573, 1.442695
    %v1580 = vpow.pop %v1579
    %v1581 = vmul.f32 %v1574, 1.442695
    %v1582 = vpow.pop %v1581
    %v1583 = vadd.f32 %v1576, 1.0
    %v1584 = vadd.f32 %v1578, 1.0
    %v1585 = vadd.f32 %v1580, 1.0
    %v1586 = vadd.f32 %v1582, 1.0
    %v1587 = vrcp.pop %v1583
    %v1588 = vmul.f32 1.0, %v1587
    %v1589 = vrcp.pop %v1584
    %v1590 = vmul.f32 1.0, %v1589
    %v1591 = vrcp.pop %v1585
    %v1592 = vmul.f32 1.0, %v1591
    %v1593 = vrcp.pop %v1586
    %v1594 = vmul.f32 1.0, %v1593
    %v1595 = vadd.f32 %v1516, %v337
    %v1596 = vadd.f32 %v1518, %v341
    %v1597 = vadd.f32 %v1557, %v345
    %v1598 = vadd.f32 %v1559, %v349
    %v1599 = vxor.u32 %v1595, 2147483648
    %v1600 = vxor.u32 %v1596, 2147483648
    %v1601 = vxor.u32 %v1597, 2147483648
    %v1602 = vxor.u32 %v1598, 2147483648
    %v1603 = vmul.f32 %v1599, 1.442695
    %v1604 = vpow.pop %v1603
    %v1605 = vmul.f32 %v1600, 1.442695
    %v1606 = vpow.pop %v1605
    %v1607 = vmul.f32 %v1601, 1.442695
    %v1608 = vpow.pop %v1607
    %v1609 = vmul.f32 %v1602, 1.442695
    %v1610 = vpow.pop %v1609
    %v1611 = vadd.f32 %v1604, 1.0
    %v1612 = vadd.f32 %v1606, 1.0
    %v1613 = vadd.f32 %v1608, 1.0
    %v1614 = vadd.f32 %v1610, 1.0
    %v1615 = vrcp.pop %v1611
    %v1616 = vmul.f32 1.0, %v1615
    %v1617 = vrcp.pop %v1612
    %v1618 = vmul.f32 1.0, %v1617
    %v1619 = vrcp.pop %v1613
    %v1620 = vmul.f32 1.0, %v1619
    %v1621 = vrcp.pop %v1614
    %v1622 = vmul.f32 1.0, %v1621
    %v1623 = vmul.f32 %v1622, 2.0
    %v1624 = vsub.f32 %v1623, 1.0
    %v1625 = vmul.f32 %v1618, %v1387
    %v1626 = vmul.f32 %v1616, %v1624
    %v1627 = vadd.f32 %v1625, %v1626
    %v1628 = vtanh.pop %v1627
    %v1629 = vmul.f32 %v1620, %v1628
    %v1630 = vmul.f32 %v1594, 2.0
    %v1631 = vsub.f32 %v1630, 1.0
    %v1632 = vmul.f32 %v1590, %v1394
    %v1633 = vmul.f32 %v1588, %v1631
    %v1634 = vadd.f32 %v1632, %v1633
    %v1635 = vtanh.pop %v1634
    %v1636 = vmul.f32 %v1592, %v1635
    %v1637 = vpack.c.bf16 %v1636, %v1636
    %v1638 = vpack.c.bf16 %v1629, %v1629
    %1639 = vmatprep.subr.bf16.mxu0 %v904
    %1640 = vmatpush1.bf16.msra.mxu0 %v903
    %1641 = vmatprep.subr.bf16.mxu0 %v912
    %1642 = vmatpush1.bf16.msra.mxu0 %v911
    %1643 = vmatprep.subr.bf16.mxu0 %v920
    %1644 = vmatpush1.bf16.msra.mxu0 %v919
    %1645 = vmatprep.subr.bf16.mxu0 %v928
    %1646 = vmatpush1.bf16.msra.mxu0 %v927
    %1647 = vmatprep.subr.bf16.mxu0 %v936
    %1648 = vmatpush1.bf16.msra.mxu0 %v935
    %1649 = vmatprep.subr.bf16.mxu0 %v944
    %1650 = vmatpush1.bf16.msra.mxu0 %v943
    %1651 = vmatprep.subr.bf16.mxu0 %v952
    %1652 = vmatpush1.bf16.msra.mxu0 %v951
    %1653 = vmatprep.subr.bf16.mxu0 %v960
    %1654 = vmatpush1.bf16.msra.mxu0 %v959
    %1655 = vmatprep.subr.bf16.mxu0 %v968
    %1656 = vmatpush1.bf16.msra.mxu0 %v967
    %1657 = vmatprep.subr.bf16.mxu0 %v976
    %1658 = vmatpush1.bf16.msra.mxu0 %v975
    %1659 = vmatprep.subr.bf16.mxu0 %v984
    %1660 = vmatpush1.bf16.msra.mxu0 %v983
    %1661 = vmatprep.subr.bf16.mxu0 %v992
    %1662 = vmatpush1.bf16.msra.mxu0 %v991
    %1663 = vmatprep.subr.bf16.mxu0 %v1000
    %1664 = vmatpush1.bf16.msra.mxu0 %v999
    %1665 = vmatprep.subr.bf16.mxu0 %v1008
    %1666 = vmatpush1.bf16.msra.mxu0 %v1007
    %1667 = vmatprep.subr.bf16.mxu0 %v1016
    %1668 = vmatpush1.bf16.msra.mxu0 %v1015
    %1669 = vmatprep.subr.bf16.mxu0 %v1024
    %1670 = vmatpush1.bf16.msra.mxu0 %v1023
    %1671 = vmatprep.mubr.bf16.mxu0 %v1638
    %1672 = vmatmul.mubr.bf16.gmra.mrb[0].mxu0 %v1637
    %v1673 = vpop.f32.mrb[0].mxu0
    %v1674 = vadd.f32 0.0, %v1673
    %v1675 = vpop.f32.mrb[0].mxu0
    %v1676 = vadd.f32 0.0, %v1675
    %v1677 = vpop.f32.mrb[0].mxu0
    %v1678 = vpop.f32.mrb[0].mxu0
    %1679 = vdwg.mxu0
    %1680 = vmatprep.subr.bf16.mxu0 %v906
    %1681 = vmatpush1.bf16.msra.mxu0 %v905
    %1682 = vmatprep.subr.bf16.mxu0 %v914
    %1683 = vmatpush1.bf16.msra.mxu0 %v913
    %1684 = vmatprep.subr.bf16.mxu0 %v922
    %1685 = vmatpush1.bf16.msra.mxu0 %v921
    %1686 = vmatprep.subr.bf16.mxu0 %v930
    %1687 = vmatpush1.bf16.msra.mxu0 %v929
    %1688 = vmatprep.subr.bf16.mxu0 %v938
    %1689 = vmatpush1.bf16.msra.mxu0 %v937
    %1690 = vmatprep.subr.bf16.mxu0 %v946
    %1691 = vmatpush1.bf16.msra.mxu0 %v945
    %1692 = vmatprep.subr.bf16.mxu0 %v954
    %1693 = vmatpush1.bf16.msra.mxu0 %v953
    %1694 = vmatprep.subr.bf16.mxu0 %v962
    %1695 = vmatpush1.bf16.msra.mxu0 %v961
    %1696 = vmatprep.subr.bf16.mxu0 %v970
    %1697 = vmatpush1.bf16.msra.mxu0 %v969
    %1698 = vmatprep.subr.bf16.mxu0 %v978
    %1699 = vmatpush1.bf16.msra.mxu0 %v977
    %1700 = vmatprep.subr.bf16.mxu0 %v986
    %1701 = vmatpush1.bf16.msra.mxu0 %v985
    %1702 = vmatprep.subr.bf16.mxu0 %v994
    %1703 = vmatpush1.bf16.msra.mxu0 %v993
    %1704 = vmatprep.subr.bf16.mxu0 %v1002
    %1705 = vmatpush1.bf16.msra.mxu0 %v1001
    %1706 = vmatprep.subr.bf16.mxu0 %v1010
    %1707 = vmatpush1.bf16.msra.mxu0 %v1009
    %1708 = vmatprep.subr.bf16.mxu0 %v1018
    %1709 = vmatpush1.bf16.msra.mxu0 %v1017
    %1710 = vmatprep.subr.bf16.mxu0 %v1026
    %1711 = vmatpush1.bf16.msra.mxu0 %v1025
    %1712 = vmatprep.mubr.bf16.mxu0 %v1638
    %1713 = vmatmul.mubr.bf16.gmra.mrb[0].mxu0 %v1637
    %v1714 = vpop.f32.mrb[0].mxu0
    %v1715 = vadd.f32 0.0, %v1714
    %v1716 = vpop.f32.mrb[0].mxu0
    %v1717 = vadd.f32 0.0, %v1716
    %v1718 = vpop.f32.mrb[0].mxu0
    %v1719 = vpop.f32.mrb[0].mxu0
    %1720 = vdwg.mxu0
    %1721 = vmatprep.subr.bf16.mxu0 %v908
    %1722 = vmatpush1.bf16.msra.mxu0 %v907
    %1723 = vmatprep.subr.bf16.mxu0 %v916
    %1724 = vmatpush1.bf16.msra.mxu0 %v915
    %1725 = vmatprep.subr.bf16.mxu0 %v924
    %1726 = vmatpush1.bf16.msra.mxu0 %v923
    %1727 = vmatprep.subr.bf16.mxu0 %v932
    %1728 = vmatpush1.bf16.msra.mxu0 %v931
    %1729 = vmatprep.subr.bf16.mxu0 %v940
    %1730 = vmatpush1.bf16.msra.mxu0 %v939
    %1731 = vmatprep.subr.bf16.mxu0 %v948
    %1732 = vmatpush1.bf16.msra.mxu0 %v947
    %1733 = vmatprep.subr.bf16.mxu0 %v956
    %1734 = vmatpush1.bf16.msra.mxu0 %v955
    %1735 = vmatprep.subr.bf16.mxu0 %v964
    %1736 = vmatpush1.bf16.msra.mxu0 %v963
    %1737 = vmatprep.subr.bf16.mxu0 %v972
    %1738 = vmatpush1.bf16.msra.mxu0 %v971
    %1739 = vmatprep.subr.bf16.mxu0 %v980
    %1740 = vmatpush1.bf16.msra.mxu0 %v979
    %1741 = vmatprep.subr.bf16.mxu0 %v988
    %1742 = vmatpush1.bf16.msra.mxu0 %v987
    %1743 = vmatprep.subr.bf16.mxu0 %v996
    %1744 = vmatpush1.bf16.msra.mxu0 %v995
    %1745 = vmatprep.subr.bf16.mxu0 %v1004
    %1746 = vmatpush1.bf16.msra.mxu0 %v1003
    %1747 = vmatprep.subr.bf16.mxu0 %v1012
    %1748 = vmatpush1.bf16.msra.mxu0 %v1011
    %1749 = vmatprep.subr.bf16.mxu0 %v1020
    %1750 = vmatpush1.bf16.msra.mxu0 %v1019
    %1751 = vmatprep.subr.bf16.mxu0 %v1028
    %1752 = vmatpush1.bf16.msra.mxu0 %v1027
    %1753 = vmatprep.mubr.bf16.mxu0 %v1638
    %1754 = vmatmul.mubr.bf16.gmra.mrb[0].mxu0 %v1637
    %v1755 = vpop.f32.mrb[0].mxu0
    %v1756 = vadd.f32 0.0, %v1755
    %v1757 = vpop.f32.mrb[0].mxu0
    %v1758 = vadd.f32 0.0, %v1757
    %v1759 = vpop.f32.mrb[0].mxu0
    %v1760 = vpop.f32.mrb[0].mxu0
    %1761 = vdwg.mxu0
    %1762 = vmatprep.subr.bf16.mxu0 %v910
    %1763 = vmatpush1.bf16.msra.mxu0 %v909
    %1764 = vmatprep.subr.bf16.mxu0 %v918
    %1765 = vmatpush1.bf16.msra.mxu0 %v917
    %1766 = vmatprep.subr.bf16.mxu0 %v926
    %1767 = vmatpush1.bf16.msra.mxu0 %v925
    %1768 = vmatprep.subr.bf16.mxu0 %v934
    %1769 = vmatpush1.bf16.msra.mxu0 %v933
    %1770 = vmatprep.subr.bf16.mxu0 %v942
    %1771 = vmatpush1.bf16.msra.mxu0 %v941
    %1772 = vmatprep.subr.bf16.mxu0 %v950
    %1773 = vmatpush1.bf16.msra.mxu0 %v949
    %1774 = vmatprep.subr.bf16.mxu0 %v958
    %1775 = vmatpush1.bf16.msra.mxu0 %v957
    %1776 = vmatprep.subr.bf16.mxu0 %v966
    %1777 = vmatpush1.bf16.msra.mxu0 %v965
    %1778 = vmatprep.subr.bf16.mxu0 %v974
    %1779 = vmatpush1.bf16.msra.mxu0 %v973
    %1780 = vmatprep.subr.bf16.mxu0 %v982
    %1781 = vmatpush1.bf16.msra.mxu0 %v981
    %1782 = vmatprep.subr.bf16.mxu0 %v990
    %1783 = vmatpush1.bf16.msra.mxu0 %v989
    %1784 = vmatprep.subr.bf16.mxu0 %v998
    %1785 = vmatpush1.bf16.msra.mxu0 %v997
    %1786 = vmatprep.subr.bf16.mxu0 %v1006
    %1787 = vmatpush1.bf16.msra.mxu0 %v1005
    %1788 = vmatprep.subr.bf16.mxu0 %v1014
    %1789 = vmatpush1.bf16.msra.mxu0 %v1013
    %1790 = vmatprep.subr.bf16.mxu0 %v1022
    %1791 = vmatpush1.bf16.msra.mxu0 %v1021
    %1792 = vmatprep.subr.bf16.mxu0 %v1030
    %1793 = vmatpush1.bf16.msra.mxu0 %v1029
    %1794 = vmatprep.mubr.bf16.mxu0 %v1638
    %1795 = vmatmul.mubr.bf16.gmra.mrb[0].mxu0 %v1637
    %v1796 = vpop.f32.mrb[0].mxu0
    %v1797 = vadd.f32 0.0, %v1796
    %v1798 = vpop.f32.mrb[0].mxu0
    %v1799 = vadd.f32 0.0, %v1798
    %v1800 = vpop.f32.mrb[0].mxu0
    %v1801 = vpop.f32.mrb[0].mxu0
    %1802 = vdwg.mxu0
    %v1803 = vld [vmem:[#allocation2 + $0x60] sm:$0xff]
    %v1804 = vld [vmem:[#allocation2 + $0x68] sm:$0xff]
    %v1805 = vld [vmem:[#allocation2 + $0x70] sm:$0xff]
    %v1806 = vld [vmem:[#allocation2 + $0x78] sm:$0xff]
    %v1807 = vadd.f32 %v1674, %v1803
    %v1808 = vadd.f32 %v1676, %v1804
    %v1809 = vadd.f32 %v1715, %v1805
    %v1810 = vadd.f32 %v1717, %v1806
    %v1811 = vxor.u32 %v1807, 2147483648
    %v1812 = vxor.u32 %v1808, 2147483648
    %v1813 = vxor.u32 %v1809, 2147483648
    %v1814 = vxor.u32 %v1810, 2147483648
    %v1815 = vmul.f32 %v1811, 1.442695
    %v1816 = vpow.pop %v1815
    %v1817 = vmul.f32 %v1812, 1.442695
    %v1818 = vpow.pop %v1817
    %v1819 = vmul.f32 %v1813, 1.442695
    %v1820 = vpow.pop %v1819
    %v1821 = vmul.f32 %v1814, 1.442695
    %v1822 = vpow.pop %v1821
    %v1823 = vadd.f32 %v1816, 1.0
    %v1824 = vadd.f32 %v1818, 1.0
    %v1825 = vadd.f32 %v1820, 1.0
    %v1826 = vadd.f32 %v1822, 1.0
    %v1827 = vrcp.pop %v1823
    %v1828 = vmul.f32 1.0, %v1827
    %v1829 = vrcp.pop %v1824
    %v1830 = vmul.f32 1.0, %v1829
    %v1831 = vrcp.pop %v1825
    %v1832 = vmul.f32 1.0, %v1831
    %v1833 = vrcp.pop %v1826
    %v1834 = vmul.f32 1.0, %v1833
    %v1835 = vadd.f32 %v1756, %v337
    %v1836 = vadd.f32 %v1758, %v341
    %v1837 = vadd.f32 %v1797, %v345
    %v1838 = vadd.f32 %v1799, %v349
    %v1839 = vxor.u32 %v1835, 2147483648
    %v1840 = vxor.u32 %v1836, 2147483648
    %v1841 = vxor.u32 %v1837, 2147483648
    %v1842 = vxor.u32 %v1838, 2147483648
    %v1843 = vmul.f32 %v1839, 1.442695
    %v1844 = vpow.pop %v1843
    %v1845 = vmul.f32 %v1840, 1.442695
    %v1846 = vpow.pop %v1845
    %v1847 = vmul.f32 %v1841, 1.442695
    %v1848 = vpow.pop %v1847
    %v1849 = vmul.f32 %v1842, 1.442695
    %v1850 = vpow.pop %v1849
    %v1851 = vadd.f32 %v1844, 1.0
    %v1852 = vadd.f32 %v1846, 1.0
    %v1853 = vadd.f32 %v1848, 1.0
    %v1854 = vadd.f32 %v1850, 1.0
    %v1855 = vrcp.pop %v1851
    %v1856 = vmul.f32 1.0, %v1855
    %v1857 = vrcp.pop %v1852
    %v1858 = vmul.f32 1.0, %v1857
    %v1859 = vrcp.pop %v1853
    %v1860 = vmul.f32 1.0, %v1859
    %v1861 = vrcp.pop %v1854
    %v1862 = vmul.f32 1.0, %v1861
    %v1863 = vmul.f32 %v1862, 2.0
    %v1864 = vsub.f32 %v1863, 1.0
    %v1865 = vmul.f32 %v1858, %v1627
    %v1866 = vmul.f32 %v1856, %v1864
    %v1867 = vadd.f32 %v1865, %v1866
    %v1868 = vtanh.pop %v1867
    %v1869 = vmul.f32 %v1860, %v1868
    %v1870 = vmul.f32 %v1834, 2.0
    %v1871 = vsub.f32 %v1870, 1.0
    %v1872 = vmul.f32 %v1830, %v1634
    %v1873 = vmul.f32 %v1828, %v1871
    %v1874 = vadd.f32 %v1872, %v1873
    %v1875 = vtanh.pop %v1874
    %v1876 = vmul.f32 %v1832, %v1875
    %v1877 = vpack.c.bf16 %v1876, %v1876
    %v1878 = vpack.c.bf16 %v1869, %v1869
    %1879 = vmatprep.subr.bf16.mxu0 %v904
    %1880 = vmatpush1.bf16.msra.mxu0 %v903
    %1881 = vmatprep.subr.bf16.mxu0 %v912
    %1882 = vmatpush1.bf16.msra.mxu0 %v911
    %1883 = vmatprep.subr.bf16.mxu0 %v920
    %1884 = vmatpush1.bf16.msra.mxu0 %v919
    %1885 = vmatprep.subr.bf16.mxu0 %v928
    %1886 = vmatpush1.bf16.msra.mxu0 %v927
    %1887 = vmatprep.subr.bf16.mxu0 %v936
    %1888 = vmatpush1.bf16.msra.mxu0 %v935
    %1889 = vmatprep.subr.bf16.mxu0 %v944
    %1890 = vmatpush1.bf16.msra.mxu0 %v943
    %1891 = vmatprep.subr.bf16.mxu0 %v952
    %1892 = vmatpush1.bf16.msra.mxu0 %v951
    %1893 = vmatprep.subr.bf16.mxu0 %v960
    %1894 = vmatpush1.bf16.msra.mxu0 %v959
    %1895 = vmatprep.subr.bf16.mxu0 %v968
    %1896 = vmatpush1.bf16.msra.mxu0 %v967
    %1897 = vmatprep.subr.bf16.mxu0 %v976
    %1898 = vmatpush1.bf16.msra.mxu0 %v975
    %1899 = vmatprep.subr.bf16.mxu0 %v984
    %1900 = vmatpush1.bf16.msra.mxu0 %v983
    %1901 = vmatprep.subr.bf16.mxu0 %v992
    %1902 = vmatpush1.bf16.msra.mxu0 %v991
    %1903 = vmatprep.subr.bf16.mxu0 %v1000
    %1904 = vmatpush1.bf16.msra.mxu0 %v999
    %1905 = vmatprep.subr.bf16.mxu0 %v1008
    %1906 = vmatpush1.bf16.msra.mxu0 %v1007
    %1907 = vmatprep.subr.bf16.mxu0 %v1016
    %1908 = vmatpush1.bf16.msra.mxu0 %v1015
    %1909 = vmatprep.subr.bf16.mxu0 %v1024
    %1910 = vmatpush1.bf16.msra.mxu0 %v1023
    %1911 = vmatprep.mubr.bf16.mxu0 %v1878
    %1912 = vmatmul.mubr.bf16.gmra.mrb[0].mxu0 %v1877
    %v1913 = vpop.f32.mrb[0].mxu0
    %v1914 = vadd.f32 0.0, %v1913
    %v1915 = vpop.f32.mrb[0].mxu0
    %v1916 = vadd.f32 0.0, %v1915
    %v1917 = vpop.f32.mrb[0].mxu0
    %v1918 = vpop.f32.mrb[0].mxu0
    %1919 = vdwg.mxu0
    %1920 = vmatprep.subr.bf16.mxu0 %v906
    %1921 = vmatpush1.bf16.msra.mxu0 %v905
    %1922 = vmatprep.subr.bf16.mxu0 %v914
    %1923 = vmatpush1.bf16.msra.mxu0 %v913
    %1924 = vmatprep.subr.bf16.mxu0 %v922
    %1925 = vmatpush1.bf16.msra.mxu0 %v921
    %1926 = vmatprep.subr.bf16.mxu0 %v930
    %1927 = vmatpush1.bf16.msra.mxu0 %v929
    %1928 = vmatprep.subr.bf16.mxu0 %v938
    %1929 = vmatpush1.bf16.msra.mxu0 %v937
    %1930 = vmatprep.subr.bf16.mxu0 %v946
    %1931 = vmatpush1.bf16.msra.mxu0 %v945
    %1932 = vmatprep.subr.bf16.mxu0 %v954
    %1933 = vmatpush1.bf16.msra.mxu0 %v953
    %1934 = vmatprep.subr.bf16.mxu0 %v962
    %1935 = vmatpush1.bf16.msra.mxu0 %v961
    %1936 = vmatprep.subr.bf16.mxu0 %v970
    %1937 = vmatpush1.bf16.msra.mxu0 %v969
    %1938 = vmatprep.subr.bf16.mxu0 %v978
    %1939 = vmatpush1.bf16.msra.mxu0 %v977
    %1940 = vmatprep.subr.bf16.mxu0 %v986
    %1941 = vmatpush1.bf16.msra.mxu0 %v985
    %1942 = vmatprep.subr.bf16.mxu0 %v994
    %1943 = vmatpush1.bf16.msra.mxu0 %v993
    %1944 = vmatprep.subr.bf16.mxu0 %v1002
    %1945 = vmatpush1.bf16.msra.mxu0 %v1001
    %1946 = vmatprep.subr.bf16.mxu0 %v1010
    %1947 = vmatpush1.bf16.msra.mxu0 %v1009
    %1948 = vmatprep.subr.bf16.mxu0 %v1018
    %1949 = vmatpush1.bf16.msra.mxu0 %v1017
    %1950 = vmatprep.subr.bf16.mxu0 %v1026
    %1951 = vmatpush1.bf16.msra.mxu0 %v1025
    %1952 = vmatprep.mubr.bf16.mxu0 %v1878
    %1953 = vmatmul.mubr.bf16.gmra.mrb[0].mxu0 %v1877
    %v1954 = vpop.f32.mrb[0].mxu0
    %v1955 = vadd.f32 0.0, %v1954
    %v1956 = vpop.f32.mrb[0].mxu0
    %v1957 = vadd.f32 0.0, %v1956
    %v1958 = vpop.f32.mrb[0].mxu0
    %v1959 = vpop.f32.mrb[0].mxu0
    %1960 = vdwg.mxu0
    %1961 = vmatprep.subr.bf16.mxu0 %v908
    %1962 = vmatpush1.bf16.msra.mxu0 %v907
    %1963 = vmatprep.subr.bf16.mxu0 %v916
    %1964 = vmatpush1.bf16.msra.mxu0 %v915
    %1965 = vmatprep.subr.bf16.mxu0 %v924
    %1966 = vmatpush1.bf16.msra.mxu0 %v923
    %1967 = vmatprep.subr.bf16.mxu0 %v932
    %1968 = vmatpush1.bf16.msra.mxu0 %v931
    %1969 = vmatprep.subr.bf16.mxu0 %v940
    %1970 = vmatpush1.bf16.msra.mxu0 %v939
    %1971 = vmatprep.subr.bf16.mxu0 %v948
    %1972 = vmatpush1.bf16.msra.mxu0 %v947
    %1973 = vmatprep.subr.bf16.mxu0 %v956
    %1974 = vmatpush1.bf16.msra.mxu0 %v955
    %1975 = vmatprep.subr.bf16.mxu0 %v964
    %1976 = vmatpush1.bf16.msra.mxu0 %v963
    %1977 = vmatprep.subr.bf16.mxu0 %v972
    %1978 = vmatpush1.bf16.msra.mxu0 %v971
    %1979 = vmatprep.subr.bf16.mxu0 %v980
    %1980 = vmatpush1.bf16.msra.mxu0 %v979
    %1981 = vmatprep.subr.bf16.mxu0 %v988
    %1982 = vmatpush1.bf16.msra.mxu0 %v987
    %1983 = vmatprep.subr.bf16.mxu0 %v996
    %1984 = vmatpush1.bf16.msra.mxu0 %v995
    %1985 = vmatprep.subr.bf16.mxu0 %v1004
    %1986 = vmatpush1.bf16.msra.mxu0 %v1003
    %1987 = vmatprep.subr.bf16.mxu0 %v1012
    %1988 = vmatpush1.bf16.msra.mxu0 %v1011
    %1989 = vmatprep.subr.bf16.mxu0 %v1020
    %1990 = vmatpush1.bf16.msra.mxu0 %v1019
    %1991 = vmatprep.subr.bf16.mxu0 %v1028
    %1992 = vmatpush1.bf16.msra.mxu0 %v1027
    %1993 = vmatprep.mubr.bf16.mxu0 %v1878
    %1994 = vmatmul.mubr.bf16.gmra.mrb[0].mxu0 %v1877
    %v1995 = vpop.f32.mrb[0].mxu0
    %v1996 = vadd.f32 0.0, %v1995
    %v1997 = vpop.f32.mrb[0].mxu0
    %v1998 = vadd.f32 0.0, %v1997
    %v1999 = vpop.f32.mrb[0].mxu0
    %v2000 = vpop.f32.mrb[0].mxu0
    %2001 = vdwg.mxu0
    %2002 = vmatprep.subr.bf16.mxu0 %v910
    %2003 = vmatpush1.bf16.msra.mxu0 %v909
    %2004 = vmatprep.subr.bf16.mxu0 %v918
    %2005 = vmatpush1.bf16.msra.mxu0 %v917
    %2006 = vmatprep.subr.bf16.mxu0 %v926
    %2007 = vmatpush1.bf16.msra.mxu0 %v925
    %2008 = vmatprep.subr.bf16.mxu0 %v934
    %2009 = vmatpush1.bf16.msra.mxu0 %v933
    %2010 = vmatprep.subr.bf16.mxu0 %v942
    %2011 = vmatpush1.bf16.msra.mxu0 %v941
    %2012 = vmatprep.subr.bf16.mxu0 %v950
    %2013 = vmatpush1.bf16.msra.mxu0 %v949
    %2014 = vmatprep.subr.bf16.mxu0 %v958
    %2015 = vmatpush1.bf16.msra.mxu0 %v957
    %2016 = vmatprep.subr.bf16.mxu0 %v966
    %2017 = vmatpush1.bf16.msra.mxu0 %v965
    %2018 = vmatprep.subr.bf16.mxu0 %v974
    %2019 = vmatpush1.bf16.msra.mxu0 %v973
    %2020 = vmatprep.subr.bf16.mxu0 %v982
    %2021 = vmatpush1.bf16.msra.mxu0 %v981
    %2022 = vmatprep.subr.bf16.mxu0 %v990
    %2023 = vmatpush1.bf16.msra.mxu0 %v989
    %2024 = vmatprep.subr.bf16.mxu0 %v998
    %2025 = vmatpush1.bf16.msra.mxu0 %v997
    %2026 = vmatprep.subr.bf16.mxu0 %v1006
    %2027 = vmatpush1.bf16.msra.mxu0 %v1005
    %2028 = vmatprep.subr.bf16.mxu0 %v1014
    %2029 = vmatpush1.bf16.msra.mxu0 %v1013
    %2030 = vmatprep.subr.bf16.mxu0 %v1022
    %2031 = vmatpush1.bf16.msra.mxu0 %v1021
    %2032 = vmatprep.subr.bf16.mxu0 %v1030
    %2033 = vmatpush1.bf16.msra.mxu0 %v1029
    %2034 = vmatprep.mubr.bf16.mxu0 %v1878
    %2035 = vmatmul.mubr.bf16.gmra.mrb[0].mxu0 %v1877
    %v2036 = vpop.f32.mrb[0].mxu0
    %v2037 = vadd.f32 0.0, %v2036
    %v2038 = vpop.f32.mrb[0].mxu0
    %v2039 = vadd.f32 0.0, %v2038
    %v2040 = vpop.f32.mrb[0].mxu0
    %v2041 = vpop.f32.mrb[0].mxu0
    %2042 = vdwg.mxu0
    %v2043 = vld [vmem:[#allocation2 + $0x80] sm:$0xff]
    %v2044 = vld [vmem:[#allocation2 + $0x88] sm:$0xff]
    %v2045 = vld [vmem:[#allocation2 + $0x90] sm:$0xff]
    %v2046 = vld [vmem:[#allocation2 + $0x98] sm:$0xff]
    %v2047 = vadd.f32 %v1914, %v2043
    %v2048 = vadd.f32 %v1916, %v2044
    %v2049 = vadd.f32 %v1955, %v2045
    %v2050 = vadd.f32 %v1957, %v2046
    %v2051 = vxor.u32 %v2047, 2147483648
    %v2052 = vxor.u32 %v2048, 2147483648
    %v2053 = vxor.u32 %v2049, 2147483648
    %v2054 = vxor.u32 %v2050, 2147483648
    %v2055 = vmul.f32 %v2051, 1.442695
    %v2056 = vpow.pop %v2055
    %v2057 = vmul.f32 %v2052, 1.442695
    %v2058 = vpow.pop %v2057
    %v2059 = vmul.f32 %v2053, 1.442695
    %v2060 = vpow.pop %v2059
    %v2061 = vmul.f32 %v2054, 1.442695
    %v2062 = vpow.pop %v2061
    %v2063 = vadd.f32 %v2056, 1.0
    %v2064 = vadd.f32 %v2058, 1.0
    %v2065 = vadd.f32 %v2060, 1.0
    %v2066 = vadd.f32 %v2062, 1.0
    %v2067 = vrcp.pop %v2063
    %v2068 = vmul.f32 1.0, %v2067
    %v2069 = vrcp.pop %v2064
    %v2070 = vmul.f32 1.0, %v2069
    %v2071 = vrcp.pop %v2065
    %v2072 = vmul.f32 1.0, %v2071
    %v2073 = vrcp.pop %v2066
    %v2074 = vmul.f32 1.0, %v2073
    %v2075 = vadd.f32 %v1996, %v337
    %v2076 = vadd.f32 %v1998, %v341
    %v2077 = vadd.f32 %v2037, %v345
    %v2078 = vadd.f32 %v2039, %v349
    %v2079 = vxor.u32 %v2075, 2147483648
    %v2080 = vxor.u32 %v2076, 2147483648
    %v2081 = vxor.u32 %v2077, 2147483648
    %v2082 = vxor.u32 %v2078, 2147483648
    %v2083 = vmul.f32 %v2079, 1.442695
    %v2084 = vpow.pop %v2083
    %v2085 = vmul.f32 %v2080, 1.442695
    %v2086 = vpow.pop %v2085
    %v2087 = vmul.f32 %v2081, 1.442695
    %v2088 = vpow.pop %v2087
    %v2089 = vmul.f32 %v2082, 1.442695
    %v2090 = vpow.pop %v2089
    %v2091 = vadd.f32 %v2084, 1.0
    %v2092 = vadd.f32 %v2086, 1.0
    %v2093 = vadd.f32 %v2088, 1.0
    %v2094 = vadd.f32 %v2090, 1.0
    %v2095 = vrcp.pop %v2091
    %v2096 = vmul.f32 1.0, %v2095
    %v2097 = vrcp.pop %v2092
    %v2098 = vmul.f32 1.0, %v2097
    %v2099 = vrcp.pop %v2093
    %v2100 = vmul.f32 1.0, %v2099
    %v2101 = vrcp.pop %v2094
    %v2102 = vmul.f32 1.0, %v2101
    %v2103 = vmul.f32 %v2102, 2.0
    %v2104 = vsub.f32 %v2103, 1.0
    %v2105 = vmul.f32 %v2098, %v1867
    %v2106 = vmul.f32 %v2096, %v2104
    %v2107 = vadd.f32 %v2105, %v2106
    %v2108 = vtanh.pop %v2107
    %v2109 = vmul.f32 %v2100, %v2108
    %v2110 = vmul.f32 %v2074, 2.0
    %v2111 = vsub.f32 %v2110, 1.0
    %v2112 = vmul.f32 %v2070, %v1874
    %v2113 = vmul.f32 %v2068, %v2111
    %v2114 = vadd.f32 %v2112, %v2113
    %v2115 = vtanh.pop %v2114
    %v2116 = vmul.f32 %v2072, %v2115
    %v2117 = vpack.c.bf16 %v2116, %v2116
    %v2118 = vpack.c.bf16 %v2109, %v2109
    %2119 = vmatprep.subr.bf16.mxu0 %v904
    %2120 = vmatpush1.bf16.msra.mxu0 %v903
    %2121 = vmatprep.subr.bf16.mxu0 %v912
    %2122 = vmatpush1.bf16.msra.mxu0 %v911
    %2123 = vmatprep.subr.bf16.mxu0 %v920
    %2124 = vmatpush1.bf16.msra.mxu0 %v919
    %2125 = vmatprep.subr.bf16.mxu0 %v928
    %2126 = vmatpush1.bf16.msra.mxu0 %v927
    %2127 = vmatprep.subr.bf16.mxu0 %v936
    %2128 = vmatpush1.bf16.msra.mxu0 %v935
    %2129 = vmatprep.subr.bf16.mxu0 %v944
    %2130 = vmatpush1.bf16.msra.mxu0 %v943
    %2131 = vmatprep.subr.bf16.mxu0 %v952
    %2132 = vmatpush1.bf16.msra.mxu0 %v951
    %2133 = vmatprep.subr.bf16.mxu0 %v960
    %2134 = vmatpush1.bf16.msra.mxu0 %v959
    %2135 = vmatprep.subr.bf16.mxu0 %v968
    %2136 = vmatpush1.bf16.msra.mxu0 %v967
    %2137 = vmatprep.subr.bf16.mxu0 %v976
    %2138 = vmatpush1.bf16.msra.mxu0 %v975
    %2139 = vmatprep.subr.bf16.mxu0 %v984
    %2140 = vmatpush1.bf16.msra.mxu0 %v983
    %2141 = vmatprep.subr.bf16.mxu0 %v992
    %2142 = vmatpush1.bf16.msra.mxu0 %v991
    %2143 = vmatprep.subr.bf16.mxu0 %v1000
    %2144 = vmatpush1.bf16.msra.mxu0 %v999
    %2145 = vmatprep.subr.bf16.mxu0 %v1008
    %2146 = vmatpush1.bf16.msra.mxu0 %v1007
    %2147 = vmatprep.subr.bf16.mxu0 %v1016
    %2148 = vmatpush1.bf16.msra.mxu0 %v1015
    %2149 = vmatprep.subr.bf16.mxu0 %v1024
    %2150 = vmatpush1.bf16.msra.mxu0 %v1023
    %2151 = vmatprep.mubr.bf16.mxu0 %v2118
    %2152 = vmatmul.mubr.bf16.gmra.mrb[0].mxu0 %v2117
    %v2153 = vpop.f32.mrb[0].mxu0
    %v2154 = vadd.f32 0.0, %v2153
    %v2155 = vpop.f32.mrb[0].mxu0
    %v2156 = vadd.f32 0.0, %v2155
    %v2157 = vpop.f32.mrb[0].mxu0
    %v2158 = vpop.f32.mrb[0].mxu0
    %2159 = vdwg.mxu0
    %2160 = vmatprep.subr.bf16.mxu0 %v906
    %2161 = vmatpush1.bf16.msra.mxu0 %v905
    %2162 = vmatprep.subr.bf16.mxu0 %v914
    %2163 = vmatpush1.bf16.msra.mxu0 %v913
    %2164 = vmatprep.subr.bf16.mxu0 %v922
    %2165 = vmatpush1.bf16.msra.mxu0 %v921
    %2166 = vmatprep.subr.bf16.mxu0 %v930
    %2167 = vmatpush1.bf16.msra.mxu0 %v929
    %2168 = vmatprep.subr.bf16.mxu0 %v938
    %2169 = vmatpush1.bf16.msra.mxu0 %v937
    %2170 = vmatprep.subr.bf16.mxu0 %v946
    %2171 = vmatpush1.bf16.msra.mxu0 %v945
    %2172 = vmatprep.subr.bf16.mxu0 %v954
    %2173 = vmatpush1.bf16.msra.mxu0 %v953
    %2174 = vmatprep.subr.bf16.mxu0 %v962
    %2175 = vmatpush1.bf16.msra.mxu0 %v961
    %2176 = vmatprep.subr.bf16.mxu0 %v970
    %2177 = vmatpush1.bf16.msra.mxu0 %v969
    %2178 = vmatprep.subr.bf16.mxu0 %v978
    %2179 = vmatpush1.bf16.msra.mxu0 %v977
    %2180 = vmatprep.subr.bf16.mxu0 %v986
    %2181 = vmatpush1.bf16.msra.mxu0 %v985
    %2182 = vmatprep.subr.bf16.mxu0 %v994
    %2183 = vmatpush1.bf16.msra.mxu0 %v993
    %2184 = vmatprep.subr.bf16.mxu0 %v1002
    %2185 = vmatpush1.bf16.msra.mxu0 %v1001
    %2186 = vmatprep.subr.bf16.mxu0 %v1010
    %2187 = vmatpush1.bf16.msra.mxu0 %v1009
    %2188 = vmatprep.subr.bf16.mxu0 %v1018
    %2189 = vmatpush1.bf16.msra.mxu0 %v1017
    %2190 = vmatprep.subr.bf16.mxu0 %v1026
    %2191 = vmatpush1.bf16.msra.mxu0 %v1025
    %2192 = vmatprep.mubr.bf16.mxu0 %v2118
    %2193 = vmatmul.mubr.bf16.gmra.mrb[0].mxu0 %v2117
    %v2194 = vpop.f32.mrb[0].mxu0
    %v2195 = vadd.f32 0.0, %v2194
    %v2196 = vpop.f32.mrb[0].mxu0
    %v2197 = vadd.f32 0.0, %v2196
    %v2198 = vpop.f32.mrb[0].mxu0
    %v2199 = vpop.f32.mrb[0].mxu0
    %2200 = vdwg.mxu0
    %2201 = vmatprep.subr.bf16.mxu0 %v908
    %2202 = vmatpush1.bf16.msra.mxu0 %v907
    %2203 = vmatprep.subr.bf16.mxu0 %v916
    %2204 = vmatpush1.bf16.msra.mxu0 %v915
    %2205 = vmatprep.subr.bf16.mxu0 %v924
    %2206 = vmatpush1.bf16.msra.mxu0 %v923
    %2207 = vmatprep.subr.bf16.mxu0 %v932
    %2208 = vmatpush1.bf16.msra.mxu0 %v931
    %2209 = vmatprep.subr.bf16.mxu0 %v940
    %2210 = vmatpush1.bf16.msra.mxu0 %v939
    %2211 = vmatprep.subr.bf16.mxu0 %v948
    %2212 = vmatpush1.bf16.msra.mxu0 %v947
    %2213 = vmatprep.subr.bf16.mxu0 %v956
    %2214 = vmatpush1.bf16.msra.mxu0 %v955
    %2215 = vmatprep.subr.bf16.mxu0 %v964
    %2216 = vmatpush1.bf16.msra.mxu0 %v963
    %2217 = vmatprep.subr.bf16.mxu0 %v972
    %2218 = vmatpush1.bf16.msra.mxu0 %v971
    %2219 = vmatprep.subr.bf16.mxu0 %v980
    %2220 = vmatpush1.bf16.msra.mxu0 %v979
    %2221 = vmatprep.subr.bf16.mxu0 %v988
    %2222 = vmatpush1.bf16.msra.mxu0 %v987
    %2223 = vmatprep.subr.bf16.mxu0 %v996
    %2224 = vmatpush1.bf16.msra.mxu0 %v995
    %2225 = vmatprep.subr.bf16.mxu0 %v1004
    %2226 = vmatpush1.bf16.msra.mxu0 %v1003
    %2227 = vmatprep.subr.bf16.mxu0 %v1012
    %2228 = vmatpush1.bf16.msra.mxu0 %v1011
    %2229 = vmatprep.subr.bf16.mxu0 %v1020
    %2230 = vmatpush1.bf16.msra.mxu0 %v1019
    %2231 = vmatprep.subr.bf16.mxu0 %v1028
    %2232 = vmatpush1.bf16.msra.mxu0 %v1027
    %2233 = vmatprep.mubr.bf16.mxu0 %v2118
    %2234 = vmatmul.mubr.bf16.gmra.mrb[0].mxu0 %v2117
    %v2235 = vpop.f32.mrb[0].mxu0
    %v2236 = vadd.f32 0.0, %v2235
    %v2237 = vpop.f32.mrb[0].mxu0
    %v2238 = vadd.f32 0.0, %v2237
    %v2239 = vpop.f32.mrb[0].mxu0
    %v2240 = vpop.f32.mrb[0].mxu0
    %2241 = vdwg.mxu0
    %2242 = vmatprep.subr.bf16.mxu0 %v910
    %2243 = vmatpush1.bf16.msra.mxu0 %v909
    %2244 = vmatprep.subr.bf16.mxu0 %v918
    %2245 = vmatpush1.bf16.msra.mxu0 %v917
    %2246 = vmatprep.subr.bf16.mxu0 %v926
    %2247 = vmatpush1.bf16.msra.mxu0 %v925
    %2248 = vmatprep.subr.bf16.mxu0 %v934
    %2249 = vmatpush1.bf16.msra.mxu0 %v933
    %2250 = vmatprep.subr.bf16.mxu0 %v942
    %2251 = vmatpush1.bf16.msra.mxu0 %v941
    %2252 = vmatprep.subr.bf16.mxu0 %v950
    %2253 = vmatpush1.bf16.msra.mxu0 %v949
    %2254 = vmatprep.subr.bf16.mxu0 %v958
    %2255 = vmatpush1.bf16.msra.mxu0 %v957
    %2256 = vmatprep.subr.bf16.mxu0 %v966
    %2257 = vmatpush1.bf16.msra.mxu0 %v965
    %2258 = vmatprep.subr.bf16.mxu0 %v974
    %2259 = vmatpush1.bf16.msra.mxu0 %v973
    %2260 = vmatprep.subr.bf16.mxu0 %v982
    %2261 = vmatpush1.bf16.msra.mxu0 %v981
    %2262 = vmatprep.subr.bf16.mxu0 %v990
    %2263 = vmatpush1.bf16.msra.mxu0 %v989
    %2264 = vmatprep.subr.bf16.mxu0 %v998
    %2265 = vmatpush1.bf16.msra.mxu0 %v997
    %2266 = vmatprep.subr.bf16.mxu0 %v1006
    %2267 = vmatpush1.bf16.msra.mxu0 %v1005
    %2268 = vmatprep.subr.bf16.mxu0 %v1014
    %2269 = vmatpush1.bf16.msra.mxu0 %v1013
    %2270 = vmatprep.subr.bf16.mxu0 %v1022
    %2271 = vmatpush1.bf16.msra.mxu0 %v1021
    %2272 = vmatprep.subr.bf16.mxu0 %v1030
    %2273 = vmatpush1.bf16.msra.mxu0 %v1029
    %2274 = vmatprep.mubr.bf16.mxu0 %v2118
    %2275 = vmatmul.mubr.bf16.gmra.mrb[0].mxu0 %v2117
    %v2276 = vpop.f32.mrb[0].mxu0
    %v2277 = vadd.f32 0.0, %v2276
    %v2278 = vpop.f32.mrb[0].mxu0
    %v2279 = vadd.f32 0.0, %v2278
    %v2280 = vpop.f32.mrb[0].mxu0
    %v2281 = vpop.f32.mrb[0].mxu0
    %2282 = vdwg.mxu0
    %v2283 = vld [vmem:[#allocation2 + $0xa0] sm:$0xff]
    %v2284 = vld [vmem:[#allocation2 + $0xa8] sm:$0xff]
    %v2285 = vld [vmem:[#allocation2 + $0xb0] sm:$0xff]
    %v2286 = vld [vmem:[#allocation2 + $0xb8] sm:$0xff]
    %v2287 = vadd.f32 %v2154, %v2283
    %v2288 = vadd.f32 %v2156, %v2284
    %v2289 = vadd.f32 %v2195, %v2285
    %v2290 = vadd.f32 %v2197, %v2286
    %v2291 = vxor.u32 %v2287, 2147483648
    %v2292 = vxor.u32 %v2288, 2147483648
    %v2293 = vxor.u32 %v2289, 2147483648
    %v2294 = vxor.u32 %v2290, 2147483648
    %v2295 = vmul.f32 %v2291, 1.442695
    %v2296 = vpow.pop %v2295
    %v2297 = vmul.f32 %v2292, 1.442695
    %v2298 = vpow.pop %v2297
    %v2299 = vmul.f32 %v2293, 1.442695
    %v2300 = vpow.pop %v2299
    %v2301 = vmul.f32 %v2294, 1.442695
    %v2302 = vpow.pop %v2301
    %v2303 = vadd.f32 %v2296, 1.0
    %v2304 = vadd.f32 %v2298, 1.0
    %v2305 = vadd.f32 %v2300, 1.0
    %v2306 = vadd.f32 %v2302, 1.0
    %v2307 = vrcp.pop %v2303
    %v2308 = vmul.f32 1.0, %v2307
    %v2309 = vrcp.pop %v2304
    %v2310 = vmul.f32 1.0, %v2309
    %v2311 = vrcp.pop %v2305
    %v2312 = vmul.f32 1.0, %v2311
    %v2313 = vrcp.pop %v2306
    %v2314 = vmul.f32 1.0, %v2313
    %v2315 = vadd.f32 %v2236, %v337
    %v2316 = vadd.f32 %v2238, %v341
    %v2317 = vadd.f32 %v2277, %v345
    %v2318 = vadd.f32 %v2279, %v349
    %v2319 = vxor.u32 %v2315, 2147483648
    %v2320 = vxor.u32 %v2316, 2147483648
    %v2321 = vxor.u32 %v2317, 2147483648
    %v2322 = vxor.u32 %v2318, 2147483648
    %v2323 = vmul.f32 %v2319, 1.442695
    %v2324 = vpow.pop %v2323
    %v2325 = vmul.f32 %v2320, 1.442695
    %v2326 = vpow.pop %v2325
    %v2327 = vmul.f32 %v2321, 1.442695
    %v2328 = vpow.pop %v2327
    %v2329 = vmul.f32 %v2322, 1.442695
    %v2330 = vpow.pop %v2329
    %v2331 = vadd.f32 %v2324, 1.0
    %v2332 = vadd.f32 %v2326, 1.0
    %v2333 = vadd.f32 %v2328, 1.0
    %v2334 = vadd.f32 %v2330, 1.0
    %v2335 = vrcp.pop %v2331
    %v2336 = vmul.f32 1.0, %v2335
    %v2337 = vrcp.pop %v2332
    %v2338 = vmul.f32 1.0, %v2337
    %v2339 = vrcp.pop %v2333
    %v2340 = vmul.f32 1.0, %v2339
    %v2341 = vrcp.pop %v2334
    %v2342 = vmul.f32 1.0, %v2341
    %v2343 = vmul.f32 %v2342, 2.0
    %v2344 = vsub.f32 %v2343, 1.0
    %v2345 = vmul.f32 %v2338, %v2107
    %v2346 = vmul.f32 %v2336, %v2344
    %v2347 = vadd.f32 %v2345, %v2346
    %v2348 = vtanh.pop %v2347
    %v2349 = vmul.f32 %v2340, %v2348
    %v2350 = vmul.f32 %v2314, 2.0
    %v2351 = vsub.f32 %v2350, 1.0
    %v2352 = vmul.f32 %v2310, %v2114
    %v2353 = vmul.f32 %v2308, %v2351
    %v2354 = vadd.f32 %v2352, %v2353
    %v2355 = vtanh.pop %v2354
    %v2356 = vmul.f32 %v2312, %v2355
    %v2357 = vpack.c.bf16 %v2356, %v2356
    %v2358 = vpack.c.bf16 %v2349, %v2349
    %2359 = vmatprep.subr.bf16.mxu0 %v904
    %2360 = vmatpush1.bf16.msra.mxu0 %v903
    %2361 = vmatprep.subr.bf16.mxu0 %v912
    %2362 = vmatpush1.bf16.msra.mxu0 %v911
    %2363 = vmatprep.subr.bf16.mxu0 %v920
    %2364 = vmatpush1.bf16.msra.mxu0 %v919
    %2365 = vmatprep.subr.bf16.mxu0 %v928
    %2366 = vmatpush1.bf16.msra.mxu0 %v927
    %2367 = vmatprep.subr.bf16.mxu0 %v936
    %2368 = vmatpush1.bf16.msra.mxu0 %v935
    %2369 = vmatprep.subr.bf16.mxu0 %v944
    %2370 = vmatpush1.bf16.msra.mxu0 %v943
    %2371 = vmatprep.subr.bf16.mxu0 %v952
    %2372 = vmatpush1.bf16.msra.mxu0 %v951
    %2373 = vmatprep.subr.bf16.mxu0 %v960
    %2374 = vmatpush1.bf16.msra.mxu0 %v959
    %2375 = vmatprep.subr.bf16.mxu0 %v968
    %2376 = vmatpush1.bf16.msra.mxu0 %v967
    %2377 = vmatprep.subr.bf16.mxu0 %v976
    %2378 = vmatpush1.bf16.msra.mxu0 %v975
    %2379 = vmatprep.subr.bf16.mxu0 %v984
    %2380 = vmatpush1.bf16.msra.mxu0 %v983
    %2381 = vmatprep.subr.bf16.mxu0 %v992
    %2382 = vmatpush1.bf16.msra.mxu0 %v991
    %2383 = vmatprep.subr.bf16.mxu0 %v1000
    %2384 = vmatpush1.bf16.msra.mxu0 %v999
    %2385 = vmatprep.subr.bf16.mxu0 %v1008
    %2386 = vmatpush1.bf16.msra.mxu0 %v1007
    %2387 = vmatprep.subr.bf16.mxu0 %v1016
    %2388 = vmatpush1.bf16.msra.mxu0 %v1015
    %2389 = vmatprep.subr.bf16.mxu0 %v1024
    %2390 = vmatpush1.bf16.msra.mxu0 %v1023
    %2391 = vmatprep.mubr.bf16.mxu0 %v2358
    %2392 = vmatmul.mubr.bf16.gmra.mrb[0].mxu0 %v2357
    %v2393 = vpop.f32.mrb[0].mxu0
    %v2394 = vadd.f32 0.0, %v2393
    %v2395 = vpop.f32.mrb[0].mxu0
    %v2396 = vadd.f32 0.0, %v2395
    %v2397 = vpop.f32.mrb[0].mxu0
    %v2398 = vpop.f32.mrb[0].mxu0
    %2399 = vdwg.mxu0
    %2400 = vmatprep.subr.bf16.mxu0 %v906
    %2401 = vmatpush1.bf16.msra.mxu0 %v905
    %2402 = vmatprep.subr.bf16.mxu0 %v914
    %2403 = vmatpush1.bf16.msra.mxu0 %v913
    %2404 = vmatprep.subr.bf16.mxu0 %v922
    %2405 = vmatpush1.bf16.msra.mxu0 %v921
    %2406 = vmatprep.subr.bf16.mxu0 %v930
    %2407 = vmatpush1.bf16.msra.mxu0 %v929
    %2408 = vmatprep.subr.bf16.mxu0 %v938
    %2409 = vmatpush1.bf16.msra.mxu0 %v937
    %2410 = vmatprep.subr.bf16.mxu0 %v946
    %2411 = vmatpush1.bf16.msra.mxu0 %v945
    %2412 = vmatprep.subr.bf16.mxu0 %v954
    %2413 = vmatpush1.bf16.msra.mxu0 %v953
    %2414 = vmatprep.subr.bf16.mxu0 %v962
    %2415 = vmatpush1.bf16.msra.mxu0 %v961
    %2416 = vmatprep.subr.bf16.mxu0 %v970
    %2417 = vmatpush1.bf16.msra.mxu0 %v969
    %2418 = vmatprep.subr.bf16.mxu0 %v978
    %2419 = vmatpush1.bf16.msra.mxu0 %v977
    %2420 = vmatprep.subr.bf16.mxu0 %v986
    %2421 = vmatpush1.bf16.msra.mxu0 %v985
    %2422 = vmatprep.subr.bf16.mxu0 %v994
    %2423 = vmatpush1.bf16.msra.mxu0 %v993
    %2424 = vmatprep.subr.bf16.mxu0 %v1002
    %2425 = vmatpush1.bf16.msra.mxu0 %v1001
    %2426 = vmatprep.subr.bf16.mxu0 %v1010
    %2427 = vmatpush1.bf16.msra.mxu0 %v1009
    %2428 = vmatprep.subr.bf16.mxu0 %v1018
    %2429 = vmatpush1.bf16.msra.mxu0 %v1017
    %2430 = vmatprep.subr.bf16.mxu0 %v1026
    %2431 = vmatpush1.bf16.msra.mxu0 %v1025
    %2432 = vmatprep.mubr.bf16.mxu0 %v2358
    %2433 = vmatmul.mubr.bf16.gmra.mrb[0].mxu0 %v2357
    %v2434 = vpop.f32.mrb[0].mxu0
    %v2435 = vadd.f32 0.0, %v2434
    %v2436 = vpop.f32.mrb[0].mxu0
    %v2437 = vadd.f32 0.0, %v2436
    %v2438 = vpop.f32.mrb[0].mxu0
    %v2439 = vpop.f32.mrb[0].mxu0
    %2440 = vdwg.mxu0
    %2441 = vmatprep.subr.bf16.mxu0 %v908
    %2442 = vmatpush1.bf16.msra.mxu0 %v907
    %2443 = vmatprep.subr.bf16.mxu0 %v916
    %2444 = vmatpush1.bf16.msra.mxu0 %v915
    %2445 = vmatprep.subr.bf16.mxu0 %v924
    %2446 = vmatpush1.bf16.msra.mxu0 %v923
    %2447 = vmatprep.subr.bf16.mxu0 %v932
    %2448 = vmatpush1.bf16.msra.mxu0 %v931
    %2449 = vmatprep.subr.bf16.mxu0 %v940
    %2450 = vmatpush1.bf16.msra.mxu0 %v939
    %2451 = vmatprep.subr.bf16.mxu0 %v948
    %2452 = vmatpush1.bf16.msra.mxu0 %v947
    %2453 = vmatprep.subr.bf16.mxu0 %v956
    %2454 = vmatpush1.bf16.msra.mxu0 %v955
    %2455 = vmatprep.subr.bf16.mxu0 %v964
    %2456 = vmatpush1.bf16.msra.mxu0 %v963
    %2457 = vmatprep.subr.bf16.mxu0 %v972
    %2458 = vmatpush1.bf16.msra.mxu0 %v971
    %2459 = vmatprep.subr.bf16.mxu0 %v980
    %2460 = vmatpush1.bf16.msra.mxu0 %v979
    %2461 = vmatprep.subr.bf16.mxu0 %v988
    %2462 = vmatpush1.bf16.msra.mxu0 %v987
    %2463 = vmatprep.subr.bf16.mxu0 %v996
    %2464 = vmatpush1.bf16.msra.mxu0 %v995
    %2465 = vmatprep.subr.bf16.mxu0 %v1004
    %2466 = vmatpush1.bf16.msra.mxu0 %v1003
    %2467 = vmatprep.subr.bf16.mxu0 %v1012
    %2468 = vmatpush1.bf16.msra.mxu0 %v1011
    %2469 = vmatprep.subr.bf16.mxu0 %v1020
    %2470 = vmatpush1.bf16.msra.mxu0 %v1019
    %2471 = vmatprep.subr.bf16.mxu0 %v1028
    %2472 = vmatpush1.bf16.msra.mxu0 %v1027
    %2473 = vmatprep.mubr.bf16.mxu0 %v2358
    %2474 = vmatmul.mubr.bf16.gmra.mrb[0].mxu0 %v2357
    %v2475 = vpop.f32.mrb[0].mxu0
    %v2476 = vadd.f32 0.0, %v2475
    %v2477 = vpop.f32.mrb[0].mxu0
    %v2478 = vadd.f32 0.0, %v2477
    %v2479 = vpop.f32.mrb[0].mxu0
    %v2480 = vpop.f32.mrb[0].mxu0
    %2481 = vdwg.mxu0
    %2482 = vmatprep.subr.bf16.mxu0 %v910
    %2483 = vmatpush1.bf16.msra.mxu0 %v909
    %2484 = vmatprep.subr.bf16.mxu0 %v918
    %2485 = vmatpush1.bf16.msra.mxu0 %v917
    %2486 = vmatprep.subr.bf16.mxu0 %v926
    %2487 = vmatpush1.bf16.msra.mxu0 %v925
    %2488 = vmatprep.subr.bf16.mxu0 %v934
    %2489 = vmatpush1.bf16.msra.mxu0 %v933
    %2490 = vmatprep.subr.bf16.mxu0 %v942
    %2491 = vmatpush1.bf16.msra.mxu0 %v941
    %2492 = vmatprep.subr.bf16.mxu0 %v950
    %2493 = vmatpush1.bf16.msra.mxu0 %v949
    %2494 = vmatprep.subr.bf16.mxu0 %v958
    %2495 = vmatpush1.bf16.msra.mxu0 %v957
    %2496 = vmatprep.subr.bf16.mxu0 %v966
    %2497 = vmatpush1.bf16.msra.mxu0 %v965
    %2498 = vmatprep.subr.bf16.mxu0 %v974
    %2499 = vmatpush1.bf16.msra.mxu0 %v973
    %2500 = vmatprep.subr.bf16.mxu0 %v982
    %2501 = vmatpush1.bf16.msra.mxu0 %v981
    %2502 = vmatprep.subr.bf16.mxu0 %v990
    %2503 = vmatpush1.bf16.msra.mxu0 %v989
    %2504 = vmatprep.subr.bf16.mxu0 %v998
    %2505 = vmatpush1.bf16.msra.mxu0 %v997
    %2506 = vmatprep.subr.bf16.mxu0 %v1006
    %2507 = vmatpush1.bf16.msra.mxu0 %v1005
    %2508 = vmatprep.subr.bf16.mxu0 %v1014
    %2509 = vmatpush1.bf16.msra.mxu0 %v1013
    %2510 = vmatprep.subr.bf16.mxu0 %v1022
    %2511 = vmatpush1.bf16.msra.mxu0 %v1021
    %2512 = vmatprep.subr.bf16.mxu0 %v1030
    %2513 = vmatpush1.bf16.msra.mxu0 %v1029
    %2514 = vmatprep.mubr.bf16.mxu0 %v2358
    %2515 = vmatmul.mubr.bf16.gmra.mrb[0].mxu0 %v2357
    %v2516 = vpop.f32.mrb[0].mxu0
    %v2517 = vadd.f32 0.0, %v2516
    %v2518 = vpop.f32.mrb[0].mxu0
    %v2519 = vadd.f32 0.0, %v2518
    %v2520 = vpop.f32.mrb[0].mxu0
    %v2521 = vpop.f32.mrb[0].mxu0
    %2522 = vdwg.mxu0
    %v2523 = vld [vmem:[#allocation2 + $0xc0] sm:$0xff]
    %v2524 = vld [vmem:[#allocation2 + $0xc8] sm:$0xff]
    %v2525 = vld [vmem:[#allocation2 + $0xd0] sm:$0xff]
    %v2526 = vld [vmem:[#allocation2 + $0xd8] sm:$0xff]
    %v2527 = vadd.f32 %v2394, %v2523
    %v2528 = vadd.f32 %v2396, %v2524
    %v2529 = vadd.f32 %v2435, %v2525
    %v2530 = vadd.f32 %v2437, %v2526
    %v2531 = vxor.u32 %v2527, 2147483648
    %v2532 = vxor.u32 %v2528, 2147483648
    %v2533 = vxor.u32 %v2529, 2147483648
    %v2534 = vxor.u32 %v2530, 2147483648
    %v2535 = vmul.f32 %v2531, 1.442695
    %v2536 = vpow.pop %v2535
    %v2537 = vmul.f32 %v2532, 1.442695
    %v2538 = vpow.pop %v2537
    %v2539 = vmul.f32 %v2533, 1.442695
    %v2540 = vpow.pop %v2539
    %v2541 = vmul.f32 %v2534, 1.442695
    %v2542 = vpow.pop %v2541
    %v2543 = vadd.f32 %v2536, 1.0
    %v2544 = vadd.f32 %v2538, 1.0
    %v2545 = vadd.f32 %v2540, 1.0
    %v2546 = vadd.f32 %v2542, 1.0
    %v2547 = vrcp.pop %v2543
    %v2548 = vmul.f32 1.0, %v2547
    %v2549 = vrcp.pop %v2544
    %v2550 = vmul.f32 1.0, %v2549
    %v2551 = vrcp.pop %v2545
    %v2552 = vmul.f32 1.0, %v2551
    %v2553 = vrcp.pop %v2546
    %v2554 = vmul.f32 1.0, %v2553
    %v2555 = vadd.f32 %v2476, %v337
    %v2556 = vadd.f32 %v2478, %v341
    %v2557 = vadd.f32 %v2517, %v345
    %v2558 = vadd.f32 %v2519, %v349
    %v2559 = vxor.u32 %v2555, 2147483648
    %v2560 = vxor.u32 %v2556, 2147483648
    %v2561 = vxor.u32 %v2557, 2147483648
    %v2562 = vxor.u32 %v2558, 2147483648
    %v2563 = vmul.f32 %v2559, 1.442695
    %v2564 = vpow.pop %v2563
    %v2565 = vmul.f32 %v2560, 1.442695
    %v2566 = vpow.pop %v2565
    %v2567 = vmul.f32 %v2561, 1.442695
    %v2568 = vpow.pop %v2567
    %v2569 = vmul.f32 %v2562, 1.442695
    %v2570 = vpow.pop %v2569
    %v2571 = vadd.f32 %v2564, 1.0
    %v2572 = vadd.f32 %v2566, 1.0
    %v2573 = vadd.f32 %v2568, 1.0
    %v2574 = vadd.f32 %v2570, 1.0
    %v2575 = vrcp.pop %v2571
    %v2576 = vmul.f32 1.0, %v2575
    %v2577 = vrcp.pop %v2572
    %v2578 = vmul.f32 1.0, %v2577
    %v2579 = vrcp.pop %v2573
    %v2580 = vmul.f32 1.0, %v2579
    %v2581 = vrcp.pop %v2574
    %v2582 = vmul.f32 1.0, %v2581
    %v2583 = vmul.f32 %v2582, 2.0
    %v2584 = vsub.f32 %v2583, 1.0
    %v2585 = vmul.f32 %v2578, %v2347
    %v2586 = vmul.f32 %v2576, %v2584
    %v2587 = vadd.f32 %v2585, %v2586
    %v2588 = vtanh.pop %v2587
    %v2589 = vmul.f32 %v2580, %v2588
    %v2590 = vmul.f32 %v2554, 2.0
    %v2591 = vsub.f32 %v2590, 1.0
    %v2592 = vmul.f32 %v2550, %v2354
    %v2593 = vmul.f32 %v2548, %v2591
    %v2594 = vadd.f32 %v2592, %v2593
    %v2595 = vtanh.pop %v2594
    %v2596 = vmul.f32 %v2552, %v2595
    %v2597 = vpack.c.bf16 %v2596, %v2596
    %v2598 = vpack.c.bf16 %v2589, %v2589
    %2599 = vmatprep.subr.bf16.mxu0 %v904
    %2600 = vmatpush1.bf16.msra.mxu0 %v903
    %2601 = vmatprep.subr.bf16.mxu0 %v912
    %2602 = vmatpush1.bf16.msra.mxu0 %v911
    %2603 = vmatprep.subr.bf16.mxu0 %v920
    %2604 = vmatpush1.bf16.msra.mxu0 %v919
    %2605 = vmatprep.subr.bf16.mxu0 %v928
    %2606 = vmatpush1.bf16.msra.mxu0 %v927
    %2607 = vmatprep.subr.bf16.mxu0 %v936
    %2608 = vmatpush1.bf16.msra.mxu0 %v935
    %2609 = vmatprep.subr.bf16.mxu0 %v944
    %2610 = vmatpush1.bf16.msra.mxu0 %v943
    %2611 = vmatprep.subr.bf16.mxu0 %v952
    %2612 = vmatpush1.bf16.msra.mxu0 %v951
    %2613 = vmatprep.subr.bf16.mxu0 %v960
    %2614 = vmatpush1.bf16.msra.mxu0 %v959
    %2615 = vmatprep.subr.bf16.mxu0 %v968
    %2616 = vmatpush1.bf16.msra.mxu0 %v967
    %2617 = vmatprep.subr.bf16.mxu0 %v976
    %2618 = vmatpush1.bf16.msra.mxu0 %v975
    %2619 = vmatprep.subr.bf16.mxu0 %v984
    %2620 = vmatpush1.bf16.msra.mxu0 %v983
    %2621 = vmatprep.subr.bf16.mxu0 %v992
    %2622 = vmatpush1.bf16.msra.mxu0 %v991
    %2623 = vmatprep.subr.bf16.mxu0 %v1000
    %2624 = vmatpush1.bf16.msra.mxu0 %v999
    %2625 = vmatprep.subr.bf16.mxu0 %v1008
    %2626 = vmatpush1.bf16.msra.mxu0 %v1007
    %2627 = vmatprep.subr.bf16.mxu0 %v1016
    %2628 = vmatpush1.bf16.msra.mxu0 %v1015
    %2629 = vmatprep.subr.bf16.mxu0 %v1024
    %2630 = vmatpush1.bf16.msra.mxu0 %v1023
    %2631 = vmatprep.mubr.bf16.mxu0 %v2598
    %2632 = vmatmul.mubr.bf16.gmra.mrb[0].mxu0 %v2597
    %v2633 = vpop.f32.mrb[0].mxu0
    %v2634 = vadd.f32 0.0, %v2633
    %v2635 = vpop.f32.mrb[0].mxu0
    %v2636 = vadd.f32 0.0, %v2635
    %v2637 = vpop.f32.mrb[0].mxu0
    %v2638 = vpop.f32.mrb[0].mxu0
    %2639 = vdwg.mxu0
    %2640 = vmatprep.subr.bf16.mxu0 %v906
    %2641 = vmatpush1.bf16.msra.mxu0 %v905
    %2642 = vmatprep.subr.bf16.mxu0 %v914
    %2643 = vmatpush1.bf16.msra.mxu0 %v913
    %2644 = vmatprep.subr.bf16.mxu0 %v922
    %2645 = vmatpush1.bf16.msra.mxu0 %v921
    %2646 = vmatprep.subr.bf16.mxu0 %v930
    %2647 = vmatpush1.bf16.msra.mxu0 %v929
    %2648 = vmatprep.subr.bf16.mxu0 %v938
    %2649 = vmatpush1.bf16.msra.mxu0 %v937
    %2650 = vmatprep.subr.bf16.mxu0 %v946
    %2651 = vmatpush1.bf16.msra.mxu0 %v945
    %2652 = vmatprep.subr.bf16.mxu0 %v954
    %2653 = vmatpush1.bf16.msra.mxu0 %v953
    %2654 = vmatprep.subr.bf16.mxu0 %v962
    %2655 = vmatpush1.bf16.msra.mxu0 %v961
    %2656 = vmatprep.subr.bf16.mxu0 %v970
    %2657 = vmatpush1.bf16.msra.mxu0 %v969
    %2658 = vmatprep.subr.bf16.mxu0 %v978
    %2659 = vmatpush1.bf16.msra.mxu0 %v977
    %2660 = vmatprep.subr.bf16.mxu0 %v986
    %2661 = vmatpush1.bf16.msra.mxu0 %v985
    %2662 = vmatprep.subr.bf16.mxu0 %v994
    %2663 = vmatpush1.bf16.msra.mxu0 %v993
    %2664 = vmatprep.subr.bf16.mxu0 %v1002
    %2665 = vmatpush1.bf16.msra.mxu0 %v1001
    %2666 = vmatprep.subr.bf16.mxu0 %v1010
    %2667 = vmatpush1.bf16.msra.mxu0 %v1009
    %2668 = vmatprep.subr.bf16.mxu0 %v1018
    %2669 = vmatpush1.bf16.msra.mxu0 %v1017
    %2670 = vmatprep.subr.bf16.mxu0 %v1026
    %2671 = vmatpush1.bf16.msra.mxu0 %v1025
    %2672 = vmatprep.mubr.bf16.mxu0 %v2598
    %2673 = vmatmul.mubr.bf16.gmra.mrb[0].mxu0 %v2597
    %v2674 = vpop.f32.mrb[0].mxu0
    %v2675 = vadd.f32 0.0, %v2674
    %v2676 = vpop.f32.mrb[0].mxu0
    %v2677 = vadd.f32 0.0, %v2676
    %v2678 = vpop.f32.mrb[0].mxu0
    %v2679 = vpop.f32.mrb[0].mxu0
    %2680 = vdwg.mxu0
    %2681 = vmatprep.subr.bf16.mxu0 %v908
    %2682 = vmatpush1.bf16.msra.mxu0 %v907
    %2683 = vmatprep.subr.bf16.mxu0 %v916
    %2684 = vmatpush1.bf16.msra.mxu0 %v915
    %2685 = vmatprep.subr.bf16.mxu0 %v924
    %2686 = vmatpush1.bf16.msra.mxu0 %v923
    %2687 = vmatprep.subr.bf16.mxu0 %v932
    %2688 = vmatpush1.bf16.msra.mxu0 %v931
    %2689 = vmatprep.subr.bf16.mxu0 %v940
    %2690 = vmatpush1.bf16.msra.mxu0 %v939
    %2691 = vmatprep.subr.bf16.mxu0 %v948
    %2692 = vmatpush1.bf16.msra.mxu0 %v947
    %2693 = vmatprep.subr.bf16.mxu0 %v956
    %2694 = vmatpush1.bf16.msra.mxu0 %v955
    %2695 = vmatprep.subr.bf16.mxu0 %v964
    %2696 = vmatpush1.bf16.msra.mxu0 %v963
    %2697 = vmatprep.subr.bf16.mxu0 %v972
    %2698 = vmatpush1.bf16.msra.mxu0 %v971
    %2699 = vmatprep.subr.bf16.mxu0 %v980
    %2700 = vmatpush1.bf16.msra.mxu0 %v979
    %2701 = vmatprep.subr.bf16.mxu0 %v988
    %2702 = vmatpush1.bf16.msra.mxu0 %v987
    %2703 = vmatprep.subr.bf16.mxu0 %v996
    %2704 = vmatpush1.bf16.msra.mxu0 %v995
    %2705 = vmatprep.subr.bf16.mxu0 %v1004
    %2706 = vmatpush1.bf16.msra.mxu0 %v1003
    %2707 = vmatprep.subr.bf16.mxu0 %v1012
    %2708 = vmatpush1.bf16.msra.mxu0 %v1011
    %2709 = vmatprep.subr.bf16.mxu0 %v1020
    %2710 = vmatpush1.bf16.msra.mxu0 %v1019
    %2711 = vmatprep.subr.bf16.mxu0 %v1028
    %2712 = vmatpush1.bf16.msra.mxu0 %v1027
    %2713 = vmatprep.mubr.bf16.mxu0 %v2598
    %2714 = vmatmul.mubr.bf16.gmra.mrb[0].mxu0 %v2597
    %v2715 = vpop.f32.mrb[0].mxu0
    %v2716 = vadd.f32 0.0, %v2715
    %v2717 = vpop.f32.mrb[0].mxu0
    %v2718 = vadd.f32 0.0, %v2717
    %v2719 = vpop.f32.mrb[0].mxu0
    %v2720 = vpop.f32.mrb[0].mxu0
    %2721 = vdwg.mxu0
    %2722 = vmatprep.subr.bf16.mxu0 %v910
    %2723 = vmatpush1.bf16.msra.mxu0 %v909
    %2724 = vmatprep.subr.bf16.mxu0 %v918
    %2725 = vmatpush1.bf16.msra.mxu0 %v917
    %2726 = vmatprep.subr.bf16.mxu0 %v926
    %2727 = vmatpush1.bf16.msra.mxu0 %v925
    %2728 = vmatprep.subr.bf16.mxu0 %v934
    %2729 = vmatpush1.bf16.msra.mxu0 %v933
    %2730 = vmatprep.subr.bf16.mxu0 %v942
    %2731 = vmatpush1.bf16.msra.mxu0 %v941
    %2732 = vmatprep.subr.bf16.mxu0 %v950
    %2733 = vmatpush1.bf16.msra.mxu0 %v949
    %2734 = vmatprep.subr.bf16.mxu0 %v958
    %2735 = vmatpush1.bf16.msra.mxu0 %v957
    %2736 = vmatprep.subr.bf16.mxu0 %v966
    %2737 = vmatpush1.bf16.msra.mxu0 %v965
    %2738 = vmatprep.subr.bf16.mxu0 %v974
    %2739 = vmatpush1.bf16.msra.mxu0 %v973
    %2740 = vmatprep.subr.bf16.mxu0 %v982
    %2741 = vmatpush1.bf16.msra.mxu0 %v981
    %2742 = vmatprep.subr.bf16.mxu0 %v990
    %2743 = vmatpush1.bf16.msra.mxu0 %v989
    %2744 = vmatprep.subr.bf16.mxu0 %v998
    %2745 = vmatpush1.bf16.msra.mxu0 %v997
    %2746 = vmatprep.subr.bf16.mxu0 %v1006
    %2747 = vmatpush1.bf16.msra.mxu0 %v1005
    %2748 = vmatprep.subr.bf16.mxu0 %v1014
    %2749 = vmatpush1.bf16.msra.mxu0 %v1013
    %2750 = vmatprep.subr.bf16.mxu0 %v1022
    %2751 = vmatpush1.bf16.msra.mxu0 %v1021
    %2752 = vmatprep.subr.bf16.mxu0 %v1030
    %2753 = vmatpush1.bf16.msra.mxu0 %v1029
    %2754 = vmatprep.mubr.bf16.mxu0 %v2598
    %2755 = vmatmul.mubr.bf16.gmra.mrb[0].mxu0 %v2597
    %v2756 = vpop.f32.mrb[0].mxu0
    %v2757 = vadd.f32 0.0, %v2756
    %v2758 = vpop.f32.mrb[0].mxu0
    %v2759 = vadd.f32 0.0, %v2758
    %v2760 = vpop.f32.mrb[0].mxu0
    %v2761 = vpop.f32.mrb[0].mxu0
    %2762 = vdwg.mxu0
    %v2763 = vld [vmem:[#allocation2 + $0xe0] sm:$0xff]
    %v2764 = vld [vmem:[#allocation2 + $0xe8] sm:$0xff]
    %v2765 = vld [vmem:[#allocation2 + $0xf0] sm:$0xff]
    %v2766 = vld [vmem:[#allocation2 + $0xf8] sm:$0xff]
    %v2767 = vadd.f32 %v2634, %v2763
    %v2768 = vadd.f32 %v2636, %v2764
    %v2769 = vadd.f32 %v2675, %v2765
    %v2770 = vadd.f32 %v2677, %v2766
    %v2771 = vxor.u32 %v2767, 2147483648
    %v2772 = vxor.u32 %v2768, 2147483648
    %v2773 = vxor.u32 %v2769, 2147483648
    %v2774 = vxor.u32 %v2770, 2147483648
    %v2775 = vmul.f32 %v2771, 1.442695
    %v2776 = vpow.pop %v2775
    %v2777 = vmul.f32 %v2772, 1.442695
    %v2778 = vpow.pop %v2777
    %v2779 = vmul.f32 %v2773, 1.442695
    %v2780 = vpow.pop %v2779
    %v2781 = vmul.f32 %v2774, 1.442695
    %v2782 = vpow.pop %v2781
    %v2783 = vadd.f32 %v2776, 1.0
    %v2784 = vadd.f32 %v2778, 1.0
    %v2785 = vadd.f32 %v2780, 1.0
    %v2786 = vadd.f32 %v2782, 1.0
    %v2787 = vrcp.pop %v2783
    %v2788 = vmul.f32 1.0, %v2787
    %v2789 = vrcp.pop %v2784
    %v2790 = vmul.f32 1.0, %v2789
    %v2791 = vrcp.pop %v2785
    %v2792 = vmul.f32 1.0, %v2791
    %v2793 = vrcp.pop %v2786
    %v2794 = vmul.f32 1.0, %v2793
    %v2795 = vadd.f32 %v2716, %v337
    %v2796 = vadd.f32 %v2718, %v341
    %v2797 = vadd.f32 %v2757, %v345
    %v2798 = vadd.f32 %v2759, %v349
    %v2799 = vxor.u32 %v2795, 2147483648
    %v2800 = vxor.u32 %v2796, 2147483648
    %v2801 = vxor.u32 %v2797, 2147483648
    %v2802 = vxor.u32 %v2798, 2147483648
    %v2803 = vmul.f32 %v2799, 1.442695
    %v2804 = vpow.pop %v2803
    %v2805 = vmul.f32 %v2800, 1.442695
    %v2806 = vpow.pop %v2805
    %v2807 = vmul.f32 %v2801, 1.442695
    %v2808 = vpow.pop %v2807
    %v2809 = vmul.f32 %v2802, 1.442695
    %v2810 = vpow.pop %v2809
    %v2811 = vadd.f32 %v2804, 1.0
    %v2812 = vadd.f32 %v2806, 1.0
    %v2813 = vadd.f32 %v2808, 1.0
    %v2814 = vadd.f32 %v2810, 1.0
    %v2815 = vrcp.pop %v2811
    %v2816 = vmul.f32 1.0, %v2815
    %v2817 = vrcp.pop %v2812
    %v2818 = vmul.f32 1.0, %v2817
    %v2819 = vrcp.pop %v2813
    %v2820 = vmul.f32 1.0, %v2819
    %v2821 = vrcp.pop %v2814
    %v2822 = vmul.f32 1.0, %v2821
    %v2823 = vmul.f32 %v2822, 2.0
    %v2824 = vsub.f32 %v2823, 1.0
    %v2825 = vmul.f32 %v2818, %v2587
    %v2826 = vmul.f32 %v2816, %v2824
    %v2827 = vadd.f32 %v2825, %v2826
    %v2828 = vtanh.pop %v2827
    %v2829 = vmul.f32 %v2820, %v2828
    %v2830 = vmul.f32 %v2794, 2.0
    %v2831 = vsub.f32 %v2830, 1.0
    %v2832 = vmul.f32 %v2790, %v2594
    %v2833 = vmul.f32 %v2788, %v2831
    %v2834 = vadd.f32 %v2832, %v2833
    %v2835 = vtanh.pop %v2834
    %v2836 = vmul.f32 %v2792, %v2835
    %v2837 = vpack.c.bf16 %v2836, %v2836
    %v2838 = vpack.c.bf16 %v2829, %v2829
    %2839 = vmatprep.subr.bf16.mxu0 %v908
    %2840 = vmatpush1.bf16.msra.mxu0 %v907
    %2841 = vmatprep.subr.bf16.mxu0 %v916
    %2842 = vmatpush1.bf16.msra.mxu0 %v915
    %2843 = vmatprep.subr.bf16.mxu0 %v924
    %2844 = vmatpush1.bf16.msra.mxu0 %v923
    %2845 = vmatprep.subr.bf16.mxu0 %v932
    %2846 = vmatpush1.bf16.msra.mxu0 %v931
    %2847 = vmatprep.subr.bf16.mxu0 %v940
    %2848 = vmatpush1.bf16.msra.mxu0 %v939
    %2849 = vmatprep.subr.bf16.mxu0 %v948
    %2850 = vmatpush1.bf16.msra.mxu0 %v947
    %2851 = vmatprep.subr.bf16.mxu0 %v956
    %2852 = vmatpush1.bf16.msra.mxu0 %v955
    %2853 = vmatprep.subr.bf16.mxu0 %v964
    %2854 = vmatpush1.bf16.msra.mxu0 %v963
    %2855 = vmatprep.subr.bf16.mxu0 %v972
    %2856 = vmatpush1.bf16.msra.mxu0 %v971
    %2857 = vmatprep.subr.bf16.mxu0 %v980
    %2858 = vmatpush1.bf16.msra.mxu0 %v979
    %2859 = vmatprep.subr.bf16.mxu0 %v988
    %2860 = vmatpush1.bf16.msra.mxu0 %v987
    %2861 = vmatprep.subr.bf16.mxu0 %v996
    %2862 = vmatpush1.bf16.msra.mxu0 %v995
    %2863 = vmatprep.subr.bf16.mxu0 %v1004
    %2864 = vmatpush1.bf16.msra.mxu0 %v1003
    %2865 = vmatprep.subr.bf16.mxu0 %v1012
    %2866 = vmatpush1.bf16.msra.mxu0 %v1011
    %2867 = vmatprep.subr.bf16.mxu0 %v1020
    %2868 = vmatpush1.bf16.msra.mxu0 %v1019
    %2869 = vmatprep.subr.bf16.mxu0 %v1028
    %2870 = vmatpush1.bf16.msra.mxu0 %v1027
    %2871 = vmatprep.mubr.bf16.mxu0 %v2838
    %2872 = vmatmul.mubr.bf16.gmra.mrb[0].mxu0 %v2837
    %v2873 = vpop.f32.mrb[0].mxu0
    %v2874 = vadd.f32 0.0, %v2873
    %v2875 = vpop.f32.mrb[0].mxu0
    %v2876 = vadd.f32 0.0, %v2875
    %v2877 = vpop.f32.mrb[0].mxu0
    %v2878 = vpop.f32.mrb[0].mxu0
    %2879 = vdwg.mxu0
    %2880 = vmatprep.subr.bf16.mxu0 %v910
    %2881 = vmatpush1.bf16.msra.mxu0 %v909
    %2882 = vmatprep.subr.bf16.mxu0 %v918
    %2883 = vmatpush1.bf16.msra.mxu0 %v917
    %2884 = vmatprep.subr.bf16.mxu0 %v926
    %2885 = vmatpush1.bf16.msra.mxu0 %v925
    %2886 = vmatprep.subr.bf16.mxu0 %v934
    %2887 = vmatpush1.bf16.msra.mxu0 %v933
    %2888 = vmatprep.subr.bf16.mxu0 %v942
    %2889 = vmatpush1.bf16.msra.mxu0 %v941
    %2890 = vmatprep.subr.bf16.mxu0 %v950
    %2891 = vmatpush1.bf16.msra.mxu0 %v949
    %2892 = vmatprep.subr.bf16.mxu0 %v958
    %2893 = vmatpush1.bf16.msra.mxu0 %v957
    %2894 = vmatprep.subr.bf16.mxu0 %v966
    %2895 = vmatpush1.bf16.msra.mxu0 %v965
    %2896 = vmatprep.subr.bf16.mxu0 %v974
    %2897 = vmatpush1.bf16.msra.mxu0 %v973
    %2898 = vmatprep.subr.bf16.mxu0 %v982
    %2899 = vmatpush1.bf16.msra.mxu0 %v981
    %2900 = vmatprep.subr.bf16.mxu0 %v990
    %2901 = vmatpush1.bf16.msra.mxu0 %v989
    %2902 = vmatprep.subr.bf16.mxu0 %v998
    %2903 = vmatpush1.bf16.msra.mxu0 %v997
    %2904 = vmatprep.subr.bf16.mxu0 %v1006
    %2905 = vmatpush1.bf16.msra.mxu0 %v1005
    %2906 = vmatprep.subr.bf16.mxu0 %v1014
    %2907 = vmatpush1.bf16.msra.mxu0 %v1013
    %2908 = vmatprep.subr.bf16.mxu0 %v1022
    %2909 = vmatpush1.bf16.msra.mxu0 %v1021
    %2910 = vmatprep.subr.bf16.mxu0 %v1030
    %2911 = vmatpush1.bf16.msra.mxu0 %v1029
    %2912 = vmatprep.mubr.bf16.mxu0 %v2838
    %2913 = vmatmul.mubr.bf16.gmra.mrb[0].mxu0 %v2837
    %v2914 = vpop.f32.mrb[0].mxu0
    %v2915 = vadd.f32 0.0, %v2914
    %v2916 = vpop.f32.mrb[0].mxu0
    %v2917 = vadd.f32 0.0, %v2916
    %v2918 = vpop.f32.mrb[0].mxu0
    %v2919 = vpop.f32.mrb[0].mxu0
    %2920 = vdwg.mxu0
    %v2921 = vadd.f32 %v2874, %v337
    %v2922 = vadd.f32 %v2876, %v341
    %v2923 = vadd.f32 %v2915, %v345
    %v2924 = vadd.f32 %v2917, %v349
    %v2925 = vxor.u32 %v2921, 2147483648
    %v2926 = vxor.u32 %v2922, 2147483648
    %v2927 = vxor.u32 %v2923, 2147483648
    %v2928 = vxor.u32 %v2924, 2147483648
    %v2929 = vmul.f32 %v2925, 1.442695
    %v2930 = vpow.pop %v2929
    %v2931 = vmul.f32 %v2926, 1.442695
    %v2932 = vpow.pop %v2931
    %v2933 = vmul.f32 %v2927, 1.442695
    %v2934 = vpow.pop %v2933
    %v2935 = vmul.f32 %v2928, 1.442695
    %v2936 = vpow.pop %v2935
    %v2937 = vadd.f32 %v2930, 1.0
    %v2938 = vadd.f32 %v2932, 1.0
    %v2939 = vadd.f32 %v2934, 1.0
    %v2940 = vadd.f32 %v2936, 1.0
    %v2941 = vrcp.pop %v2937
    %v2942 = vmul.f32 1.0, %v2941
    %v2943 = vrcp.pop %v2938
    %v2944 = vmul.f32 1.0, %v2943
    %v2945 = vrcp.pop %v2939
    %v2946 = vmul.f32 1.0, %v2945
    %v2947 = vrcp.pop %v2940
    %v2948 = vmul.f32 1.0, %v2947
    %v2949 = vmul.f32 %v2948, 2.0
    %v2950 = vsub.f32 %v2949, 1.0
    %v2951 = vmul.f32 %v2944, %v2827
    %v2952 = vmul.f32 %v2942, %v2950
    %v2953 = vadd.f32 %v2951, %v2952
    %v2954 = vtanh.pop %v2953
    %v2955 = vmul.f32 %v2946, %v2954
    %v2956 = vpack.c.bf16 %v2955, %v2955
    %v2957 = vld [vmem:[%s5] sm:$0xf]
    %v2958 = vld [vmem:[%s5 + $0x4] sm:$0xf]
    %v2959 = vld [vmem:[%s5 + $0x8] sm:$0xf]
    %v2960 = vld [vmem:[%s5 + $0xc] sm:$0xf]
    %v2961 = vld [vmem:[%s5 + $0x10] sm:$0xf]
    %v2962 = vld [vmem:[%s5 + $0x14] sm:$0xf]
    %v2963 = vld [vmem:[%s5 + $0x18] sm:$0xf]
    %v2964 = vld [vmem:[%s5 + $0x1c] sm:$0xf]
    %v2965 = vld [vmem:[%s5 + $0x20] sm:$0xf]
    %v2966 = vld [vmem:[%s5 + $0x24] sm:$0xf]
    %v2967 = vld [vmem:[%s5 + $0x28] sm:$0xf]
    %v2968 = vld [vmem:[%s5 + $0x2c] sm:$0xf]
    %v2969 = vld [vmem:[%s5 + $0x30] sm:$0xf]
    %v2970 = vld [vmem:[%s5 + $0x34] sm:$0xf]
    %v2971 = vld [vmem:[%s5 + $0x38] sm:$0xf]
    %v2972 = vld [vmem:[%s5 + $0x3c] sm:$0xf]
    %v2973 = vld [vmem:[%s6] sm:$0x1]
    %v2975 = vlaneseq
    %v2976 = vshrl.u32 %v2975, 7
    %v2977 = vsub.s32 0, %v2976
    %v2978 = vrot.slane %v2973, %v2977
    %v2996 = vunpack.c.l.b16 %v2957
    %v2997 = vunpack.c.l.b16 %v2958
    %v2998 = vunpack.c.l.b16 %v2959
    %v2999 = vunpack.c.l.b16 %v2960
    %v3000 = vunpack.c.l.b16 %v2961
    %v3001 = vunpack.c.l.b16 %v2962
    %v3002 = vunpack.c.l.b16 %v2963
    %v3003 = vunpack.c.l.b16 %v2964
    %v3004 = vunpack.c.l.b16 %v2965
    %v3005 = vunpack.c.l.b16 %v2966
    %v3006 = vunpack.c.l.b16 %v2967
    %v3007 = vunpack.c.l.b16 %v2968
    %v3008 = vunpack.c.l.b16 %v2969
    %v3009 = vunpack.c.l.b16 %v2970
    %v3010 = vunpack.c.l.b16 %v2971
    %v3011 = vunpack.c.l.b16 %v2972
    %v3012 = vpack.c.b16 %v2997, %v2996
    %v3013 = vpack.c.b16 %v2999, %v2998
    %v3014 = vpack.c.b16 %v3001, %v3000
    %v3015 = vpack.c.b16 %v3003, %v3002
    %v3016 = vpack.c.b16 %v3005, %v3004
    %v3017 = vpack.c.b16 %v3007, %v3006
    %v3018 = vpack.c.b16 %v3009, %v3008
    %v3019 = vpack.c.b16 %v3011, %v3010
    %3028 = vmatprep.subr.bf16.mxu0 0
    %3029 = vmatpush1.bf16.msra.mxu0 %v3012
    %3030 = vmatprep.subr.bf16.mxu0 0
    %3031 = vmatpush1.bf16.msra.mxu0 %v3013
    %3032 = vmatprep.subr.bf16.mxu0 0
    %3033 = vmatpush1.bf16.msra.mxu0 %v3014
    %3034 = vmatprep.subr.bf16.mxu0 0
    %3035 = vmatpush1.bf16.msra.mxu0 %v3015
    %3036 = vmatprep.subr.bf16.mxu0 0
    %3037 = vmatpush1.bf16.msra.mxu0 %v3016
    %3038 = vmatprep.subr.bf16.mxu0 0
    %3039 = vmatpush1.bf16.msra.mxu0 %v3017
    %3040 = vmatprep.subr.bf16.mxu0 0
    %3041 = vmatpush1.bf16.msra.mxu0 %v3018
    %3042 = vmatprep.subr.bf16.mxu0 0
    %3043 = vmatpush1.bf16.msra.mxu0 %v3019
    %3044 = vmatprep.subr.bf16.mxu0 0
    %3045 = vmatpush1.bf16.msra.mxu0 0
    %3046 = vmatprep.subr.bf16.mxu0 0
    %3047 = vmatpush1.bf16.msra.mxu0 0
    %3048 = vmatprep.subr.bf16.mxu0 0
    %3049 = vmatpush1.bf16.msra.mxu0 0
    %3050 = vmatprep.subr.bf16.mxu0 0
    %3051 = vmatpush1.bf16.msra.mxu0 0
    %3052 = vmatprep.subr.bf16.mxu0 0
    %3053 = vmatpush1.bf16.msra.mxu0 0
    %3054 = vmatprep.subr.bf16.mxu0 0
    %3055 = vmatpush1.bf16.msra.mxu0 0
    %3056 = vmatprep.subr.bf16.mxu0 0
    %3057 = vmatpush1.bf16.msra.mxu0 0
    %3058 = vmatprep.subr.bf16.mxu0 0
    %3059 = vmatpush1.bf16.msra.mxu0 0
    %3060 = vmatprep.mubr.bf16.mxu0 0
    %3061 = vmatmul.mubr.bf16.gmra.mrb[0].mxu0 %v2956
    %v3062 = vpop.f32.mrb[0].mxu0
    %v3063 = vadd.f32 %v2978, %v3062
    %v3064 = vpop.f32.mrb[0].mxu0
    %v3065 = vpop.f32.mrb[0].mxu0
    %v3066 = vpop.f32.mrb[0].mxu0
    %3067 = vdwg.mxu0
    %v3068 = vmax.f32 %v3063, 0.0
    %v3069 = vpack.c.bf16 %v3068, %v3068
    %v3070 = vld [vmem:[%s7] sm:$0xf]
    %v3071 = vld [vmem:[%s7 + $0x4] sm:$0xf]
    %v3072 = vld [vmem:[%s7 + $0x8] sm:$0xf]
    %v3073 = vld [vmem:[%s7 + $0xc] sm:$0xf]
    %v3074 = vld [vmem:[%s7 + $0x10] sm:$0xf]
    %v3075 = vld [vmem:[%s7 + $0x14] sm:$0xf]
    %v3076 = vld [vmem:[%s7 + $0x18] sm:$0xf]
    %v3077 = vld [vmem:[%s7 + $0x1c] sm:$0xf]
    %v3078 = vld [vmem:[%s7 + $0x20] sm:$0xf]
    %v3079 = vld [vmem:[%s7 + $0x24] sm:$0xf]
    %v3080 = vld [vmem:[%s7 + $0x28] sm:$0xf]
    %v3081 = vld [vmem:[%s7 + $0x2c] sm:$0xf]
    %v3082 = vld [vmem:[%s7 + $0x30] sm:$0xf]
    %v3083 = vld [vmem:[%s7 + $0x34] sm:$0xf]
    %v3084 = vld [vmem:[%s7 + $0x38] sm:$0xf]
    %v3085 = vld [vmem:[%s7 + $0x3c] sm:$0xf]
    %v3086 = vld [vmem:[%s8] sm:$0x1]
    %v3088 = vlaneseq
    %v3089 = vshrl.u32 %v3088, 7
    %v3090 = vsub.s32 0, %v3089
    %v3091 = vrot.slane %v3086, %v3090
    %v3109 = vunpack.c.l.b16 %v3070
    %v3110 = vunpack.c.l.b16 %v3071
    %v3111 = vunpack.c.l.b16 %v3072
    %v3112 = vunpack.c.l.b16 %v3073
    %v3113 = vunpack.c.l.b16 %v3074
    %v3114 = vunpack.c.l.b16 %v3075
    %v3115 = vunpack.c.l.b16 %v3076
    %v3116 = vunpack.c.l.b16 %v3077
    %v3117 = vunpack.c.l.b16 %v3078
    %v3118 = vunpack.c.l.b16 %v3079
    %v3119 = vunpack.c.l.b16 %v3080
    %v3120 = vunpack.c.l.b16 %v3081
    %v3121 = vunpack.c.l.b16 %v3082
    %v3122 = vunpack.c.l.b16 %v3083
    %v3123 = vunpack.c.l.b16 %v3084
    %v3124 = vunpack.c.l.b16 %v3085
    %v3125 = vpack.c.b16 %v3110, %v3109
    %v3126 = vpack.c.b16 %v3112, %v3111
    %v3127 = vpack.c.b16 %v3114, %v3113
    %v3128 = vpack.c.b16 %v3116, %v3115
    %v3129 = vpack.c.b16 %v3118, %v3117
    %v3130 = vpack.c.b16 %v3120, %v3119
    %v3131 = vpack.c.b16 %v3122, %v3121
    %v3132 = vpack.c.b16 %v3124, %v3123
    %3141 = vmatprep.subr.bf16.mxu0 0
    %3142 = vmatpush1.bf16.msra.mxu0 %v3125
    %3143 = vmatprep.subr.bf16.mxu0 0
    %3144 = vmatpush1.bf16.msra.mxu0 %v3126
    %3145 = vmatprep.subr.bf16.mxu0 0
    %3146 = vmatpush1.bf16.msra.mxu0 %v3127
    %3147 = vmatprep.subr.bf16.mxu0 0
    %3148 = vmatpush1.bf16.msra.mxu0 %v3128
    %3149 = vmatprep.subr.bf16.mxu0 0
    %3150 = vmatpush1.bf16.msra.mxu0 %v3129
    %3151 = vmatprep.subr.bf16.mxu0 0
    %3152 = vmatpush1.bf16.msra.mxu0 %v3130
    %3153 = vmatprep.subr.bf16.mxu0 0
    %3154 = vmatpush1.bf16.msra.mxu0 %v3131
    %3155 = vmatprep.subr.bf16.mxu0 0
    %3156 = vmatpush1.bf16.msra.mxu0 %v3132
    %3157 = vmatprep.subr.bf16.mxu0 0
    %3158 = vmatpush1.bf16.msra.mxu0 0
    %3159 = vmatprep.subr.bf16.mxu0 0
    %3160 = vmatpush1.bf16.msra.mxu0 0
    %3161 = vmatprep.subr.bf16.mxu0 0
    %3162 = vmatpush1.bf16.msra.mxu0 0
    %3163 = vmatprep.subr.bf16.mxu0 0
    %3164 = vmatpush1.bf16.msra.mxu0 0
    %3165 = vmatprep.subr.bf16.mxu0 0
    %3166 = vmatpush1.bf16.msra.mxu0 0
    %3167 = vmatprep.subr.bf16.mxu0 0
    %3168 = vmatpush1.bf16.msra.mxu0 0
    %3169 = vmatprep.subr.bf16.mxu0 0
    %3170 = vmatpush1.bf16.msra.mxu0 0
    %3171 = vmatprep.subr.bf16.mxu0 0
    %3172 = vmatpush1.bf16.msra.mxu0 0
    %3173 = vmatprep.mubr.bf16.mxu0 0
    %3174 = vmatmul.mubr.bf16.gmra.mrb[0].mxu0 %v3069
    %v3175 = vpop.f32.mrb[0].mxu0
    %v3176 = vadd.f32 %v3091, %v3175
    %v3177 = vpop.f32.mrb[0].mxu0
    %v3178 = vpop.f32.mrb[0].mxu0
    %v3179 = vpop.f32.mrb[0].mxu0
    %3180 = vdwg.mxu0
    %v3181 = vld [vmem:[%s9] sm:$0xff]
    %v3182 = vsub.f32 %v3181, 1.0
    %v3183 = vmul.f32 %v3182, 1e+09
    %v3184 = vadd.f32 %v3176, %v3183
    %3185 = vst [vmem:[%s10] sm:$0xff] %v3184
    %3186 = vst [vmem:[%s11] sm:$0xff] %v2836
    %s3187 = scalar_lea.vmem %s11, 8
    %3188 = vst [vmem:[%s3187] sm:$0xff] %v2955
    %3189 = vst [vmem:[%s12] sm:$0xff] %v2834
    %s3190 = scalar_lea.vmem %s12, 8
    %3191 = vst [vmem:[%s3190] sm:$0xff] %v2953
    // Predicated region
    $region50: #{dqn_lstm_forward.1} parent=1 // pred_check
      _
    $region51: #{dqn_lstm_forward.1} parent=1 // pred_check_branch
      %3193 = sbr.rel (0) target = $region53
    $region52: #{dqn_lstm_forward.1} parent=1 // pred_region
      _
    $region53: #{dqn_lstm_forward.1} parent=1 // pred_fallthru
      _
    // Predicated region
    $region54: #{dqn_lstm_forward.1} parent=1 // pred_check
      _
    $region55: #{dqn_lstm_forward.1} parent=1 // pred_check_branch
      %3195 = sbr.rel (0) target = $region57
    $region56: #{dqn_lstm_forward.1} parent=1 // pred_region
      _
    $region57: #{dqn_lstm_forward.1} parent=1 // pred_fallthru
      _
    // Predicated region
    $region58: #{dqn_lstm_forward.1} parent=1 // pred_check
      _
    $region59: #{dqn_lstm_forward.1} parent=1 // pred_check_branch
      %3197 = sbr.rel (0) target = $region61
    $region60: #{dqn_lstm_forward.1} parent=1 // pred_region
      _
    $region61: #{dqn_lstm_forward.1} parent=1 // pred_fallthru
      _
    // Predicated region
    $region62: #{dqn_lstm_forward.1} parent=1 // pred_check
      _
    $region63: #{dqn_lstm_forward.1} parent=1 // pred_check_branch
      %3199 = sbr.rel (0) target = $region65
    $region64: #{dqn_lstm_forward.1} parent=1 // pred_region
      _
    $region65: #{dqn_lstm_forward.1} parent=1 // pred_fallthru
      _
    // Predicated region
    $region66: #{dqn_lstm_forward.1} parent=1 // pred_check
      _
    $region67: #{dqn_lstm_forward.1} parent=1 // pred_check_branch
      %3201 = sbr.rel (0) target = $region69
    $region68: #{dqn_lstm_forward.1} parent=1 // pred_region
      _
    $region69: #{dqn_lstm_forward.1} parent=1 // pred_fallthru
      _
    // Predicated region
    $region70: #{dqn_lstm_forward.1} parent=1 // pred_check
      _
    $region71: #{dqn_lstm_forward.1} parent=1 // pred_check_branch
      %3203 = sbr.rel (0) target = $region73
    $region72: #{dqn_lstm_forward.1} parent=1 // pred_region
      _
    $region73: #{dqn_lstm_forward.1} parent=1 // pred_fallthru
      _
    %3204 = vsyncpa [#allocation4], 1
    %3205 = vsyncpa [#allocation6], 1

</llo_original>
